<compile_context>
chip_gen: v6e
topology: v6e:2x2x1
jax: 0.10.0
libtpu: 0.0.40
codegen_flags: <defaults>
</compile_context>

<pallas_src>
import numpy as np
import jax
import jax.numpy as jnp
from jax import lax
from jax.experimental import pallas as pl
from jax.experimental.pallas import tpu as pltpu

_VMEM = pl.BlockSpec(memory_space=pltpu.MemorySpace.VMEM)

C1P = 128        # conv1 output channels, padded 96 -> 128
K2P = 25 * C1P   # conv2 im2col width, padded 2400 -> 3200
NCLS = 10
NCLS_PAD = 128   # FC output lanes, padded 10 -> 128
NEG_BIG = -1e30  # mask value for padded logits


# ----------------------------- Pallas kernels ------------------------------ #

def _head_kernel(p_ref, w_ref, b_ref, o_ref):
    """conv1 (as GEMM) + bias + ReLU + MaxPool2d(2,2), fused.

    p_ref: (4, M, 128) conv1 im2col patches, one slab per 2x2-pool tap.
    w_ref: (128, 128)  conv1 weight (K 121->128, OC 96->128, zero padded).
    b_ref: (1, 128)    conv1 bias (zero padded).
    o_ref: (M, 128)    pooled ReLU(conv1), channel-last, rows = (n, py, px).
    """
    def tap(t):
        acc = jnp.dot(p_ref[t], w_ref[...], preferred_element_type=jnp.float32)
        return jnp.maximum(acc + b_ref[...], 0.0)

    o_ref[...] = jnp.maximum(jnp.maximum(tap(0), tap(1)),
                             jnp.maximum(tap(2), tap(3)))


def _tail_kernel(p2_ref, w2_ref, b2_ref, w3_ref, b3_ref, w4_ref, b4_ref,
                 w5_ref, b5_ref, wf_ref, bf_ref, o_ref):
    """conv2 + ReLU + MaxPool2d(2,2) + conv3/4/5 + ReLU + FC + LogSoftmax."""
    n = o_ref.shape[0]

    # conv2 as one GEMM over all 4 surviving output positions (rows = p*n + b).
    h2 = jnp.dot(p2_ref[...], w2_ref[...], preferred_element_type=jnp.float32)
    h2 = jnp.maximum(h2 + b2_ref[...], 0.0)                        # (4n, 256)

    # MaxPool #2: elementwise max over the 4 conv2 output positions.
    h = jnp.maximum(jnp.maximum(h2[0 * n:1 * n], h2[1 * n:2 * n]),
                    jnp.maximum(h2[2 * n:3 * n], h2[3 * n:4 * n]))  # (n, 256)

    # conv3/4/5 operate on 1x1 spatial maps (pad=1, k=3) => only the
    # kernel-center tap sees data, i.e. they are plain Linear layers.
    h = jnp.maximum(jnp.dot(h, w3_ref[...], preferred_element_type=jnp.float32)
                    + b3_ref[...], 0.0)                             # (n, 384)
    h = jnp.maximum(jnp.dot(h, w4_ref[...], preferred_element_type=jnp.float32)
                    + b4_ref[...], 0.0)                             # (n, 384)
    h = jnp.maximum(jnp.dot(h, w5_ref[...], preferred_element_type=jnp.float32)
                    + b5_ref[...], 0.0)                             # (n, 256)

    # classifier: Linear(256, 10) padded to 128 lanes + LogSoftmax.
    logits = jnp.dot(h, wf_ref[...], preferred_element_type=jnp.float32) \
        + bf_ref[...]                                               # (n, 128)
    lane = lax.broadcasted_iota(jnp.int32, logits.shape, 1)
    logits = jnp.where(lane < NCLS, logits, NEG_BIG)                # mask pads
    m = jnp.max(logits, axis=-1, keepdims=True)
    s = logits - m
    lse = jnp.log(jnp.sum(jnp.exp(s), axis=-1, keepdims=True))
    o_ref[...] = s - lse


def _head_call(patches1, w1p, b1p):
    M = patches1.shape[1]
    return pl.pallas_call(
        _head_kernel,
        out_shape=jax.ShapeDtypeStruct((M, C1P), jnp.float32),
        in_specs=[_VMEM, _VMEM, _VMEM],
        out_specs=_VMEM,
    )(patches1, w1p, b1p)


def _tail_call(patches2, p):
    n = patches2.shape[0] // 4
    return pl.pallas_call(
        _tail_kernel,
        out_shape=jax.ShapeDtypeStruct((n, NCLS_PAD), jnp.float32),
        in_specs=[_VMEM] * 11,
        out_specs=_VMEM,
    )(patches2, p["w2p"], p["b2p"], p["w3p"], p["b3p"], p["w4p"], p["b4p"],
      p["w5p"], p["b5p"], p["wfp"], p["bfp"])


# ------------------------------ forward pass -------------------------------- #

def net_forward(x, p):
    """x: (N, 1, 28, 28) float32 -> log-probabilities (N, 10)."""
    N = x.shape[0]

    # conv1 im2col, grouped by tap position inside each 2x2 pooling window.
    # conv1: k=11, s=4, pad=2 -> 6x6 output; pool -> 3x3 (py, px).
    xp = jnp.pad(x[:, 0], ((0, 0), (2, 2), (2, 2)))            # (N, 32, 32)
    taps = []
    for dy in (0, 1):
        for dx in (0, 1):
            rows = []
            for py in range(3):
                for px in range(3):
                    oy, ox = 2 * py + dy, 2 * px + dx
                    rows.append(
                        xp[:, oy * 4:oy * 4 + 11, ox * 4:ox * 4 + 11]
                        .reshape(N, 121))
            taps.append(jnp.stack(rows, axis=1).reshape(N * 9, 121))
    patches1 = jnp.pad(jnp.stack(taps, axis=0),
                       ((0, 0), (0, 0), (0, C1P - 121)))        # (4, 9N, 128)

    pooled1 = _head_call(patches1, p["w1p"], p["b1p"])          # (9N, 128)

    # conv2 im2col (k=5, pad=2) restricted to the 4 output positions that
    # survive the second 2x2 MaxPool.  Feature order = (ky, kx, c).
    pm = jnp.pad(pooled1.reshape(N, 3, 3, C1P),
                 ((0, 0), (2, 2), (2, 2), (0, 0)))              # (N, 7, 7, 128)
    pos = [pm[:, oy:oy + 5, ox:ox + 5, :].reshape(N, K2P)
           for oy in (0, 1) for ox in (0, 1)]
    patches2 = jnp.stack(pos, axis=0).reshape(4 * N, K2P)       # (4N, 3200)

    logp = _tail_call(patches2, p)                              # (N, 128)
    return logp[:, :NCLS]


# ------------------------ params & pure-JAX reference ----------------------- #

def init_params(key):
    """Torch-layout params, mimicking default uniform(-1/sqrt(fan_in), ...)."""
    def conv_init(k, oc, ic, kh, kw):
        kw_, kb_ = jax.random.split(k)
        bound = 1.0 / np.sqrt(ic * kh * kw)
        return (jax.random.uniform(kw_, (oc, ic, kh, kw), jnp.float32, -bound, bound),
                jax.random.uniform(kb_, (oc,), jnp.float32, -bound, bound))

    def fc_init(k, out_f, in_f):
        kw_, kb_ = jax.random.split(k)
        bound = 1.0 / np.sqrt(in_f)
        return (jax.random.uniform(kw_, (out_f, in_f), jnp.float32, -bound, bound),
                jax.random.uniform(kb_, (out_f,), jnp.float32, -bound, bound))

    ks = jax.random.split(key, 6)
    p = {}
    p["w1"], p["b1"] = conv_init(ks[0], 96, 1, 11, 11)
    p["w2"], p["b2"] = conv_init(ks[1], 256, 96, 5, 5)
    p["w3"], p["b3"] = conv_init(ks[2], 384, 256, 3, 3)
    p["w4"], p["b4"] = conv_init(ks[3], 384, 384, 3, 3)
    p["w5"], p["b5"] = conv_init(ks[4], 256, 384, 3, 3)
    p["wfc"], p["bfc"] = fc_init(ks[5], 10, 256)
    return p


def prepare_params(raw):
    """One-time weight prep: flatten, transpose to (K, OC), zero-pad to lanes."""
    p = {}
    w1m = raw["w1"].reshape(96, 121).T                              # (121, 96)
    p["w1p"] = jnp.pad(w1m, ((0, C1P - 121), (0, C1P - 96)))        # (128, 128)
    p["b1p"] = jnp.pad(raw["b1"], (0, C1P - 96)).reshape(1, C1P)

    w2r = jnp.pad(raw["w2"].transpose(2, 3, 1, 0),                  # (5,5,96,256)
                  ((0, 0), (0, 0), (0, C1P - 96), (0, 0)))          # (5,5,128,256)
    p["w2p"] = w2r.reshape(K2P, 256)
    p["b2p"] = raw["b2"].reshape(1, 256)

    # conv3/4/5 on 1x1 spatial inputs use only the kernel center tap.
    p["w3p"] = raw["w3"][:, :, 1, 1].T                              # (256, 384)
    p["b3p"] = raw["b3"].reshape(1, 384)
    p["w4p"] = raw["w4"][:, :, 1, 1].T                              # (384, 384)
    p["b4p"] = raw["b4"].reshape(1, 384)
    p["w5p"] = raw["w5"][:, :, 1, 1].T                              # (384, 256)
    p["b5p"] = raw["b5"].reshape(1, 256)

    p["wfp"] = jnp.pad(raw["wfc"].T, ((0, 0), (0, NCLS_PAD - NCLS)))  # (256, 128)
    p["bfp"] = jnp.pad(raw["bfc"], (0, NCLS_PAD - NCLS)).reshape(1, NCLS_PAD)
    return p


def reference_forward(x, p):
    """Accurate pure-JAX reference of the original torch module."""
    def conv(x, w, b, stride, pad):
        y = lax.conv_general_dilated(
            x, w, (stride, stride), [(pad, pad), (pad, pad)],
            dimension_numbers=("NCHW", "OIHW", "NCHW"),
            precision=lax.Precision.HIGHEST)
        return y + b[None, :, None, None]

    def pool(x):
        return lax.reduce_window(x, jnp.array(-jnp.inf, x.dtype), lax.max,
                                 (1, 1, 2, 2), (1, 1, 2, 2), "VALID")

    x = jnp.maximum(conv(x, p["w1"], p["b1"], 4, 2), 0.0)
    x = pool(x)
    x = jnp.maximum(conv(x, p["w2"], p["b2"], 1, 2), 0.0)
    x = pool(x)
    x = jnp.maximum(conv(x, p["w3"], p["b3"], 1, 1), 0.0)
    x = jnp.maximum(conv(x, p["w4"], p["b4"], 1, 1), 0.0)
    x = jnp.maximum(conv(x, p["w5"], p["b5"], 1, 1), 0.0)
    x = x.reshape(x.shape[0], -1)
    logits = jnp.dot(x, p["wfc"].T, precision=lax.Precision.HIGHEST) + p["bfc"]
    return jax.nn.log_softmax(logits, axis=1)


# ---------------------------------- main ------------------------------------ #

if __name__ == "__main__":
    key = jax.random.PRNGKey(0)
    k_x, k_p = jax.random.split(key)

    # Linear(256, 10) pins the feature extractor output to 256*1*1, which
    # implies the FashionMNIST input size (N, 1, 28, 28).  Small batch = 2.
    x = jax.random.normal(k_x, (2, 1, 28, 28), jnp.float32)
    raw = init_params(k_p)
    params = prepare_params(raw)        # one-time layout/padding prep

    out = jax.jit(net_forward)(x, params)
    out = jax.block_until_ready(out)
    assert out.shape == (2, 10) and out.dtype == jnp.float32

    ref = reference_forward(x, raw)
    err = float(jnp.max(jnp.abs(out - ref)))
    # Default (non-HIGHEST) MXU precision rounds GEMM operands to bf16, so
    # allow ~1e-2-scale differences vs the f32 HIGHEST-precision reference.
    assert err < 5e-2, f"mismatch vs reference: max abs err = {err}"

    print("KERNEL_OK")
</pallas_src>

<mosaic_0001>
module attributes {stable_mosaic.version = 11 : i64} {
  func.func @_head_kernel(%arg0: memref<4x18x128xf32, #tpu.memory_space<vmem>>, %arg1: memref<128x128xf32, #tpu.memory_space<vmem>>, %arg2: memref<1x128xf32, #tpu.memory_space<vmem>>, %arg3: memref<18x128xf32, #tpu.memory_space<vmem>>) attributes {dimension_semantics = [], scalar_prefetch = 0 : i64, scratch_operands = 0 : i64, tpu.core_type = #tpu.core_type<tc>} {
    %c0 = arith.constant 0 : index
    %c0_0 = arith.constant 0 : index
    %c0_1 = arith.constant 0 : index
    %0 = vector.load %arg0[%c0, %c0_0, %c0_1] : memref<4x18x128xf32, #tpu.memory_space<vmem>>, vector<1x18x128xf32>
    %1 = vector.shape_cast %0 : vector<1x18x128xf32> to vector<18x128xf32>
    %c0_2 = arith.constant 0 : index
    %c0_3 = arith.constant 0 : index
    %2 = vector.load %arg1[%c0_2, %c0_3] : memref<128x128xf32, #tpu.memory_space<vmem>>, vector<128x128xf32>
    %cst = arith.constant dense<0.000000e+00> : vector<18x128xf32>
    %3 = tpu.matmul %1, %2, %cst {dimension_numbers = #tpu.dot_dimension_numbers<[1], [0], [0], [1], [0, 0, 1, 1], [], []>} : vector<18x128xf32>, vector<128x128xf32>, vector<18x128xf32> -> vector<18x128xf32>
    %c0_4 = arith.constant 0 : index
    %c0_5 = arith.constant 0 : index
    %4 = vector.load %arg2[%c0_4, %c0_5] : memref<1x128xf32, #tpu.memory_space<vmem>>, vector<1x128xf32>
    %5 = vector.broadcast %4 : vector<1x128xf32> to vector<18x128xf32>
    %6 = arith.addf %3, %5 : vector<18x128xf32>
    %cst_6 = arith.constant 0.000000e+00 : f32
    %7 = vector.broadcast %cst_6 : f32 to vector<18x128xf32>
    %8 = arith.maximumf %6, %7 : vector<18x128xf32>
    %c1 = arith.constant 1 : index
    %c0_7 = arith.constant 0 : index
    %c0_8 = arith.constant 0 : index
    %9 = vector.load %arg0[%c1, %c0_7, %c0_8] : memref<4x18x128xf32, #tpu.memory_space<vmem>>, vector<1x18x128xf32>
    %10 = vector.shape_cast %9 : vector<1x18x128xf32> to vector<18x128xf32>
    %c0_9 = arith.constant 0 : index
    %c0_10 = arith.constant 0 : index
    %11 = vector.load %arg1[%c0_9, %c0_10] : memref<128x128xf32, #tpu.memory_space<vmem>>, vector<128x128xf32>
    %cst_11 = arith.constant dense<0.000000e+00> : vector<18x128xf32>
    %12 = tpu.matmul %10, %11, %cst_11 {dimension_numbers = #tpu.dot_dimension_numbers<[1], [0], [0], [1], [0, 0, 1, 1], [], []>} : vector<18x128xf32>, vector<128x128xf32>, vector<18x128xf32> -> vector<18x128xf32>
    %c0_12 = arith.constant 0 : index
    %c0_13 = arith.constant 0 : index
    %13 = vector.load %arg2[%c0_12, %c0_13] : memref<1x128xf32, #tpu.memory_space<vmem>>, vector<1x128xf32>
    %14 = vector.broadcast %13 : vector<1x128xf32> to vector<18x128xf32>
    %15 = arith.addf %12, %14 : vector<18x128xf32>
    %cst_14 = arith.constant 0.000000e+00 : f32
    %16 = vector.broadcast %cst_14 : f32 to vector<18x128xf32>
    %17 = arith.maximumf %15, %16 : vector<18x128xf32>
    %18 = arith.maximumf %8, %17 : vector<18x128xf32>
    %c2 = arith.constant 2 : index
    %c0_15 = arith.constant 0 : index
    %c0_16 = arith.constant 0 : index
    %19 = vector.load %arg0[%c2, %c0_15, %c0_16] : memref<4x18x128xf32, #tpu.memory_space<vmem>>, vector<1x18x128xf32>
    %20 = vector.shape_cast %19 : vector<1x18x128xf32> to vector<18x128xf32>
    %c0_17 = arith.constant 0 : index
    %c0_18 = arith.constant 0 : index
    %21 = vector.load %arg1[%c0_17, %c0_18] : memref<128x128xf32, #tpu.memory_space<vmem>>, vector<128x128xf32>
    %cst_19 = arith.constant dense<0.000000e+00> : vector<18x128xf32>
    %22 = tpu.matmul %20, %21, %cst_19 {dimension_numbers = #tpu.dot_dimension_numbers<[1], [0], [0], [1], [0, 0, 1, 1], [], []>} : vector<18x128xf32>, vector<128x128xf32>, vector<18x128xf32> -> vector<18x128xf32>
    %c0_20 = arith.constant 0 : index
    %c0_21 = arith.constant 0 : index
    %23 = vector.load %arg2[%c0_20, %c0_21] : memref<1x128xf32, #tpu.memory_space<vmem>>, vector<1x128xf32>
    %24 = vector.broadcast %23 : vector<1x128xf32> to vector<18x128xf32>
    %25 = arith.addf %22, %24 : vector<18x128xf32>
    %cst_22 = arith.constant 0.000000e+00 : f32
    %26 = vector.broadcast %cst_22 : f32 to vector<18x128xf32>
    %27 = arith.maximumf %25, %26 : vector<18x128xf32>
    %c3 = arith.constant 3 : index
    %c0_23 = arith.constant 0 : index
    %c0_24 = arith.constant 0 : index
    %28 = vector.load %arg0[%c3, %c0_23, %c0_24] : memref<4x18x128xf32, #tpu.memory_space<vmem>>, vector<1x18x128xf32>
    %29 = vector.shape_cast %28 : vector<1x18x128xf32> to vector<18x128xf32>
    %c0_25 = arith.constant 0 : index
    %c0_26 = arith.constant 0 : index
    %30 = vector.load %arg1[%c0_25, %c0_26] : memref<128x128xf32, #tpu.memory_space<vmem>>, vector<128x128xf32>
    %cst_27 = arith.constant dense<0.000000e+00> : vector<18x128xf32>
    %31 = tpu.matmul %29, %30, %cst_27 {dimension_numbers = #tpu.dot_dimension_numbers<[1], [0], [0], [1], [0, 0, 1, 1], [], []>} : vector<18x128xf32>, vector<128x128xf32>, vector<18x128xf32> -> vector<18x128xf32>
    %c0_28 = arith.constant 0 : index
    %c0_29 = arith.constant 0 : index
    %32 = vector.load %arg2[%c0_28, %c0_29] : memref<1x128xf32, #tpu.memory_space<vmem>>, vector<1x128xf32>
    %33 = vector.broadcast %32 : vector<1x128xf32> to vector<18x128xf32>
    %34 = arith.addf %31, %33 : vector<18x128xf32>
    %cst_30 = arith.constant 0.000000e+00 : f32
    %35 = vector.broadcast %cst_30 : f32 to vector<18x128xf32>
    %36 = arith.maximumf %34, %35 : vector<18x128xf32>
    %37 = arith.maximumf %27, %36 : vector<18x128xf32>
    %38 = arith.maximumf %18, %37 : vector<18x128xf32>
    %c0_31 = arith.constant 0 : index
    %c0_32 = arith.constant 0 : index
    %39 = vector.load %arg3[%c0_31, %c0_32] : memref<18x128xf32, #tpu.memory_space<vmem>>, vector<18x128xf32>
    tpu.vector_store %arg3[%c0_31, %c0_32], %38 {strides = array<i32>} : memref<18x128xf32, #tpu.memory_space<vmem>>, vector<18x128xf32>,
    return
  }
}

module attributes {stable_mosaic.version = 11 : i64} {
  func.func @_tail_kernel(%arg0: memref<8x3200xf32, #tpu.memory_space<vmem>>, %arg1: memref<3200x256xf32, #tpu.memory_space<vmem>>, %arg2: memref<1x256xf32, #tpu.memory_space<vmem>>, %arg3: memref<256x384xf32, #tpu.memory_space<vmem>>, %arg4: memref<1x384xf32, #tpu.memory_space<vmem>>, %arg5: memref<384x384xf32, #tpu.memory_space<vmem>>, %arg6: memref<1x384xf32, #tpu.memory_space<vmem>>, %arg7: memref<384x256xf32, #tpu.memory_space<vmem>>, %arg8: memref<1x256xf32, #tpu.memory_space<vmem>>, %arg9: memref<256x128xf32, #tpu.memory_space<vmem>>, %arg10: memref<1x128xf32, #tpu.memory_space<vmem>>, %arg11: memref<2x128xf32, #tpu.memory_space<vmem>>) attributes {dimension_semantics = [], scalar_prefetch = 0 : i64, scratch_operands = 0 : i64, tpu.core_type = #tpu.core_type<tc>} {
    %c0 = arith.constant 0 : index
    %c0_0 = arith.constant 0 : index
    %0 = vector.load %arg0[%c0, %c0_0] : memref<8x3200xf32, #tpu.memory_space<vmem>>, vector<8x3200xf32>
    %c0_1 = arith.constant 0 : index
    %c0_2 = arith.constant 0 : index
    %1 = vector.load %arg1[%c0_1, %c0_2] : memref<3200x256xf32, #tpu.memory_space<vmem>>, vector<3200x256xf32>
    %cst = arith.constant dense<0.000000e+00> : vector<8x256xf32>
    %2 = tpu.matmul %0, %1, %cst {dimension_numbers = #tpu.dot_dimension_numbers<[1], [0], [0], [1], [0, 0, 1, 1], [], []>} : vector<8x3200xf32>, vector<3200x256xf32>, vector<8x256xf32> -> vector<8x256xf32>
    %c0_3 = arith.constant 0 : index
    %c0_4 = arith.constant 0 : index
    %3 = vector.load %arg2[%c0_3, %c0_4] : memref<1x256xf32, #tpu.memory_space<vmem>>, vector<1x256xf32>
    %4 = vector.broadcast %3 : vector<1x256xf32> to vector<8x256xf32>
    %5 = arith.addf %2, %4 : vector<8x256xf32>
    %cst_5 = arith.constant 0.000000e+00 : f32
    %6 = vector.broadcast %cst_5 : f32 to vector<8x256xf32>
    %7 = arith.maximumf %5, %6 : vector<8x256xf32>
    %8 = vector.extract_strided_slice %7 {offsets = [0, 0], sizes = [2, 256], strides = [1, 1]} : vector<8x256xf32> to vector<2x256xf32>
    %9 = vector.extract_strided_slice %7 {offsets = [2, 0], sizes = [2, 256], strides = [1, 1]} : vector<8x256xf32> to vector<2x256xf32>
    %10 = arith.maximumf %8, %9 : vector<2x256xf32>
    %11 = vector.extract_strided_slice %7 {offsets = [4, 0], sizes = [2, 256], strides = [1, 1]} : vector<8x256xf32> to vector<2x256xf32>
    %12 = vector.extract_strided_slice %7 {offsets = [6, 0], sizes = [2, 256], strides = [1, 1]} : vector<8x256xf32> to vector<2x256xf32>
    %13 = arith.maximumf %11, %12 : vector<2x256xf32>
    %14 = arith.maximumf %10, %13 : vector<2x256xf32>
    %c0_6 = arith.constant 0 : index
    %c0_7 = arith.constant 0 : index
    %15 = vector.load %arg3[%c0_6, %c0_7] : memref<256x384xf32, #tpu.memory_space<vmem>>, vector<256x384xf32>
    %cst_8 = arith.constant dense<0.000000e+00> : vector<2x384xf32>
    %16 = tpu.matmul %14, %15, %cst_8 {dimension_numbers = #tpu.dot_dimension_numbers<[1], [0], [0], [1], [0, 0, 1, 1], [], []>} : vector<2x256xf32>, vector<256x384xf32>, vector<2x384xf32> -> vector<2x384xf32>
    %c0_9 = arith.constant 0 : index
    %c0_10 = arith.constant 0 : index
    %17 = vector.load %arg4[%c0_9, %c0_10] : memref<1x384xf32, #tpu.memory_space<vmem>>, vector<1x384xf32>
    %18 = vector.broadcast %17 : vector<1x384xf32> to vector<2x384xf32>
    %19 = arith.addf %16, %18 : vector<2x384xf32>
    %cst_11 = arith.constant 0.000000e+00 : f32
    %20 = vector.broadcast %cst_11 : f32 to vector<2x384xf32>
    %21 = arith.maximumf %19, %20 : vector<2x384xf32>
    %c0_12 = arith.constant 0 : index
    %c0_13 = arith.constant 0 : index
    %22 = vector.load %arg5[%c0_12, %c0_13] : memref<384x384xf32, #tpu.memory_space<vmem>>, vector<384x384xf32>
    %cst_14 = arith.constant dense<0.000000e+00> : vector<2x384xf32>
    %23 = tpu.matmul %21, %22, %cst_14 {dimension_numbers = #tpu.dot_dimension_numbers<[1], [0], [0], [1], [0, 0, 1, 1], [], []>} : vector<2x384xf32>, vector<384x384xf32>, vector<2x384xf32> -> vector<2x384xf32>
    %c0_15 = arith.constant 0 : index
    %c0_16 = arith.constant 0 : index
    %24 = vector.load %arg6[%c0_15, %c0_16] : memref<1x384xf32, #tpu.memory_space<vmem>>, vector<1x384xf32>
    %25 = vector.broadcast %24 : vector<1x384xf32> to vector<2x384xf32>
    %26 = arith.addf %23, %25 : vector<2x384xf32>
    %cst_17 = arith.constant 0.000000e+00 : f32
    %27 = vector.broadcast %cst_17 : f32 to vector<2x384xf32>
    %28 = arith.maximumf %26, %27 : vector<2x384xf32>
    %c0_18 = arith.constant 0 : index
    %c0_19 = arith.constant 0 : index
    %29 = vector.load %arg7[%c0_18, %c0_19] : memref<384x256xf32, #tpu.memory_space<vmem>>, vector<384x256xf32>
    %cst_20 = arith.constant dense<0.000000e+00> : vector<2x256xf32>
    %30 = tpu.matmul %28, %29, %cst_20 {dimension_numbers = #tpu.dot_dimension_numbers<[1], [0], [0], [1], [0, 0, 1, 1], [], []>} : vector<2x384xf32>, vector<384x256xf32>, vector<2x256xf32> -> vector<2x256xf32>
    %c0_21 = arith.constant 0 : index
    %c0_22 = arith.constant 0 : index
    %31 = vector.load %arg8[%c0_21, %c0_22] : memref<1x256xf32, #tpu.memory_space<vmem>>, vector<1x256xf32>
    %32 = vector.broadcast %31 : vector<1x256xf32> to vector<2x256xf32>
    %33 = arith.addf %30, %32 : vector<2x256xf32>
    %cst_23 = arith.constant 0.000000e+00 : f32
    %34 = vector.broadcast %cst_23 : f32 to vector<2x256xf32>
    %35 = arith.maximumf %33, %34 : vector<2x256xf32>
    %c0_24 = arith.constant 0 : index
    %c0_25 = arith.constant 0 : index
    %36 = vector.load %arg9[%c0_24, %c0_25] : memref<256x128xf32, #tpu.memory_space<vmem>>, vector<256x128xf32>
    %cst_26 = arith.constant dense<0.000000e+00> : vector<2x128xf32>
    %37 = tpu.matmul %35, %36, %cst_26 {dimension_numbers = #tpu.dot_dimension_numbers<[1], [0], [0], [1], [0, 0, 1, 1], [], []>} : vector<2x256xf32>, vector<256x128xf32>, vector<2x128xf32> -> vector<2x128xf32>
    %c0_27 = arith.constant 0 : index
    %c0_28 = arith.constant 0 : index
    %38 = vector.load %arg10[%c0_27, %c0_28] : memref<1x128xf32, #tpu.memory_space<vmem>>, vector<1x128xf32>
    %39 = vector.broadcast %38 : vector<1x128xf32> to vector<2x128xf32>
    %40 = arith.addf %37, %39 : vector<2x128xf32>
    %41 = tpu.iota {dimensions = array<i32: 1>} : vector<2x128xi32>
    %c10_i32 = arith.constant 10 : i32
    %42 = vector.broadcast %c10_i32 : i32 to vector<2x128xi32>
    %43 = arith.cmpi slt, %41, %42 : vector<2x128xi32>
    %cst_29 = arith.constant -1.000000e+30 : f32
    %44 = vector.broadcast %cst_29 : f32 to vector<2x128xf32>
    %45 = arith.select %43, %40, %44 : vector<2x128xi1>, vector<2x128xf32>
    %cst_30 = arith.constant dense<0xFF800000> : vector<2xf32>
    %46 = vector.multi_reduction <maximumf>, %45, %cst_30 [1] : vector<2x128xf32> to vector<2xf32>
    %47 = vector.shape_cast %46 : vector<2xf32> to vector<2x1xf32>
    %48 = vector.broadcast %47 : vector<2x1xf32> to vector<2x128xf32>
    %49 = arith.subf %45, %48 : vector<2x128xf32>
    %50 = math.exp %49 : vector<2x128xf32>
    %cst_31 = arith.constant dense<0.000000e+00> : vector<2xf32>
    %51 = vector.multi_reduction <add>, %50, %cst_31 [1] : vector<2x128xf32> to vector<2xf32>
    %52 = vector.shape_cast %51 : vector<2xf32> to vector<2x1xf32>
    %53 = math.log %52 : vector<2x1xf32>
    %54 = vector.broadcast %53 : vector<2x1xf32> to vector<2x128xf32>
    %55 = arith.subf %49, %54 : vector<2x128xf32>
    %c0_32 = arith.constant 0 : index
    %c0_33 = arith.constant 0 : index
    %56 = vector.load %arg11[%c0_32, %c0_33] : memref<2x128xf32, #tpu.memory_space<vmem>>, vector<2x128xf32>
    tpu.vector_store %arg11[%c0_32, %c0_33], %55 {strides = array<i32>} : memref<2x128xf32, #tpu.memory_space<vmem>>, vector<2x128xf32>,
    return
  }
}

</mosaic_0001>

<llo_original>
// kernel: net_forward.2
$region0: #{net_forward.2}
  #allocation0 [shape = 'u32[]', space=smem, size = 0x4, offset = 0x4, fixed_abs, tag = 'smem constant byte address 0x4 - core index']
  #allocation1 [shape = 'u32[144,128]{1,0:T(1,128)}', space=vmem, size = 0x12000, scoped, tag = 'internal scratch']
  %s0 = inlined_call_operand.vmem [shape: f32[4,18,128], index: 0, kind: input, shape index: {}]
  %s1 = inlined_call_operand.hbm [shape: f32[128,128], index: 1, kind: input, shape index: {}]
  %s2 = inlined_call_operand.hbm [shape: f32[1,128], index: 2, kind: input, shape index: {}]
  %s3 = inlined_call_operand.vmem [shape: f32[18,128], index: 3, kind: output, shape index: {}]
  %s4 = sld [smem:[#allocation0]]
  $region30: #{net_forward.2} parent=0
    _
  %s6 = ssub.s32 1, %s4
  %s7 = scalar_select 0, %s6, %s4
  $region1: #{net_forward.2} parent=0
    #allocation2 [shape = 'u8[65536]{0}', space=vmem, size = 0x10000, scoped, tag = 'input window, operand 1, single buffered']
    #allocation3 [shape = 's32[1]{0}', space=sflag, size = 0x4, scoped, tag = 'scoped memory for net_forward.2']
    #allocation4 [shape = 'u8[512]{0}', space=vmem, size = 0x400, scoped, tag = 'input window, operand 2, single buffered']
    #allocation5 [shape = 's32[1]{0}', space=sflag, size = 0x4, scoped, tag = 'scoped memory for net_forward.2']
    %8 = vsyncpa [#allocation3], 0
    %9 = vsyncpa [#allocation5], 0
    // Predicated region
    $region2: #{net_forward.2} parent=1 // pred_check
      _
    $region3: #{net_forward.2} parent=1 // pred_check_branch
      %11 = sbr.rel (0) target = $region5
    $region4: #{net_forward.2} parent=1 // pred_region
      _
    $region5: #{net_forward.2} parent=1 // pred_fallthru
      _
    // Predicated region
    $region6: #{net_forward.2} parent=1 // pred_check
      _
    $region7: #{net_forward.2} parent=1 // pred_check_branch
      %13 = sbr.rel (0) target = $region9
    $region8: #{net_forward.2} parent=1 // pred_region
      %s15 = ssub.s32 2048, 2048
      %16 = vsyncadd [#allocation3], %s15
      %s17 = sshll.u32 [#allocation2], 4
      %s18 = int_to_ptr.vmem [resolvable:$true] %s17
      %23 = dma.hbm_to_vmem [thread:$0]  %s1, 2048, %s18, [#allocation3], 128, 128, 8
    $region9: #{net_forward.2} parent=1 // pred_fallthru
      _
    // Predicated region
    $region10: #{net_forward.2} parent=1 // pred_check
      _
    $region11: #{net_forward.2} parent=1 // pred_check_branch
      %25 = sbr.rel (0) target = $region13
    $region12: #{net_forward.2} parent=1 // pred_region
      %s27 = ssub.s32 16, 16
      %28 = vsyncadd [#allocation5], %s27
      %s30 = sshll.u32 [#allocation4], 4
      %s31 = int_to_ptr.vmem [resolvable:$true] %s30
      %33 = dma.hbm_to_vmem [thread:$0]  %s2, 16, %s31, [#allocation5]
    $region13: #{net_forward.2} parent=1 // pred_fallthru
      _
    // Predicated region
    $region14: #{net_forward.2} parent=1 // pred_check
      _
    $region15: #{net_forward.2} parent=1 // pred_check_branch
      %35 = sbr.rel (0) target = $region17
    $region16: #{net_forward.2} parent=1 // pred_region
      %36 = dma.done [#allocation3], 2048
    $region17: #{net_forward.2} parent=1 // pred_fallthru
      _
    // Predicated region
    $region18: #{net_forward.2} parent=1 // pred_check
      _
    $region19: #{net_forward.2} parent=1 // pred_check_branch
      %38 = sbr.rel (0) target = $region21
    $region20: #{net_forward.2} parent=1 // pred_region
      %39 = dma.done [#allocation5], 16
    $region21: #{net_forward.2} parent=1 // pred_fallthru
      _
    %v40 = vld [vmem:[%s0] sm:$0xff]
    %v41 = vld [vmem:[%s0 + $0x8] sm:$0xff]
    %v42 = vld [vmem:[%s0 + $0x10] sm:$0x3]
    %v43 = vld [vmem:[#allocation2] sm:$0xff]
    %v44 = vld [vmem:[#allocation2 + $0x8] sm:$0xff]
    %v45 = vld [vmem:[#allocation2 + $0x10] sm:$0xff]
    %v46 = vld [vmem:[#allocation2 + $0x18] sm:$0xff]
    %v47 = vld [vmem:[#allocation2 + $0x20] sm:$0xff]
    %v48 = vld [vmem:[#allocation2 + $0x28] sm:$0xff]
    %v49 = vld [vmem:[#allocation2 + $0x30] sm:$0xff]
    %v50 = vld [vmem:[#allocation2 + $0x38] sm:$0xff]
    %v51 = vld [vmem:[#allocation2 + $0x40] sm:$0xff]
    %v52 = vld [vmem:[#allocation2 + $0x48] sm:$0xff]
    %v53 = vld [vmem:[#allocation2 + $0x50] sm:$0xff]
    %v54 = vld [vmem:[#allocation2 + $0x58] sm:$0xff]
    %v55 = vld [vmem:[#allocation2 + $0x60] sm:$0xff]
    %v56 = vld [vmem:[#allocation2 + $0x68] sm:$0xff]
    %v57 = vld [vmem:[#allocation2 + $0x70] sm:$0xff]
    %v58 = vld [vmem:[#allocation2 + $0x78] sm:$0xff]
    %v59 = vld [vmem:[#allocation4] sm:$0x1]
    %v61 = vlaneseq
    %v62 = vshrl.u32 %v61, 7
    %v63 = vsub.s32 0, %v62
    %v64 = vrot.slane %v59, %v63
    %66 = vmatprep.subr.mxu0 0.0
    %67 = vmatpush1.msra.mxu0 %v58
    %68 = vmatprep.subr.mxu0 0.0
    %69 = vmatpush1.msra.mxu0 %v57
    %70 = vmatprep.subr.mxu0 0.0
    %71 = vmatpush1.msra.mxu0 %v56
    %72 = vmatprep.subr.mxu0 0.0
    %73 = vmatpush1.msra.mxu0 %v55
    %74 = vmatprep.subr.mxu0 0.0
    %75 = vmatpush1.msra.mxu0 %v54
    %76 = vmatprep.subr.mxu0 0.0
    %77 = vmatpush1.msra.mxu0 %v53
    %78 = vmatprep.subr.mxu0 0.0
    %79 = vmatpush1.msra.mxu0 %v52
    %80 = vmatprep.subr.mxu0 0.0
    %81 = vmatpush1.msra.mxu0 %v51
    %82 = vmatprep.subr.mxu0 0.0
    %83 = vmatpush1.msra.mxu0 %v50
    %84 = vmatprep.subr.mxu0 0.0
    %85 = vmatpush1.msra.mxu0 %v49
    %86 = vmatprep.subr.mxu0 0.0
    %87 = vmatpush1.msra.mxu0 %v48
    %88 = vmatprep.subr.mxu0 0.0
    %89 = vmatpush1.msra.mxu0 %v47
    %90 = vmatprep.subr.mxu0 0.0
    %91 = vmatpush1.msra.mxu0 %v46
    %92 = vmatprep.subr.mxu0 0.0
    %93 = vmatpush1.msra.mxu0 %v45
    %94 = vmatprep.subr.mxu0 0.0
    %95 = vmatpush1.msra.mxu0 %v44
    %96 = vmatprep.subr.mxu0 0.0
    %97 = vmatpush1.msra.mxu0 %v43
    %98 = vmatprep.subr.mxu0 0.0
    %99 = vmatpush2.msra.mxu0 0.0
    %100 = vmatprep.subr.mxu0 0.0
    %101 = vmatpush2.msra.mxu0 0.0
    %102 = vmatprep.subr.mxu0 0.0
    %103 = vmatpush2.msra.mxu0 0.0
    %104 = vmatprep.subr.mxu0 0.0
    %105 = vmatpush2.msra.mxu0 0.0
    %106 = vmatprep.subr.mxu0 0.0
    %107 = vmatpush2.msra.mxu0 0.0
    %108 = vmatprep.subr.mxu0 0.0
    %109 = vmatpush2.msra.mxu0 0.0
    %110 = vmatprep.subr.mxu0 0.0
    %111 = vmatpush2.msra.mxu0 0.0
    %112 = vmatprep.subr.mxu0 0.0
    %113 = vmatpush2.msra.mxu0 0.0
    %114 = vmatprep.subr.mxu0 0.0
    %115 = vmatpush2.msra.mxu0 0.0
    %116 = vmatprep.subr.mxu0 0.0
    %117 = vmatpush2.msra.mxu0 0.0
    %118 = vmatprep.subr.mxu0 0.0
    %119 = vmatpush2.msra.mxu0 0.0
    %120 = vmatprep.subr.mxu0 0.0
    %121 = vmatpush2.msra.mxu0 0.0
    %122 = vmatprep.subr.mxu0 0.0
    %123 = vmatpush2.msra.mxu0 0.0
    %124 = vmatprep.subr.mxu0 0.0
    %125 = vmatpush2.msra.mxu0 0.0
    %126 = vmatprep.subr.mxu0 0.0
    %127 = vmatpush2.msra.mxu0 0.0
    %128 = vmatprep.subr.mxu0 0.0
    %129 = vmatpush2.msra.mxu0 0.0
    %130 = vmatprep.mubr.f32.mxu0 0.0
    %131 = vmatmul.mubr.f32.gmra.mxu0 %v40
    %v132 = vpop.f32.mrf.mxu0
    %v133 = vadd.f32 %v64, %v132
    %v134 = vpop.f32.mrf.mxu0
    %135 = vmatprep.mubr.f32.mxu0 0.0
    %136 = vmatmul.mubr.f32.gmra.mxu0 %v41
    %v137 = vpop.f32.mrf.mxu0
    %v138 = vadd.f32 %v64, %v137
    %v139 = vpop.f32.mrf.mxu0
    %140 = vmatprep.mubr.f32.mxu0 0.0
    %141 = vmatmul.mubr.f32.gmra.mxu0 %v42
    %v142 = vpop.f32.mrf.mxu0
    %v143 = vadd.f32 %v64, %v142
    %v144 = vpop.f32.mrf.mxu0
    %145 = vdwg.mxu0
    %v146 = vmax.f32 %v133, 0.0
    %v147 = vmax.f32 %v138, 0.0
    %v148 = vmax.f32 %v143, 0.0
    %s149 = scalar_lea.vmem %s0, 24
    %v150 = vld [vmem:[%s149] sm:$0xff]
    %v151 = vld [vmem:[%s149 + $0x8] sm:$0xff]
    %v152 = vld [vmem:[%s149 + $0x10] sm:$0x3]
    %153 = vmatprep.subr.mxu0 0.0
    %154 = vmatpush1.msra.mxu0 %v58
    %155 = vmatprep.subr.mxu0 0.0
    %156 = vmatpush1.msra.mxu0 %v57
    %157 = vmatprep.subr.mxu0 0.0
    %158 = vmatpush1.msra.mxu0 %v56
    %159 = vmatprep.subr.mxu0 0.0
    %160 = vmatpush1.msra.mxu0 %v55
    %161 = vmatprep.subr.mxu0 0.0
    %162 = vmatpush1.msra.mxu0 %v54
    %163 = vmatprep.subr.mxu0 0.0
    %164 = vmatpush1.msra.mxu0 %v53
    %165 = vmatprep.subr.mxu0 0.0
    %166 = vmatpush1.msra.mxu0 %v52
    %167 = vmatprep.subr.mxu0 0.0
    %168 = vmatpush1.msra.mxu0 %v51
    %169 = vmatprep.subr.mxu0 0.0
    %170 = vmatpush1.msra.mxu0 %v50
    %171 = vmatprep.subr.mxu0 0.0
    %172 = vmatpush1.msra.mxu0 %v49
    %173 = vmatprep.subr.mxu0 0.0
    %174 = vmatpush1.msra.mxu0 %v48
    %175 = vmatprep.subr.mxu0 0.0
    %176 = vmatpush1.msra.mxu0 %v47
    %177 = vmatprep.subr.mxu0 0.0
    %178 = vmatpush1.msra.mxu0 %v46
    %179 = vmatprep.subr.mxu0 0.0
    %180 = vmatpush1.msra.mxu0 %v45
    %181 = vmatprep.subr.mxu0 0.0
    %182 = vmatpush1.msra.mxu0 %v44
    %183 = vmatprep.subr.mxu0 0.0
    %184 = vmatpush1.msra.mxu0 %v43
    %185 = vmatprep.subr.mxu0 0.0
    %186 = vmatpush2.msra.mxu0 0.0
    %187 = vmatprep.subr.mxu0 0.0
    %188 = vmatpush2.msra.mxu0 0.0
    %189 = vmatprep.subr.mxu0 0.0
    %190 = vmatpush2.msra.mxu0 0.0
    %191 = vmatprep.subr.mxu0 0.0
    %192 = vmatpush2.msra.mxu0 0.0
    %193 = vmatprep.subr.mxu0 0.0
    %194 = vmatpush2.msra.mxu0 0.0
    %195 = vmatprep.subr.mxu0 0.0
    %196 = vmatpush2.msra.mxu0 0.0
    %197 = vmatprep.subr.mxu0 0.0
    %198 = vmatpush2.msra.mxu0 0.0
    %199 = vmatprep.subr.mxu0 0.0
    %200 = vmatpush2.msra.mxu0 0.0
    %201 = vmatprep.subr.mxu0 0.0
    %202 = vmatpush2.msra.mxu0 0.0
    %203 = vmatprep.subr.mxu0 0.0
    %204 = vmatpush2.msra.mxu0 0.0
    %205 = vmatprep.subr.mxu0 0.0
    %206 = vmatpush2.msra.mxu0 0.0
    %207 = vmatprep.subr.mxu0 0.0
    %208 = vmatpush2.msra.mxu0 0.0
    %209 = vmatprep.subr.mxu0 0.0
    %210 = vmatpush2.msra.mxu0 0.0
    %211 = vmatprep.subr.mxu0 0.0
    %212 = vmatpush2.msra.mxu0 0.0
    %213 = vmatprep.subr.mxu0 0.0
    %214 = vmatpush2.msra.mxu0 0.0
    %215 = vmatprep.subr.mxu0 0.0
    %216 = vmatpush2.msra.mxu0 0.0
    %217 = vmatprep.mubr.f32.mxu0 0.0
    %218 = vmatmul.mubr.f32.gmra.mxu0 %v150
    %v219 = vpop.f32.mrf.mxu0
    %v220 = vadd.f32 %v64, %v219
    %v221 = vpop.f32.mrf.mxu0
    %222 = vmatprep.mubr.f32.mxu0 0.0
    %223 = vmatmul.mubr.f32.gmra.mxu0 %v151
    %v224 = vpop.f32.mrf.mxu0
    %v225 = vadd.f32 %v64, %v224
    %v226 = vpop.f32.mrf.mxu0
    %227 = vmatprep.mubr.f32.mxu0 0.0
    %228 = vmatmul.mubr.f32.gmra.mxu0 %v152
    %v229 = vpop.f32.mrf.mxu0
    %v230 = vadd.f32 %v64, %v229
    %v231 = vpop.f32.mrf.mxu0
    %232 = vdwg.mxu0
    %v233 = vmax.f32 %v220, 0.0
    %v234 = vmax.f32 %v225, 0.0
    %v235 = vmax.f32 %v230, 0.0
    %v236 = vmax.f32 %v146, %v233
    %v237 = vmax.f32 %v147, %v234
    %v238 = vmax.f32 %v148, %v235
    %s239 = scalar_lea.vmem %s0, 48
    %v240 = vld [vmem:[%s239] sm:$0xff]
    %v241 = vld [vmem:[%s239 + $0x8] sm:$0xff]
    %v242 = vld [vmem:[%s239 + $0x10] sm:$0x3]
    %243 = vmatprep.subr.mxu0 0.0
    %244 = vmatpush1.msra.mxu0 %v58
    %245 = vmatprep.subr.mxu0 0.0
    %246 = vmatpush1.msra.mxu0 %v57
    %247 = vmatprep.subr.mxu0 0.0
    %248 = vmatpush1.msra.mxu0 %v56
    %249 = vmatprep.subr.mxu0 0.0
    %250 = vmatpush1.msra.mxu0 %v55
    %251 = vmatprep.subr.mxu0 0.0
    %252 = vmatpush1.msra.mxu0 %v54
    %253 = vmatprep.subr.mxu0 0.0
    %254 = vmatpush1.msra.mxu0 %v53
    %255 = vmatprep.subr.mxu0 0.0
    %256 = vmatpush1.msra.mxu0 %v52
    %257 = vmatprep.subr.mxu0 0.0
    %258 = vmatpush1.msra.mxu0 %v51
    %259 = vmatprep.subr.mxu0 0.0
    %260 = vmatpush1.msra.mxu0 %v50
    %261 = vmatprep.subr.mxu0 0.0
    %262 = vmatpush1.msra.mxu0 %v49
    %263 = vmatprep.subr.mxu0 0.0
    %264 = vmatpush1.msra.mxu0 %v48
    %265 = vmatprep.subr.mxu0 0.0
    %266 = vmatpush1.msra.mxu0 %v47
    %267 = vmatprep.subr.mxu0 0.0
    %268 = vmatpush1.msra.mxu0 %v46
    %269 = vmatprep.subr.mxu0 0.0
    %270 = vmatpush1.msra.mxu0 %v45
    %271 = vmatprep.subr.mxu0 0.0
    %272 = vmatpush1.msra.mxu0 %v44
    %273 = vmatprep.subr.mxu0 0.0
    %274 = vmatpush1.msra.mxu0 %v43
    %275 = vmatprep.subr.mxu0 0.0
    %276 = vmatpush2.msra.mxu0 0.0
    %277 = vmatprep.subr.mxu0 0.0
    %278 = vmatpush2.msra.mxu0 0.0
    %279 = vmatprep.subr.mxu0 0.0
    %280 = vmatpush2.msra.mxu0 0.0
    %281 = vmatprep.subr.mxu0 0.0
    %282 = vmatpush2.msra.mxu0 0.0
    %283 = vmatprep.subr.mxu0 0.0
    %284 = vmatpush2.msra.mxu0 0.0
    %285 = vmatprep.subr.mxu0 0.0
    %286 = vmatpush2.msra.mxu0 0.0
    %287 = vmatprep.subr.mxu0 0.0
    %288 = vmatpush2.msra.mxu0 0.0
    %289 = vmatprep.subr.mxu0 0.0
    %290 = vmatpush2.msra.mxu0 0.0
    %291 = vmatprep.subr.mxu0 0.0
    %292 = vmatpush2.msra.mxu0 0.0
    %293 = vmatprep.subr.mxu0 0.0
    %294 = vmatpush2.msra.mxu0 0.0
    %295 = vmatprep.subr.mxu0 0.0
    %296 = vmatpush2.msra.mxu0 0.0
    %297 = vmatprep.subr.mxu0 0.0
    %298 = vmatpush2.msra.mxu0 0.0
    %299 = vmatprep.subr.mxu0 0.0
    %300 = vmatpush2.msra.mxu0 0.0
    %301 = vmatprep.subr.mxu0 0.0
    %302 = vmatpush2.msra.mxu0 0.0
    %303 = vmatprep.subr.mxu0 0.0
    %304 = vmatpush2.msra.mxu0 0.0
    %305 = vmatprep.subr.mxu0 0.0
    %306 = vmatpush2.msra.mxu0 0.0
    %307 = vmatprep.mubr.f32.mxu0 0.0
    %308 = vmatmul.mubr.f32.gmra.mxu0 %v240
    %v309 = vpop.f32.mrf.mxu0
    %v310 = vadd.f32 %v64, %v309
    %v311 = vpop.f32.mrf.mxu0
    %312 = vmatprep.mubr.f32.mxu0 0.0
    %313 = vmatmul.mubr.f32.gmra.mxu0 %v241
    %v314 = vpop.f32.mrf.mxu0
    %v315 = vadd.f32 %v64, %v314
    %v316 = vpop.f32.mrf.mxu0
    %317 = vmatprep.mubr.f32.mxu0 0.0
    %318 = vmatmul.mubr.f32.gmra.mxu0 %v242
    %v319 = vpop.f32.mrf.mxu0
    %v320 = vadd.f32 %v64, %v319
    %v321 = vpop.f32.mrf.mxu0
    %322 = vdwg.mxu0
    %v323 = vmax.f32 %v310, 0.0
    %v324 = vmax.f32 %v315, 0.0
    %v325 = vmax.f32 %v320, 0.0
    %s326 = scalar_lea.vmem %s0, 72
    %v327 = vld [vmem:[%s326] sm:$0xff]
    %v328 = vld [vmem:[%s326 + $0x8] sm:$0xff]
    %v329 = vld [vmem:[%s326 + $0x10] sm:$0x3]
    %330 = vmatprep.subr.mxu0 0.0
    %331 = vmatpush1.msra.mxu0 %v58
    %332 = vmatprep.subr.mxu0 0.0
    %333 = vmatpush1.msra.mxu0 %v57
    %334 = vmatprep.subr.mxu0 0.0
    %335 = vmatpush1.msra.mxu0 %v56
    %336 = vmatprep.subr.mxu0 0.0
    %337 = vmatpush1.msra.mxu0 %v55
    %338 = vmatprep.subr.mxu0 0.0
    %339 = vmatpush1.msra.mxu0 %v54
    %340 = vmatprep.subr.mxu0 0.0
    %341 = vmatpush1.msra.mxu0 %v53
    %342 = vmatprep.subr.mxu0 0.0
    %343 = vmatpush1.msra.mxu0 %v52
    %344 = vmatprep.subr.mxu0 0.0
    %345 = vmatpush1.msra.mxu0 %v51
    %346 = vmatprep.subr.mxu0 0.0
    %347 = vmatpush1.msra.mxu0 %v50
    %348 = vmatprep.subr.mxu0 0.0
    %349 = vmatpush1.msra.mxu0 %v49
    %350 = vmatprep.subr.mxu0 0.0
    %351 = vmatpush1.msra.mxu0 %v48
    %352 = vmatprep.subr.mxu0 0.0
    %353 = vmatpush1.msra.mxu0 %v47
    %354 = vmatprep.subr.mxu0 0.0
    %355 = vmatpush1.msra.mxu0 %v46
    %356 = vmatprep.subr.mxu0 0.0
    %357 = vmatpush1.msra.mxu0 %v45
    %358 = vmatprep.subr.mxu0 0.0
    %359 = vmatpush1.msra.mxu0 %v44
    %360 = vmatprep.subr.mxu0 0.0
    %361 = vmatpush1.msra.mxu0 %v43
    %362 = vmatprep.subr.mxu0 0.0
    %363 = vmatpush2.msra.mxu0 0.0
    %364 = vmatprep.subr.mxu0 0.0
    %365 = vmatpush2.msra.mxu0 0.0
    %366 = vmatprep.subr.mxu0 0.0
    %367 = vmatpush2.msra.mxu0 0.0
    %368 = vmatprep.subr.mxu0 0.0
    %369 = vmatpush2.msra.mxu0 0.0
    %370 = vmatprep.subr.mxu0 0.0
    %371 = vmatpush2.msra.mxu0 0.0
    %372 = vmatprep.subr.mxu0 0.0
    %373 = vmatpush2.msra.mxu0 0.0
    %374 = vmatprep.subr.mxu0 0.0
    %375 = vmatpush2.msra.mxu0 0.0
    %376 = vmatprep.subr.mxu0 0.0
    %377 = vmatpush2.msra.mxu0 0.0
    %378 = vmatprep.subr.mxu0 0.0
    %379 = vmatpush2.msra.mxu0 0.0
    %380 = vmatprep.subr.mxu0 0.0
    %381 = vmatpush2.msra.mxu0 0.0
    %382 = vmatprep.subr.mxu0 0.0
    %383 = vmatpush2.msra.mxu0 0.0
    %384 = vmatprep.subr.mxu0 0.0
    %385 = vmatpush2.msra.mxu0 0.0
    %386 = vmatprep.subr.mxu0 0.0
    %387 = vmatpush2.msra.mxu0 0.0
    %388 = vmatprep.subr.mxu0 0.0
    %389 = vmatpush2.msra.mxu0 0.0
    %390 = vmatprep.subr.mxu0 0.0
    %391 = vmatpush2.msra.mxu0 0.0
    %392 = vmatprep.subr.mxu0 0.0
    %393 = vmatpush2.msra.mxu0 0.0
    %394 = vmatprep.mubr.f32.mxu0 0.0
    %395 = vmatmul.mubr.f32.gmra.mxu0 %v327
    %v396 = vpop.f32.mrf.mxu0
    %v397 = vadd.f32 %v64, %v396
    %v398 = vpop.f32.mrf.mxu0
    %399 = vmatprep.mubr.f32.mxu0 0.0
    %400 = vmatmul.mubr.f32.gmra.mxu0 %v328
    %v401 = vpop.f32.mrf.mxu0
    %v402 = vadd.f32 %v64, %v401
    %v403 = vpop.f32.mrf.mxu0
    %404 = vmatprep.mubr.f32.mxu0 0.0
    %405 = vmatmul.mubr.f32.gmra.mxu0 %v329
    %v406 = vpop.f32.mrf.mxu0
    %v407 = vadd.f32 %v64, %v406
    %v408 = vpop.f32.mrf.mxu0
    %409 = vdwg.mxu0
    %v410 = vmax.f32 %v397, 0.0
    %v411 = vmax.f32 %v402, 0.0
    %v412 = vmax.f32 %v407, 0.0
    %v413 = vmax.f32 %v323, %v410
    %v414 = vmax.f32 %v324, %v411
    %v415 = vmax.f32 %v325, %v412
    %v416 = vmax.f32 %v236, %v413
    %v417 = vmax.f32 %v237, %v414
    %v418 = vmax.f32 %v238, %v415
    %419 = vst [vmem:[%s3] sm:$0xff] %v416
    %420 = vst [vmem:[%s3 + $0x8] sm:$0xff] %v417
    %421 = vst [vmem:[%s3 + $0x10] sm:$0x3] %v418
    // Predicated region
    $region22: #{net_forward.2} parent=1 // pred_check
      _
    $region23: #{net_forward.2} parent=1 // pred_check_branch
      %423 = sbr.rel (0) target = $region25
    $region24: #{net_forward.2} parent=1 // pred_region
      _
    $region25: #{net_forward.2} parent=1 // pred_fallthru
      _
    // Predicated region
    $region26: #{net_forward.2} parent=1 // pred_check
      _
    $region27: #{net_forward.2} parent=1 // pred_check_branch
      %425 = sbr.rel (0) target = $region29
    $region28: #{net_forward.2} parent=1 // pred_region
      _
    $region29: #{net_forward.2} parent=1 // pred_fallthru
      _
    %426 = vsyncpa [#allocation3], 1
    %427 = vsyncpa [#allocation5], 1

// kernel: net_forward.3
$region0: #{net_forward.3}
  #allocation0 [shape = 'u32[]', space=smem, size = 0x4, offset = 0x4, fixed_abs, tag = 'smem constant byte address 0x4 - core index']
  #allocation1 [shape = 'u32[144,128]{1,0:T(1,128)}', space=vmem, size = 0x12000, scoped, tag = 'internal scratch']
  %s0 = inlined_call_operand.vmem [shape: f32[8,3200], index: 0, kind: input, shape index: {}]
  %s1 = inlined_call_operand.vmem [shape: f32[3200,256], index: 1, kind: input, shape index: {}]
  %s2 = inlined_call_operand.vmem [shape: f32[1,256], index: 2, kind: input, shape index: {}]
  %s3 = inlined_call_operand.vmem [shape: f32[256,384], index: 3, kind: input, shape index: {}]
  %s4 = inlined_call_operand.vmem [shape: f32[1,384], index: 4, kind: input, shape index: {}]
  %s5 = inlined_call_operand.hbm [shape: f32[384,384], index: 5, kind: input, shape index: {}]
  %s6 = inlined_call_operand.vmem [shape: f32[1,384], index: 6, kind: input, shape index: {}]
  %s7 = inlined_call_operand.hbm [shape: f32[384,256], index: 7, kind: input, shape index: {}]
  %s8 = inlined_call_operand.vmem [shape: f32[1,256], index: 8, kind: input, shape index: {}]
  %s9 = inlined_call_operand.hbm [shape: f32[256,128], index: 9, kind: input, shape index: {}]
  %s10 = inlined_call_operand.vmem [shape: f32[1,128], index: 10, kind: input, shape index: {}]
  %s11 = inlined_call_operand.hbm [shape: f32[2,128], index: 11, kind: output, shape index: {}]
  %s12 = sld [smem:[#allocation0]]
  $region66: #{net_forward.3} parent=0
    _
  %s14 = ssub.s32 1, %s12
  %s15 = scalar_select 0, %s14, %s12
  $region1: #{net_forward.3} parent=0
    #allocation2 [shape = 'u8[589824]{0}', space=vmem, size = 0x90000, scoped, tag = 'input window, operand 5, single buffered']
    #allocation3 [shape = 's32[1]{0}', space=sflag, size = 0x4, scoped, tag = 'scoped memory for net_forward.3']
    #allocation4 [shape = 's32[1]{0}', space=sflag, size = 0x4, scoped, tag = 'scoped memory for net_forward.3']
    #allocation5 [shape = 'u8[393216]{0}', space=vmem, size = 0x60000, scoped, tag = 'input window, operand 7, single buffered']
    #allocation6 [shape = 's32[1]{0}', space=sflag, size = 0x4, scoped, tag = 'scoped memory for net_forward.3']
    #allocation7 [shape = 'u8[131072]{0}', space=vmem, size = 0x20000, scoped, tag = 'input window, operand 9, single buffered']
    #allocation8 [shape = 'u8[1024]{0}', space=vmem, size = 0x400, scoped, tag = 'output window, operand 0, single buffered']
    %16 = vsyncpa [#allocation3], 0
    %17 = vsyncpa [#allocation6], 0
    %18 = vsyncpa [#allocation4], 0
    // Predicated region
    $region2: #{net_forward.3} parent=1 // pred_check
      _
    $region3: #{net_forward.3} parent=1 // pred_check_branch
      %20 = sbr.rel (0) target = $region5
    $region4: #{net_forward.3} parent=1 // pred_region
      _
    $region5: #{net_forward.3} parent=1 // pred_fallthru
      _
    // Predicated region
    $region6: #{net_forward.3} parent=1 // pred_check
      _
    $region7: #{net_forward.3} parent=1 // pred_check_branch
      %22 = sbr.rel (0) target = $region9
    $region8: #{net_forward.3} parent=1 // pred_region
      _
    $region9: #{net_forward.3} parent=1 // pred_fallthru
      _
    // Predicated region
    $region10: #{net_forward.3} parent=1 // pred_check
      _
    $region11: #{net_forward.3} parent=1 // pred_check_branch
      %24 = sbr.rel (0) target = $region13
    $region12: #{net_forward.3} parent=1 // pred_region
      _
    $region13: #{net_forward.3} parent=1 // pred_fallthru
      _
    // Predicated region
    $region14: #{net_forward.3} parent=1 // pred_check
      _
    $region15: #{net_forward.3} parent=1 // pred_check_branch
      %26 = sbr.rel (0) target = $region17
    $region16: #{net_forward.3} parent=1 // pred_region
      _
    $region17: #{net_forward.3} parent=1 // pred_fallthru
      _
    // Predicated region
    $region18: #{net_forward.3} parent=1 // pred_check
      _
    $region19: #{net_forward.3} parent=1 // pred_check_branch
      %28 = sbr.rel (0) target = $region21
    $region20: #{net_forward.3} parent=1 // pred_region
      _
    $region21: #{net_forward.3} parent=1 // pred_fallthru
      _
    // Predicated region
    $region22: #{net_forward.3} parent=1 // pred_check
      _
    $region23: #{net_forward.3} parent=1 // pred_check_branch
      %30 = sbr.rel (0) target = $region25
    $region24: #{net_forward.3} parent=1 // pred_region
      %s32 = ssub.s32 18432, 18432
      %33 = vsyncadd [#allocation3], %s32
      %s34 = sshll.u32 [#allocation2], 4
      %s35 = int_to_ptr.vmem [resolvable:$true] %s34
      %40 = dma.hbm_to_vmem [thread:$0]  %s5, 18432, %s35, [#allocation3], 384, 384, 24
    $region25: #{net_forward.3} parent=1 // pred_fallthru
      _
    // Predicated region
    $region26: #{net_forward.3} parent=1 // pred_check
      _
    $region27: #{net_forward.3} parent=1 // pred_check_branch
      %42 = sbr.rel (0) target = $region29
    $region28: #{net_forward.3} parent=1 // pred_region
      _
    $region29: #{net_forward.3} parent=1 // pred_fallthru
      _
    // Predicated region
    $region30: #{net_forward.3} parent=1 // pred_check
      _
    $region31: #{net_forward.3} parent=1 // pred_check_branch
      %44 = sbr.rel (0) target = $region33
    $region32: #{net_forward.3} parent=1 // pred_region
      %s46 = ssub.s32 12288, 12288
      %47 = vsyncadd [#allocation6], %s46
      %s48 = sshll.u32 [#allocation5], 4
      %s49 = int_to_ptr.vmem [resolvable:$true] %s48
      %54 = dma.hbm_to_vmem [thread:$0]  %s7, 12288, %s49, [#allocation6], 256, 256, 16
    $region33: #{net_forward.3} parent=1 // pred_fallthru
      _
    // Predicated region
    $region34: #{net_forward.3} parent=1 // pred_check
      _
    $region35: #{net_forward.3} parent=1 // pred_check_branch
      %56 = sbr.rel (0) target = $region37
    $region36: #{net_forward.3} parent=1 // pred_region
      _
    $region37: #{net_forward.3} parent=1 // pred_fallthru
      _
    // Predicated region
    $region38: #{net_forward.3} parent=1 // pred_check
      _
    $region39: #{net_forward.3} parent=1 // pred_check_branch
      %58 = sbr.rel (0) target = $region41
    $region40: #{net_forward.3} parent=1 // pred_region
      %s60 = ssub.s32 4096, 4096
      %61 = vsyncadd [#allocation6], %s60
      %s62 = sshll.u32 [#allocation7], 4
      %s63 = int_to_ptr.vmem [resolvable:$true] %s62
      %68 = dma.hbm_to_vmem [thread:$0]  %s9, 4096, %s63, [#allocation6], 128, 128, 8
    $region41: #{net_forward.3} parent=1 // pred_fallthru
      _
    // Predicated region
    $region42: #{net_forward.3} parent=1 // pred_check
      _
    $region43: #{net_forward.3} parent=1 // pred_check_branch
      %70 = sbr.rel (0) target = $region45
    $region44: #{net_forward.3} parent=1 // pred_region
      _
    $region45: #{net_forward.3} parent=1 // pred_fallthru
      _
    // Predicated region
    $region46: #{net_forward.3} parent=1 // pred_check
      _
    $region47: #{net_forward.3} parent=1 // pred_check_branch
      %72 = sbr.rel (0) target = $region49
    $region48: #{net_forward.3} parent=1 // pred_region
      %73 = dma.done [#allocation3], 18432
    $region49: #{net_forward.3} parent=1 // pred_fallthru
      _
    // Predicated region
    $region50: #{net_forward.3} parent=1 // pred_check
      _
    $region51: #{net_forward.3} parent=1 // pred_check_branch
      %75 = sbr.rel (0) target = $region53
    $region52: #{net_forward.3} parent=1 // pred_region
      %76 = dma.done [#allocation6], 12288
    $region53: #{net_forward.3} parent=1 // pred_fallthru
      _
    // Predicated region
    $region54: #{net_forward.3} parent=1 // pred_check
      _
    $region55: #{net_forward.3} parent=1 // pred_check_branch
      %78 = sbr.rel (0) target = $region57
    $region56: #{net_forward.3} parent=1 // pred_region
      %79 = dma.done [#allocation6], 4096
    $region57: #{net_forward.3} parent=1 // pred_fallthru
      _
    %v80 = vld [vmem:[%s0] sm:$0xff]
    %v81 = vld [vmem:[%s0 + $0x8] sm:$0xff]
    %v82 = vld [vmem:[%s0 + $0x10] sm:$0xff]
    %v83 = vld [vmem:[%s0 + $0x18] sm:$0xff]
    %v84 = vld [vmem:[%s0 + $0x20] sm:$0xff]
    %v85 = vld [vmem:[%s0 + $0x28] sm:$0xff]
    %v86 = vld [vmem:[%s0 + $0x30] sm:$0xff]
    %v87 = vld [vmem:[%s0 + $0x38] sm:$0xff]
    %v88 = vld [vmem:[%s0 + $0x40] sm:$0xff]
    %v89 = vld [vmem:[%s0 + $0x48] sm:$0xff]
    %v90 = vld [vmem:[%s0 + $0x50] sm:$0xff]
    %v91 = vld [vmem:[%s0 + $0x58] sm:$0xff]
    %v92 = vld [vmem:[%s0 + $0x60] sm:$0xff]
    %v93 = vld [vmem:[%s0 + $0x68] sm:$0xff]
    %v94 = vld [vmem:[%s0 + $0x70] sm:$0xff]
    %v95 = vld [vmem:[%s0 + $0x78] sm:$0xff]
    %v96 = vld [vmem:[%s0 + $0x80] sm:$0xff]
    %v97 = vld [vmem:[%s0 + $0x88] sm:$0xff]
    %v98 = vld [vmem:[%s0 + $0x90] sm:$0xff]
    %v99 = vld [vmem:[%s0 + $0x98] sm:$0xff]
    %v100 = vld [vmem:[%s0 + $0xa0] sm:$0xff]
    %v101 = vld [vmem:[%s0 + $0xa8] sm:$0xff]
    %v102 = vld [vmem:[%s0 + $0xb0] sm:$0xff]
    %v103 = vld [vmem:[%s0 + $0xb8] sm:$0xff]
    %v104 = vld [vmem:[%s0 + $0xc0] sm:$0xff]
    %v105 = vld [vmem:[%s1] sm:$0xff]
    %v106 = vld [vmem:[%s1 + $0x8] sm:$0xff]
    %v107 = vld [vmem:[%s1 + $0x10] sm:$0xff]
    %v108 = vld [vmem:[%s1 + $0x18] sm:$0xff]
    %v109 = vld [vmem:[%s1 + $0x20] sm:$0xff]
    %v110 = vld [vmem:[%s1 + $0x28] sm:$0xff]
    %v111 = vld [vmem:[%s1 + $0x30] sm:$0xff]
    %v112 = vld [vmem:[%s1 + $0x38] sm:$0xff]
    %v113 = vld [vmem:[%s1 + $0x40] sm:$0xff]
    %v114 = vld [vmem:[%s1 + $0x48] sm:$0xff]
    %v115 = vld [vmem:[%s1 + $0x50] sm:$0xff]
    %v116 = vld [vmem:[%s1 + $0x58] sm:$0xff]
    %v117 = vld [vmem:[%s1 + $0x60] sm:$0xff]
    %v118 = vld [vmem:[%s1 + $0x68] sm:$0xff]
    %v119 = vld [vmem:[%s1 + $0x70] sm:$0xff]
    %v120 = vld [vmem:[%s1 + $0x78] sm:$0xff]
    %v121 = vld [vmem:[%s1 + $0x80] sm:$0xff]
    %v122 = vld [vmem:[%s1 + $0x88] sm:$0xff]
    %v123 = vld [vmem:[%s1 + $0x90] sm:$0xff]
    %v124 = vld [vmem:[%s1 + $0x98] sm:$0xff]
    %v125 = vld [vmem:[%s1 + $0xa0] sm:$0xff]
    %v126 = vld [vmem:[%s1 + $0xa8] sm:$0xff]
    %v127 = vld [vmem:[%s1 + $0xb0] sm:$0xff]
    %v128 = vld [vmem:[%s1 + $0xb8] sm:$0xff]
    %v129 = vld [vmem:[%s1 + $0xc0] sm:$0xff]
    %v130 = vld [vmem:[%s1 + $0xc8] sm:$0xff]
    %v131 = vld [vmem:[%s1 + $0xd0] sm:$0xff]
    %v132 = vld [vmem:[%s1 + $0xd8] sm:$0xff]
    %v133 = vld [vmem:[%s1 + $0xe0] sm:$0xff]
    %v134 = vld [vmem:[%s1 + $0xe8] sm:$0xff]
    %v135 = vld [vmem:[%s1 + $0xf0] sm:$0xff]
    %v136 = vld [vmem:[%s1 + $0xf8] sm:$0xff]
    %v137 = vld [vmem:[%s1 + $0x100] sm:$0xff]
    %v138 = vld [vmem:[%s1 + $0x108] sm:$0xff]
    %v139 = vld [vmem:[%s1 + $0x110] sm:$0xff]
    %v140 = vld [vmem:[%s1 + $0x118] sm:$0xff]
    %v141 = vld [vmem:[%s1 + $0x120] sm:$0xff]
    %v142 = vld [vmem:[%s1 + $0x128] sm:$0xff]
    %v143 = vld [vmem:[%s1 + $0x130] sm:$0xff]
    %v144 = vld [vmem:[%s1 + $0x138] sm:$0xff]
    %v145 = vld [vmem:[%s1 + $0x140] sm:$0xff]
    %v146 = vld [vmem:[%s1 + $0x148] sm:$0xff]
    %v147 = vld [vmem:[%s1 + $0x150] sm:$0xff]
    %v148 = vld [vmem:[%s1 + $0x158] sm:$0xff]
    %v149 = vld [vmem:[%s1 + $0x160] sm:$0xff]
    %v150 = vld [vmem:[%s1 + $0x168] sm:$0xff]
    %v151 = vld [vmem:[%s1 + $0x170] sm:$0xff]
    %v152 = vld [vmem:[%s1 + $0x178] sm:$0xff]
    %v153 = vld [vmem:[%s1 + $0x180] sm:$0xff]
    %v154 = vld [vmem:[%s1 + $0x188] sm:$0xff]
    %v155 = vld [vmem:[%s1 + $0x190] sm:$0xff]
    %v156 = vld [vmem:[%s1 + $0x198] sm:$0xff]
    %v157 = vld [vmem:[%s1 + $0x1a0] sm:$0xff]
    %v158 = vld [vmem:[%s1 + $0x1a8] sm:$0xff]
    %v159 = vld [vmem:[%s1 + $0x1b0] sm:$0xff]
    %v160 = vld [vmem:[%s1 + $0x1b8] sm:$0xff]
    %v161 = vld [vmem:[%s1 + $0x1c0] sm:$0xff]
    %v162 = vld [vmem:[%s1 + $0x1c8] sm:$0xff]
    %v163 = vld [vmem:[%s1 + $0x1d0] sm:$0xff]
    %v164 = vld [vmem:[%s1 + $0x1d8] sm:$0xff]
    %v165 = vld [vmem:[%s1 + $0x1e0] sm:$0xff]
    %v166 = vld [vmem:[%s1 + $0x1e8] sm:$0xff]
    %v167 = vld [vmem:[%s1 + $0x1f0] sm:$0xff]
    %v168 = vld [vmem:[%s1 + $0x1f8] sm:$0xff]
    %v169 = vld [vmem:[%s1 + $0x200] sm:$0xff]
    %v170 = vld [vmem:[%s1 + $0x208] sm:$0xff]
    %v171 = vld [vmem:[%s1 + $0x210] sm:$0xff]
    %v172 = vld [vmem:[%s1 + $0x218] sm:$0xff]
    %v173 = vld [vmem:[%s1 + $0x220] sm:$0xff]
    %v174 = vld [vmem:[%s1 + $0x228] sm:$0xff]
    %v175 = vld [vmem:[%s1 + $0x230] sm:$0xff]
    %v176 = vld [vmem:[%s1 + $0x238] sm:$0xff]
    %v177 = vld [vmem:[%s1 + $0x240] sm:$0xff]
    %v178 = vld [vmem:[%s1 + $0x248] sm:$0xff]
    %v179 = vld [vmem:[%s1 + $0x250] sm:$0xff]
    %v180 = vld [vmem:[%s1 + $0x258] sm:$0xff]
    %v181 = vld [vmem:[%s1 + $0x260] sm:$0xff]
    %v182 = vld [vmem:[%s1 + $0x268] sm:$0xff]
    %v183 = vld [vmem:[%s1 + $0x270] sm:$0xff]
    %v184 = vld [vmem:[%s1 + $0x278] sm:$0xff]
    %v185 = vld [vmem:[%s1 + $0x280] sm:$0xff]
    %v186 = vld [vmem:[%s1 + $0x288] sm:$0xff]
    %v187 = vld [vmem:[%s1 + $0x290] sm:$0xff]
    %v188 = vld [vmem:[%s1 + $0x298] sm:$0xff]
    %v189 = vld [vmem:[%s1 + $0x2a0] sm:$0xff]
    %v190 = vld [vmem:[%s1 + $0x2a8] sm:$0xff]
    %v191 = vld [vmem:[%s1 + $0x2b0] sm:$0xff]
    %v192 = vld [vmem:[%s1 + $0x2b8] sm:$0xff]
    %v193 = vld [vmem:[%s1 + $0x2c0] sm:$0xff]
    %v194 = vld [vmem:[%s1 + $0x2c8] sm:$0xff]
    %v195 = vld [vmem:[%s1 + $0x2d0] sm:$0xff]
    %v196 = vld [vmem:[%s1 + $0x2d8] sm:$0xff]
    %v197 = vld [vmem:[%s1 + $0x2e0] sm:$0xff]
    %v198 = vld [vmem:[%s1 + $0x2e8] sm:$0xff]
    %v199 = vld [vmem:[%s1 + $0x2f0] sm:$0xff]
    %v200 = vld [vmem:[%s1 + $0x2f8] sm:$0xff]
    %v201 = vld [vmem:[%s1 + $0x300] sm:$0xff]
    %v202 = vld [vmem:[%s1 + $0x308] sm:$0xff]
    %v203 = vld [vmem:[%s1 + $0x310] sm:$0xff]
    %v204 = vld [vmem:[%s1 + $0x318] sm:$0xff]
    %v205 = vld [vmem:[%s1 + $0x320] sm:$0xff]
    %v206 = vld [vmem:[%s1 + $0x328] sm:$0xff]
    %v207 = vld [vmem:[%s1 + $0x330] sm:$0xff]
    %v208 = vld [vmem:[%s1 + $0x338] sm:$0xff]
    %v209 = vld [vmem:[%s1 + $0x340] sm:$0xff]
    %v210 = vld [vmem:[%s1 + $0x348] sm:$0xff]
    %v211 = vld [vmem:[%s1 + $0x350] sm:$0xff]
    %v212 = vld [vmem:[%s1 + $0x358] sm:$0xff]
    %v213 = vld [vmem:[%s1 + $0x360] sm:$0xff]
    %v214 = vld [vmem:[%s1 + $0x368] sm:$0xff]
    %v215 = vld [vmem:[%s1 + $0x370] sm:$0xff]
    %v216 = vld [vmem:[%s1 + $0x378] sm:$0xff]
    %v217 = vld [vmem:[%s1 + $0x380] sm:$0xff]
    %v218 = vld [vmem:[%s1 + $0x388] sm:$0xff]
    %v219 = vld [vmem:[%s1 + $0x390] sm:$0xff]
    %v220 = vld [vmem:[%s1 + $0x398] sm:$0xff]
    %v221 = vld [vmem:[%s1 + $0x3a0] sm:$0xff]
    %v222 = vld [vmem:[%s1 + $0x3a8] sm:$0xff]
    %v223 = vld [vmem:[%s1 + $0x3b0] sm:$0xff]
    %v224 = vld [vmem:[%s1 + $0x3b8] sm:$0xff]
    %v225 = vld [vmem:[%s1 + $0x3c0] sm:$0xff]
    %v226 = vld [vmem:[%s1 + $0x3c8] sm:$0xff]
    %v227 = vld [vmem:[%s1 + $0x3d0] sm:$0xff]
    %v228 = vld [vmem:[%s1 + $0x3d8] sm:$0xff]
    %v229 = vld [vmem:[%s1 + $0x3e0] sm:$0xff]
    %v230 = vld [vmem:[%s1 + $0x3e8] sm:$0xff]
    %v231 = vld [vmem:[%s1 + $0x3f0] sm:$0xff]
    %v232 = vld [vmem:[%s1 + $0x3f8] sm:$0xff]
    %v233 = vld [vmem:[%s1 + $0x400] sm:$0xff]
    %v234 = vld [vmem:[%s1 + $0x408] sm:$0xff]
    %v235 = vld [vmem:[%s1 + $0x410] sm:$0xff]
    %v236 = vld [vmem:[%s1 + $0x418] sm:$0xff]
    %v237 = vld [vmem:[%s1 + $0x420] sm:$0xff]
    %v238 = vld [vmem:[%s1 + $0x428] sm:$0xff]
    %v239 = vld [vmem:[%s1 + $0x430] sm:$0xff]
    %v240 = vld [vmem:[%s1 + $0x438] sm:$0xff]
    %v241 = vld [vmem:[%s1 + $0x440] sm:$0xff]
    %v242 = vld [vmem:[%s1 + $0x448] sm:$0xff]
    %v243 = vld [vmem:[%s1 + $0x450] sm:$0xff]
    %v244 = vld [vmem:[%s1 + $0x458] sm:$0xff]
    %v245 = vld [vmem:[%s1 + $0x460] sm:$0xff]
    %v246 = vld [vmem:[%s1 + $0x468] sm:$0xff]
    %v247 = vld [vmem:[%s1 + $0x470] sm:$0xff]
    %v248 = vld [vmem:[%s1 + $0x478] sm:$0xff]
    %v249 = vld [vmem:[%s1 + $0x480] sm:$0xff]
    %v250 = vld [vmem:[%s1 + $0x488] sm:$0xff]
    %v251 = vld [vmem:[%s1 + $0x490] sm:$0xff]
    %v252 = vld [vmem:[%s1 + $0x498] sm:$0xff]
    %v253 = vld [vmem:[%s1 + $0x4a0] sm:$0xff]
    %v254 = vld [vmem:[%s1 + $0x4a8] sm:$0xff]
    %v255 = vld [vmem:[%s1 + $0x4b0] sm:$0xff]
    %v256 = vld [vmem:[%s1 + $0x4b8] sm:$0xff]
    %v257 = vld [vmem:[%s1 + $0x4c0] sm:$0xff]
    %v258 = vld [vmem:[%s1 + $0x4c8] sm:$0xff]
    %v259 = vld [vmem:[%s1 + $0x4d0] sm:$0xff]
    %v260 = vld [vmem:[%s1 + $0x4d8] sm:$0xff]
    %v261 = vld [vmem:[%s1 + $0x4e0] sm:$0xff]
    %v262 = vld [vmem:[%s1 + $0x4e8] sm:$0xff]
    %v263 = vld [vmem:[%s1 + $0x4f0] sm:$0xff]
    %v264 = vld [vmem:[%s1 + $0x4f8] sm:$0xff]
    %v265 = vld [vmem:[%s1 + $0x500] sm:$0xff]
    %v266 = vld [vmem:[%s1 + $0x508] sm:$0xff]
    %v267 = vld [vmem:[%s1 + $0x510] sm:$0xff]
    %v268 = vld [vmem:[%s1 + $0x518] sm:$0xff]
    %v269 = vld [vmem:[%s1 + $0x520] sm:$0xff]
    %v270 = vld [vmem:[%s1 + $0x528] sm:$0xff]
    %v271 = vld [vmem:[%s1 + $0x530] sm:$0xff]
    %v272 = vld [vmem:[%s1 + $0x538] sm:$0xff]
    %v273 = vld [vmem:[%s1 + $0x540] sm:$0xff]
    %v274 = vld [vmem:[%s1 + $0x548] sm:$0xff]
    %v275 = vld [vmem:[%s1 + $0x550] sm:$0xff]
    %v276 = vld [vmem:[%s1 + $0x558] sm:$0xff]
    %v277 = vld [vmem:[%s1 + $0x560] sm:$0xff]
    %v278 = vld [vmem:[%s1 + $0x568] sm:$0xff]
    %v279 = vld [vmem:[%s1 + $0x570] sm:$0xff]
    %v280 = vld [vmem:[%s1 + $0x578] sm:$0xff]
    %v281 = vld [vmem:[%s1 + $0x580] sm:$0xff]
    %v282 = vld [vmem:[%s1 + $0x588] sm:$0xff]
    %v283 = vld [vmem:[%s1 + $0x590] sm:$0xff]
    %v284 = vld [vmem:[%s1 + $0x598] sm:$0xff]
    %v285 = vld [vmem:[%s1 + $0x5a0] sm:$0xff]
    %v286 = vld [vmem:[%s1 + $0x5a8] sm:$0xff]
    %v287 = vld [vmem:[%s1 + $0x5b0] sm:$0xff]
    %v288 = vld [vmem:[%s1 + $0x5b8] sm:$0xff]
    %v289 = vld [vmem:[%s1 + $0x5c0] sm:$0xff]
    %v290 = vld [vmem:[%s1 + $0x5c8] sm:$0xff]
    %v291 = vld [vmem:[%s1 + $0x5d0] sm:$0xff]
    %v292 = vld [vmem:[%s1 + $0x5d8] sm:$0xff]
    %v293 = vld [vmem:[%s1 + $0x5e0] sm:$0xff]
    %v294 = vld [vmem:[%s1 + $0x5e8] sm:$0xff]
    %v295 = vld [vmem:[%s1 + $0x5f0] sm:$0xff]
    %v296 = vld [vmem:[%s1 + $0x5f8] sm:$0xff]
    %v297 = vld [vmem:[%s1 + $0x600] sm:$0xff]
    %v298 = vld [vmem:[%s1 + $0x608] sm:$0xff]
    %v299 = vld [vmem:[%s1 + $0x610] sm:$0xff]
    %v300 = vld [vmem:[%s1 + $0x618] sm:$0xff]
    %v301 = vld [vmem:[%s1 + $0x620] sm:$0xff]
    %v302 = vld [vmem:[%s1 + $0x628] sm:$0xff]
    %v303 = vld [vmem:[%s1 + $0x630] sm:$0xff]
    %v304 = vld [vmem:[%s1 + $0x638] sm:$0xff]
    %v305 = vld [vmem:[%s1 + $0x640] sm:$0xff]
    %v306 = vld [vmem:[%s1 + $0x648] sm:$0xff]
    %v307 = vld [vmem:[%s1 + $0x650] sm:$0xff]
    %v308 = vld [vmem:[%s1 + $0x658] sm:$0xff]
    %v309 = vld [vmem:[%s1 + $0x660] sm:$0xff]
    %v310 = vld [vmem:[%s1 + $0x668] sm:$0xff]
    %v311 = vld [vmem:[%s1 + $0x670] sm:$0xff]
    %v312 = vld [vmem:[%s1 + $0x678] sm:$0xff]
    %v313 = vld [vmem:[%s1 + $0x680] sm:$0xff]
    %v314 = vld [vmem:[%s1 + $0x688] sm:$0xff]
    %v315 = vld [vmem:[%s1 + $0x690] sm:$0xff]
    %v316 = vld [vmem:[%s1 + $0x698] sm:$0xff]
    %v317 = vld [vmem:[%s1 + $0x6a0] sm:$0xff]
    %v318 = vld [vmem:[%s1 + $0x6a8] sm:$0xff]
    %v319 = vld [vmem:[%s1 + $0x6b0] sm:$0xff]
    %v320 = vld [vmem:[%s1 + $0x6b8] sm:$0xff]
    %v321 = vld [vmem:[%s1 + $0x6c0] sm:$0xff]
    %v322 = vld [vmem:[%s1 + $0x6c8] sm:$0xff]
    %v323 = vld [vmem:[%s1 + $0x6d0] sm:$0xff]
    %v324 = vld [vmem:[%s1 + $0x6d8] sm:$0xff]
    %v325 = vld [vmem:[%s1 + $0x6e0] sm:$0xff]
    %v326 = vld [vmem:[%s1 + $0x6e8] sm:$0xff]
    %v327 = vld [vmem:[%s1 + $0x6f0] sm:$0xff]
    %v328 = vld [vmem:[%s1 + $0x6f8] sm:$0xff]
    %v329 = vld [vmem:[%s1 + $0x700] sm:$0xff]
    %v330 = vld [vmem:[%s1 + $0x708] sm:$0xff]
    %v331 = vld [vmem:[%s1 + $0x710] sm:$0xff]
    %v332 = vld [vmem:[%s1 + $0x718] sm:$0xff]
    %v333 = vld [vmem:[%s1 + $0x720] sm:$0xff]
    %v334 = vld [vmem:[%s1 + $0x728] sm:$0xff]
    %v335 = vld [vmem:[%s1 + $0x730] sm:$0xff]
    %v336 = vld [vmem:[%s1 + $0x738] sm:$0xff]
    %v337 = vld [vmem:[%s1 + $0x740] sm:$0xff]
    %v338 = vld [vmem:[%s1 + $0x748] sm:$0xff]
    %v339 = vld [vmem:[%s1 + $0x750] sm:$0xff]
    %v340 = vld [vmem:[%s1 + $0x758] sm:$0xff]
    %v341 = vld [vmem:[%s1 + $0x760] sm:$0xff]
    %v342 = vld [vmem:[%s1 + $0x768] sm:$0xff]
    %v343 = vld [vmem:[%s1 + $0x770] sm:$0xff]
    %v344 = vld [vmem:[%s1 + $0x778] sm:$0xff]
    %v345 = vld [vmem:[%s1 + $0x780] sm:$0xff]
    %v346 = vld [vmem:[%s1 + $0x788] sm:$0xff]
    %v347 = vld [vmem:[%s1 + $0x790] sm:$0xff]
    %v348 = vld [vmem:[%s1 + $0x798] sm:$0xff]
    %v349 = vld [vmem:[%s1 + $0x7a0] sm:$0xff]
    %v350 = vld [vmem:[%s1 + $0x7a8] sm:$0xff]
    %v351 = vld [vmem:[%s1 + $0x7b0] sm:$0xff]
    %v352 = vld [vmem:[%s1 + $0x7b8] sm:$0xff]
    %v353 = vld [vmem:[%s1 + $0x7c0] sm:$0xff]
    %v354 = vld [vmem:[%s1 + $0x7c8] sm:$0xff]
    %v355 = vld [vmem:[%s1 + $0x7d0] sm:$0xff]
    %v356 = vld [vmem:[%s1 + $0x7d8] sm:$0xff]
    %v357 = vld [vmem:[%s1 + $0x7e0] sm:$0xff]
    %v358 = vld [vmem:[%s1 + $0x7e8] sm:$0xff]
    %v359 = vld [vmem:[%s1 + $0x7f0] sm:$0xff]
    %v360 = vld [vmem:[%s1 + $0x7f8] sm:$0xff]
    %v361 = vld [vmem:[%s1 + $0x800] sm:$0xff]
    %v362 = vld [vmem:[%s1 + $0x808] sm:$0xff]
    %v363 = vld [vmem:[%s1 + $0x810] sm:$0xff]
    %v364 = vld [vmem:[%s1 + $0x818] sm:$0xff]
    %v365 = vld [vmem:[%s1 + $0x820] sm:$0xff]
    %v366 = vld [vmem:[%s1 + $0x828] sm:$0xff]
    %v367 = vld [vmem:[%s1 + $0x830] sm:$0xff]
    %v368 = vld [vmem:[%s1 + $0x838] sm:$0xff]
    %v369 = vld [vmem:[%s1 + $0x840] sm:$0xff]
    %v370 = vld [vmem:[%s1 + $0x848] sm:$0xff]
    %v371 = vld [vmem:[%s1 + $0x850] sm:$0xff]
    %v372 = vld [vmem:[%s1 + $0x858] sm:$0xff]
    %v373 = vld [vmem:[%s1 + $0x860] sm:$0xff]
    %v374 = vld [vmem:[%s1 + $0x868] sm:$0xff]
    %v375 = vld [vmem:[%s1 + $0x870] sm:$0xff]
    %v376 = vld [vmem:[%s1 + $0x878] sm:$0xff]
    %v377 = vld [vmem:[%s1 + $0x880] sm:$0xff]
    %v378 = vld [vmem:[%s1 + $0x888] sm:$0xff]
    %v379 = vld [vmem:[%s1 + $0x890] sm:$0xff]
    %v380 = vld [vmem:[%s1 + $0x898] sm:$0xff]
    %v381 = vld [vmem:[%s1 + $0x8a0] sm:$0xff]
    %v382 = vld [vmem:[%s1 + $0x8a8] sm:$0xff]
    %v383 = vld [vmem:[%s1 + $0x8b0] sm:$0xff]
    %v384 = vld [vmem:[%s1 + $0x8b8] sm:$0xff]
    %v385 = vld [vmem:[%s1 + $0x8c0] sm:$0xff]
    %v386 = vld [vmem:[%s1 + $0x8c8] sm:$0xff]
    %v387 = vld [vmem:[%s1 + $0x8d0] sm:$0xff]
    %v388 = vld [vmem:[%s1 + $0x8d8] sm:$0xff]
    %v389 = vld [vmem:[%s1 + $0x8e0] sm:$0xff]
    %v390 = vld [vmem:[%s1 + $0x8e8] sm:$0xff]
    %v391 = vld [vmem:[%s1 + $0x8f0] sm:$0xff]
    %v392 = vld [vmem:[%s1 + $0x8f8] sm:$0xff]
    %v393 = vld [vmem:[%s1 + $0x900] sm:$0xff]
    %v394 = vld [vmem:[%s1 + $0x908] sm:$0xff]
    %v395 = vld [vmem:[%s1 + $0x910] sm:$0xff]
    %v396 = vld [vmem:[%s1 + $0x918] sm:$0xff]
    %v397 = vld [vmem:[%s1 + $0x920] sm:$0xff]
    %v398 = vld [vmem:[%s1 + $0x928] sm:$0xff]
    %v399 = vld [vmem:[%s1 + $0x930] sm:$0xff]
    %v400 = vld [vmem:[%s1 + $0x938] sm:$0xff]
    %v401 = vld [vmem:[%s1 + $0x940] sm:$0xff]
    %v402 = vld [vmem:[%s1 + $0x948] sm:$0xff]
    %v403 = vld [vmem:[%s1 + $0x950] sm:$0xff]
    %v404 = vld [vmem:[%s1 + $0x958] sm:$0xff]
    %v405 = vld [vmem:[%s1 + $0x960] sm:$0xff]
    %v406 = vld [vmem:[%s1 + $0x968] sm:$0xff]
    %v407 = vld [vmem:[%s1 + $0x970] sm:$0xff]
    %v408 = vld [vmem:[%s1 + $0x978] sm:$0xff]
    %v409 = vld [vmem:[%s1 + $0x980] sm:$0xff]
    %v410 = vld [vmem:[%s1 + $0x988] sm:$0xff]
    %v411 = vld [vmem:[%s1 + $0x990] sm:$0xff]
    %v412 = vld [vmem:[%s1 + $0x998] sm:$0xff]
    %v413 = vld [vmem:[%s1 + $0x9a0] sm:$0xff]
    %v414 = vld [vmem:[%s1 + $0x9a8] sm:$0xff]
    %v415 = vld [vmem:[%s1 + $0x9b0] sm:$0xff]
    %v416 = vld [vmem:[%s1 + $0x9b8] sm:$0xff]
    %v417 = vld [vmem:[%s1 + $0x9c0] sm:$0xff]
    %v418 = vld [vmem:[%s1 + $0x9c8] sm:$0xff]
    %v419 = vld [vmem:[%s1 + $0x9d0] sm:$0xff]
    %v420 = vld [vmem:[%s1 + $0x9d8] sm:$0xff]
    %v421 = vld [vmem:[%s1 + $0x9e0] sm:$0xff]
    %v422 = vld [vmem:[%s1 + $0x9e8] sm:$0xff]
    %v423 = vld [vmem:[%s1 + $0x9f0] sm:$0xff]
    %v424 = vld [vmem:[%s1 + $0x9f8] sm:$0xff]
    %v425 = vld [vmem:[%s1 + $0xa00] sm:$0xff]
    %v426 = vld [vmem:[%s1 + $0xa08] sm:$0xff]
    %v427 = vld [vmem:[%s1 + $0xa10] sm:$0xff]
    %v428 = vld [vmem:[%s1 + $0xa18] sm:$0xff]
    %v429 = vld [vmem:[%s1 + $0xa20] sm:$0xff]
    %v430 = vld [vmem:[%s1 + $0xa28] sm:$0xff]
    %v431 = vld [vmem:[%s1 + $0xa30] sm:$0xff]
    %v432 = vld [vmem:[%s1 + $0xa38] sm:$0xff]
    %v433 = vld [vmem:[%s1 + $0xa40] sm:$0xff]
    %v434 = vld [vmem:[%s1 + $0xa48] sm:$0xff]
    %v435 = vld [vmem:[%s1 + $0xa50] sm:$0xff]
    %v436 = vld [vmem:[%s1 + $0xa58] sm:$0xff]
    %v437 = vld [vmem:[%s1 + $0xa60] sm:$0xff]
    %v438 = vld [vmem:[%s1 + $0xa68] sm:$0xff]
    %v439 = vld [vmem:[%s1 + $0xa70] sm:$0xff]
    %v440 = vld [vmem:[%s1 + $0xa78] sm:$0xff]
    %v441 = vld [vmem:[%s1 + $0xa80] sm:$0xff]
    %v442 = vld [vmem:[%s1 + $0xa88] sm:$0xff]
    %v443 = vld [vmem:[%s1 + $0xa90] sm:$0xff]
    %v444 = vld [vmem:[%s1 + $0xa98] sm:$0xff]
    %v445 = vld [vmem:[%s1 + $0xaa0] sm:$0xff]
    %v446 = vld [vmem:[%s1 + $0xaa8] sm:$0xff]
    %v447 = vld [vmem:[%s1 + $0xab0] sm:$0xff]
    %v448 = vld [vmem:[%s1 + $0xab8] sm:$0xff]
    %v449 = vld [vmem:[%s1 + $0xac0] sm:$0xff]
    %v450 = vld [vmem:[%s1 + $0xac8] sm:$0xff]
    %v451 = vld [vmem:[%s1 + $0xad0] sm:$0xff]
    %v452 = vld [vmem:[%s1 + $0xad8] sm:$0xff]
    %v453 = vld [vmem:[%s1 + $0xae0] sm:$0xff]
    %v454 = vld [vmem:[%s1 + $0xae8] sm:$0xff]
    %v455 = vld [vmem:[%s1 + $0xaf0] sm:$0xff]
    %v456 = vld [vmem:[%s1 + $0xaf8] sm:$0xff]
    %v457 = vld [vmem:[%s1 + $0xb00] sm:$0xff]
    %v458 = vld [vmem:[%s1 + $0xb08] sm:$0xff]
    %v459 = vld [vmem:[%s1 + $0xb10] sm:$0xff]
    %v460 = vld [vmem:[%s1 + $0xb18] sm:$0xff]
    %v461 = vld [vmem:[%s1 + $0xb20] sm:$0xff]
    %v462 = vld [vmem:[%s1 + $0xb28] sm:$0xff]
    %v463 = vld [vmem:[%s1 + $0xb30] sm:$0xff]
    %v464 = vld [vmem:[%s1 + $0xb38] sm:$0xff]
    %v465 = vld [vmem:[%s1 + $0xb40] sm:$0xff]
    %v466 = vld [vmem:[%s1 + $0xb48] sm:$0xff]
    %v467 = vld [vmem:[%s1 + $0xb50] sm:$0xff]
    %v468 = vld [vmem:[%s1 + $0xb58] sm:$0xff]
    %v469 = vld [vmem:[%s1 + $0xb60] sm:$0xff]
    %v470 = vld [vmem:[%s1 + $0xb68] sm:$0xff]
    %v471 = vld [vmem:[%s1 + $0xb70] sm:$0xff]
    %v472 = vld [vmem:[%s1 + $0xb78] sm:$0xff]
    %v473 = vld [vmem:[%s1 + $0xb80] sm:$0xff]
    %v474 = vld [vmem:[%s1 + $0xb88] sm:$0xff]
    %v475 = vld [vmem:[%s1 + $0xb90] sm:$0xff]
    %v476 = vld [vmem:[%s1 + $0xb98] sm:$0xff]
    %v477 = vld [vmem:[%s1 + $0xba0] sm:$0xff]
    %v478 = vld [vmem:[%s1 + $0xba8] sm:$0xff]
    %v479 = vld [vmem:[%s1 + $0xbb0] sm:$0xff]
    %v480 = vld [vmem:[%s1 + $0xbb8] sm:$0xff]
    %v481 = vld [vmem:[%s1 + $0xbc0] sm:$0xff]
    %v482 = vld [vmem:[%s1 + $0xbc8] sm:$0xff]
    %v483 = vld [vmem:[%s1 + $0xbd0] sm:$0xff]
    %v484 = vld [vmem:[%s1 + $0xbd8] sm:$0xff]
    %v485 = vld [vmem:[%s1 + $0xbe0] sm:$0xff]
    %v486 = vld [vmem:[%s1 + $0xbe8] sm:$0xff]
    %v487 = vld [vmem:[%s1 + $0xbf0] sm:$0xff]
    %v488 = vld [vmem:[%s1 + $0xbf8] sm:$0xff]
    %v489 = vld [vmem:[%s1 + $0xc00] sm:$0xff]
    %v490 = vld [vmem:[%s1 + $0xc08] sm:$0xff]
    %v491 = vld [vmem:[%s1 + $0xc10] sm:$0xff]
    %v492 = vld [vmem:[%s1 + $0xc18] sm:$0xff]
    %v493 = vld [vmem:[%s1 + $0xc20] sm:$0xff]
    %v494 = vld [vmem:[%s1 + $0xc28] sm:$0xff]
    %v495 = vld [vmem:[%s1 + $0xc30] sm:$0xff]
    %v496 = vld [vmem:[%s1 + $0xc38] sm:$0xff]
    %v497 = vld [vmem:[%s1 + $0xc40] sm:$0xff]
    %v498 = vld [vmem:[%s1 + $0xc48] sm:$0xff]
    %v499 = vld [vmem:[%s1 + $0xc50] sm:$0xff]
    %v500 = vld [vmem:[%s1 + $0xc58] sm:$0xff]
    %v501 = vld [vmem:[%s1 + $0xc60] sm:$0xff]
    %v502 = vld [vmem:[%s1 + $0xc68] sm:$0xff]
    %v503 = vld [vmem:[%s1 + $0xc70] sm:$0xff]
    %v504 = vld [vmem:[%s1 + $0xc78] sm:$0xff]
    %v505 = vld [vmem:[%s1 + $0xc80] sm:$0xff]
    %v506 = vld [vmem:[%s1 + $0xc88] sm:$0xff]
    %v507 = vld [vmem:[%s1 + $0xc90] sm:$0xff]
    %v508 = vld [vmem:[%s1 + $0xc98] sm:$0xff]
    %v509 = vld [vmem:[%s1 + $0xca0] sm:$0xff]
    %v510 = vld [vmem:[%s1 + $0xca8] sm:$0xff]
    %v511 = vld [vmem:[%s1 + $0xcb0] sm:$0xff]
    %v512 = vld [vmem:[%s1 + $0xcb8] sm:$0xff]
    %v513 = vld [vmem:[%s1 + $0xcc0] sm:$0xff]
    %v514 = vld [vmem:[%s1 + $0xcc8] sm:$0xff]
    %v515 = vld [vmem:[%s1 + $0xcd0] sm:$0xff]
    %v516 = vld [vmem:[%s1 + $0xcd8] sm:$0xff]
    %v517 = vld [vmem:[%s1 + $0xce0] sm:$0xff]
    %v518 = vld [vmem:[%s1 + $0xce8] sm:$0xff]
    %v519 = vld [vmem:[%s1 + $0xcf0] sm:$0xff]
    %v520 = vld [vmem:[%s1 + $0xcf8] sm:$0xff]
    %v521 = vld [vmem:[%s1 + $0xd00] sm:$0xff]
    %v522 = vld [vmem:[%s1 + $0xd08] sm:$0xff]
    %v523 = vld [vmem:[%s1 + $0xd10] sm:$0xff]
    %v524 = vld [vmem:[%s1 + $0xd18] sm:$0xff]
    %v525 = vld [vmem:[%s1 + $0xd20] sm:$0xff]
    %v526 = vld [vmem:[%s1 + $0xd28] sm:$0xff]
    %v527 = vld [vmem:[%s1 + $0xd30] sm:$0xff]
    %v528 = vld [vmem:[%s1 + $0xd38] sm:$0xff]
    %v529 = vld [vmem:[%s1 + $0xd40] sm:$0xff]
    %v530 = vld [vmem:[%s1 + $0xd48] sm:$0xff]
    %v531 = vld [vmem:[%s1 + $0xd50] sm:$0xff]
    %v532 = vld [vmem:[%s1 + $0xd58] sm:$0xff]
    %v533 = vld [vmem:[%s1 + $0xd60] sm:$0xff]
    %v534 = vld [vmem:[%s1 + $0xd68] sm:$0xff]
    %v535 = vld [vmem:[%s1 + $0xd70] sm:$0xff]
    %v536 = vld [vmem:[%s1 + $0xd78] sm:$0xff]
    %v537 = vld [vmem:[%s1 + $0xd80] sm:$0xff]
    %v538 = vld [vmem:[%s1 + $0xd88] sm:$0xff]
    %v539 = vld [vmem:[%s1 + $0xd90] sm:$0xff]
    %v540 = vld [vmem:[%s1 + $0xd98] sm:$0xff]
    %v541 = vld [vmem:[%s1 + $0xda0] sm:$0xff]
    %v542 = vld [vmem:[%s1 + $0xda8] sm:$0xff]
    %v543 = vld [vmem:[%s1 + $0xdb0] sm:$0xff]
    %v544 = vld [vmem:[%s1 + $0xdb8] sm:$0xff]
    %v545 = vld [vmem:[%s1 + $0xdc0] sm:$0xff]
    %v546 = vld [vmem:[%s1 + $0xdc8] sm:$0xff]
    %v547 = vld [vmem:[%s1 + $0xdd0] sm:$0xff]
    %v548 = vld [vmem:[%s1 + $0xdd8] sm:$0xff]
    %v549 = vld [vmem:[%s1 + $0xde0] sm:$0xff]
    %v550 = vld [vmem:[%s1 + $0xde8] sm:$0xff]
    %v551 = vld [vmem:[%s1 + $0xdf0] sm:$0xff]
    %v552 = vld [vmem:[%s1 + $0xdf8] sm:$0xff]
    %v553 = vld [vmem:[%s1 + $0xe00] sm:$0xff]
    %v554 = vld [vmem:[%s1 + $0xe08] sm:$0xff]
    %v555 = vld [vmem:[%s1 + $0xe10] sm:$0xff]
    %v556 = vld [vmem:[%s1 + $0xe18] sm:$0xff]
    %v557 = vld [vmem:[%s1 + $0xe20] sm:$0xff]
    %v558 = vld [vmem:[%s1 + $0xe28] sm:$0xff]
    %v559 = vld [vmem:[%s1 + $0xe30] sm:$0xff]
    %v560 = vld [vmem:[%s1 + $0xe38] sm:$0xff]
    %v561 = vld [vmem:[%s1 + $0xe40] sm:$0xff]
    %v562 = vld [vmem:[%s1 + $0xe48] sm:$0xff]
    %v563 = vld [vmem:[%s1 + $0xe50] sm:$0xff]
    %v564 = vld [vmem:[%s1 + $0xe58] sm:$0xff]
    %v565 = vld [vmem:[%s1 + $0xe60] sm:$0xff]
    %v566 = vld [vmem:[%s1 + $0xe68] sm:$0xff]
    %v567 = vld [vmem:[%s1 + $0xe70] sm:$0xff]
    %v568 = vld [vmem:[%s1 + $0xe78] sm:$0xff]
    %v569 = vld [vmem:[%s1 + $0xe80] sm:$0xff]
    %v570 = vld [vmem:[%s1 + $0xe88] sm:$0xff]
    %v571 = vld [vmem:[%s1 + $0xe90] sm:$0xff]
    %v572 = vld [vmem:[%s1 + $0xe98] sm:$0xff]
    %v573 = vld [vmem:[%s1 + $0xea0] sm:$0xff]
    %v574 = vld [vmem:[%s1 + $0xea8] sm:$0xff]
    %v575 = vld [vmem:[%s1 + $0xeb0] sm:$0xff]
    %v576 = vld [vmem:[%s1 + $0xeb8] sm:$0xff]
    %v577 = vld [vmem:[%s1 + $0xec0] sm:$0xff]
    %v578 = vld [vmem:[%s1 + $0xec8] sm:$0xff]
    %v579 = vld [vmem:[%s1 + $0xed0] sm:$0xff]
    %v580 = vld [vmem:[%s1 + $0xed8] sm:$0xff]
    %v581 = vld [vmem:[%s1 + $0xee0] sm:$0xff]
    %v582 = vld [vmem:[%s1 + $0xee8] sm:$0xff]
    %v583 = vld [vmem:[%s1 + $0xef0] sm:$0xff]
    %v584 = vld [vmem:[%s1 + $0xef8] sm:$0xff]
    %v585 = vld [vmem:[%s1 + $0xf00] sm:$0xff]
    %v586 = vld [vmem:[%s1 + $0xf08] sm:$0xff]
    %v587 = vld [vmem:[%s1 + $0xf10] sm:$0xff]
    %v588 = vld [vmem:[%s1 + $0xf18] sm:$0xff]
    %v589 = vld [vmem:[%s1 + $0xf20] sm:$0xff]
    %v590 = vld [vmem:[%s1 + $0xf28] sm:$0xff]
    %v591 = vld [vmem:[%s1 + $0xf30] sm:$0xff]
    %v592 = vld [vmem:[%s1 + $0xf38] sm:$0xff]
    %v593 = vld [vmem:[%s1 + $0xf40] sm:$0xff]
    %v594 = vld [vmem:[%s1 + $0xf48] sm:$0xff]
    %v595 = vld [vmem:[%s1 + $0xf50] sm:$0xff]
    %v596 = vld [vmem:[%s1 + $0xf58] sm:$0xff]
    %v597 = vld [vmem:[%s1 + $0xf60] sm:$0xff]
    %v598 = vld [vmem:[%s1 + $0xf68] sm:$0xff]
    %v599 = vld [vmem:[%s1 + $0xf70] sm:$0xff]
    %v600 = vld [vmem:[%s1 + $0xf78] sm:$0xff]
    %v601 = vld [vmem:[%s1 + $0xf80] sm:$0xff]
    %v602 = vld [vmem:[%s1 + $0xf88] sm:$0xff]
    %v603 = vld [vmem:[%s1 + $0xf90] sm:$0xff]
    %v604 = vld [vmem:[%s1 + $0xf98] sm:$0xff]
    %v605 = vld [vmem:[%s1 + $0xfa0] sm:$0xff]
    %v606 = vld [vmem:[%s1 + $0xfa8] sm:$0xff]
    %v607 = vld [vmem:[%s1 + $0xfb0] sm:$0xff]
    %v608 = vld [vmem:[%s1 + $0xfb8] sm:$0xff]
    %v609 = vld [vmem:[%s1 + $0xfc0] sm:$0xff]
    %v610 = vld [vmem:[%s1 + $0xfc8] sm:$0xff]
    %v611 = vld [vmem:[%s1 + $0xfd0] sm:$0xff]
    %v612 = vld [vmem:[%s1 + $0xfd8] sm:$0xff]
    %v613 = vld [vmem:[%s1 + $0xfe0] sm:$0xff]
    %v614 = vld [vmem:[%s1 + $0xfe8] sm:$0xff]
    %v615 = vld [vmem:[%s1 + $0xff0] sm:$0xff]
    %v616 = vld [vmem:[%s1 + $0xff8] sm:$0xff]
    %v617 = vld [vmem:[%s1 + $0x1000] sm:$0xff]
    %v618 = vld [vmem:[%s1 + $0x1008] sm:$0xff]
    %v619 = vld [vmem:[%s1 + $0x1010] sm:$0xff]
    %v620 = vld [vmem:[%s1 + $0x1018] sm:$0xff]
    %v621 = vld [vmem:[%s1 + $0x1020] sm:$0xff]
    %v622 = vld [vmem:[%s1 + $0x1028] sm:$0xff]
    %v623 = vld [vmem:[%s1 + $0x1030] sm:$0xff]
    %v624 = vld [vmem:[%s1 + $0x1038] sm:$0xff]
    %v625 = vld [vmem:[%s1 + $0x1040] sm:$0xff]
    %v626 = vld [vmem:[%s1 + $0x1048] sm:$0xff]
    %v627 = vld [vmem:[%s1 + $0x1050] sm:$0xff]
    %v628 = vld [vmem:[%s1 + $0x1058] sm:$0xff]
    %v629 = vld [vmem:[%s1 + $0x1060] sm:$0xff]
    %v630 = vld [vmem:[%s1 + $0x1068] sm:$0xff]
    %v631 = vld [vmem:[%s1 + $0x1070] sm:$0xff]
    %v632 = vld [vmem:[%s1 + $0x1078] sm:$0xff]
    %v633 = vld [vmem:[%s1 + $0x1080] sm:$0xff]
    %v634 = vld [vmem:[%s1 + $0x1088] sm:$0xff]
    %v635 = vld [vmem:[%s1 + $0x1090] sm:$0xff]
    %v636 = vld [vmem:[%s1 + $0x1098] sm:$0xff]
    %v637 = vld [vmem:[%s1 + $0x10a0] sm:$0xff]
    %v638 = vld [vmem:[%s1 + $0x10a8] sm:$0xff]
    %v639 = vld [vmem:[%s1 + $0x10b0] sm:$0xff]
    %v640 = vld [vmem:[%s1 + $0x10b8] sm:$0xff]
    %v641 = vld [vmem:[%s1 + $0x10c0] sm:$0xff]
    %v642 = vld [vmem:[%s1 + $0x10c8] sm:$0xff]
    %v643 = vld [vmem:[%s1 + $0x10d0] sm:$0xff]
    %v644 = vld [vmem:[%s1 + $0x10d8] sm:$0xff]
    %v645 = vld [vmem:[%s1 + $0x10e0] sm:$0xff]
    %v646 = vld [vmem:[%s1 + $0x10e8] sm:$0xff]
    %v647 = vld [vmem:[%s1 + $0x10f0] sm:$0xff]
    %v648 = vld [vmem:[%s1 + $0x10f8] sm:$0xff]
    %v649 = vld [vmem:[%s1 + $0x1100] sm:$0xff]
    %v650 = vld [vmem:[%s1 + $0x1108] sm:$0xff]
    %v651 = vld [vmem:[%s1 + $0x1110] sm:$0xff]
    %v652 = vld [vmem:[%s1 + $0x1118] sm:$0xff]
    %v653 = vld [vmem:[%s1 + $0x1120] sm:$0xff]
    %v654 = vld [vmem:[%s1 + $0x1128] sm:$0xff]
    %v655 = vld [vmem:[%s1 + $0x1130] sm:$0xff]
    %v656 = vld [vmem:[%s1 + $0x1138] sm:$0xff]
    %v657 = vld [vmem:[%s1 + $0x1140] sm:$0xff]
    %v658 = vld [vmem:[%s1 + $0x1148] sm:$0xff]
    %v659 = vld [vmem:[%s1 + $0x1150] sm:$0xff]
    %v660 = vld [vmem:[%s1 + $0x1158] sm:$0xff]
    %v661 = vld [vmem:[%s1 + $0x1160] sm:$0xff]
    %v662 = vld [vmem:[%s1 + $0x1168] sm:$0xff]
    %v663 = vld [vmem:[%s1 + $0x1170] sm:$0xff]
    %v664 = vld [vmem:[%s1 + $0x1178] sm:$0xff]
    %v665 = vld [vmem:[%s1 + $0x1180] sm:$0xff]
    %v666 = vld [vmem:[%s1 + $0x1188] sm:$0xff]
    %v667 = vld [vmem:[%s1 + $0x1190] sm:$0xff]
    %v668 = vld [vmem:[%s1 + $0x1198] sm:$0xff]
    %v669 = vld [vmem:[%s1 + $0x11a0] sm:$0xff]
    %v670 = vld [vmem:[%s1 + $0x11a8] sm:$0xff]
    %v671 = vld [vmem:[%s1 + $0x11b0] sm:$0xff]
    %v672 = vld [vmem:[%s1 + $0x11b8] sm:$0xff]
    %v673 = vld [vmem:[%s1 + $0x11c0] sm:$0xff]
    %v674 = vld [vmem:[%s1 + $0x11c8] sm:$0xff]
    %v675 = vld [vmem:[%s1 + $0x11d0] sm:$0xff]
    %v676 = vld [vmem:[%s1 + $0x11d8] sm:$0xff]
    %v677 = vld [vmem:[%s1 + $0x11e0] sm:$0xff]
    %v678 = vld [vmem:[%s1 + $0x11e8] sm:$0xff]
    %v679 = vld [vmem:[%s1 + $0x11f0] sm:$0xff]
    %v680 = vld [vmem:[%s1 + $0x11f8] sm:$0xff]
    %v681 = vld [vmem:[%s1 + $0x1200] sm:$0xff]
    %v682 = vld [vmem:[%s1 + $0x1208] sm:$0xff]
    %v683 = vld [vmem:[%s1 + $0x1210] sm:$0xff]
    %v684 = vld [vmem:[%s1 + $0x1218] sm:$0xff]
    %v685 = vld [vmem:[%s1 + $0x1220] sm:$0xff]
    %v686 = vld [vmem:[%s1 + $0x1228] sm:$0xff]
    %v687 = vld [vmem:[%s1 + $0x1230] sm:$0xff]
    %v688 = vld [vmem:[%s1 + $0x1238] sm:$0xff]
    %v689 = vld [vmem:[%s1 + $0x1240] sm:$0xff]
    %v690 = vld [vmem:[%s1 + $0x1248] sm:$0xff]
    %v691 = vld [vmem:[%s1 + $0x1250] sm:$0xff]
    %v692 = vld [vmem:[%s1 + $0x1258] sm:$0xff]
    %v693 = vld [vmem:[%s1 + $0x1260] sm:$0xff]
    %v694 = vld [vmem:[%s1 + $0x1268] sm:$0xff]
    %v695 = vld [vmem:[%s1 + $0x1270] sm:$0xff]
    %v696 = vld [vmem:[%s1 + $0x1278] sm:$0xff]
    %v697 = vld [vmem:[%s1 + $0x1280] sm:$0xff]
    %v698 = vld [vmem:[%s1 + $0x1288] sm:$0xff]
    %v699 = vld [vmem:[%s1 + $0x1290] sm:$0xff]
    %v700 = vld [vmem:[%s1 + $0x1298] sm:$0xff]
    %v701 = vld [vmem:[%s1 + $0x12a0] sm:$0xff]
    %v702 = vld [vmem:[%s1 + $0x12a8] sm:$0xff]
    %v703 = vld [vmem:[%s1 + $0x12b0] sm:$0xff]
    %v704 = vld [vmem:[%s1 + $0x12b8] sm:$0xff]
    %v705 = vld [vmem:[%s1 + $0x12c0] sm:$0xff]
    %v706 = vld [vmem:[%s1 + $0x12c8] sm:$0xff]
    %v707 = vld [vmem:[%s1 + $0x12d0] sm:$0xff]
    %v708 = vld [vmem:[%s1 + $0x12d8] sm:$0xff]
    %v709 = vld [vmem:[%s1 + $0x12e0] sm:$0xff]
    %v710 = vld [vmem:[%s1 + $0x12e8] sm:$0xff]
    %v711 = vld [vmem:[%s1 + $0x12f0] sm:$0xff]
    %v712 = vld [vmem:[%s1 + $0x12f8] sm:$0xff]
    %v713 = vld [vmem:[%s1 + $0x1300] sm:$0xff]
    %v714 = vld [vmem:[%s1 + $0x1308] sm:$0xff]
    %v715 = vld [vmem:[%s1 + $0x1310] sm:$0xff]
    %v716 = vld [vmem:[%s1 + $0x1318] sm:$0xff]
    %v717 = vld [vmem:[%s1 + $0x1320] sm:$0xff]
    %v718 = vld [vmem:[%s1 + $0x1328] sm:$0xff]
    %v719 = vld [vmem:[%s1 + $0x1330] sm:$0xff]
    %v720 = vld [vmem:[%s1 + $0x1338] sm:$0xff]
    %v721 = vld [vmem:[%s1 + $0x1340] sm:$0xff]
    %v722 = vld [vmem:[%s1 + $0x1348] sm:$0xff]
    %v723 = vld [vmem:[%s1 + $0x1350] sm:$0xff]
    %v724 = vld [vmem:[%s1 + $0x1358] sm:$0xff]
    %v725 = vld [vmem:[%s1 + $0x1360] sm:$0xff]
    %v726 = vld [vmem:[%s1 + $0x1368] sm:$0xff]
    %v727 = vld [vmem:[%s1 + $0x1370] sm:$0xff]
    %v728 = vld [vmem:[%s1 + $0x1378] sm:$0xff]
    %v729 = vld [vmem:[%s1 + $0x1380] sm:$0xff]
    %v730 = vld [vmem:[%s1 + $0x1388] sm:$0xff]
    %v731 = vld [vmem:[%s1 + $0x1390] sm:$0xff]
    %v732 = vld [vmem:[%s1 + $0x1398] sm:$0xff]
    %v733 = vld [vmem:[%s1 + $0x13a0] sm:$0xff]
    %v734 = vld [vmem:[%s1 + $0x13a8] sm:$0xff]
    %v735 = vld [vmem:[%s1 + $0x13b0] sm:$0xff]
    %v736 = vld [vmem:[%s1 + $0x13b8] sm:$0xff]
    %v737 = vld [vmem:[%s1 + $0x13c0] sm:$0xff]
    %v738 = vld [vmem:[%s1 + $0x13c8] sm:$0xff]
    %v739 = vld [vmem:[%s1 + $0x13d0] sm:$0xff]
    %v740 = vld [vmem:[%s1 + $0x13d8] sm:$0xff]
    %v741 = vld [vmem:[%s1 + $0x13e0] sm:$0xff]
    %v742 = vld [vmem:[%s1 + $0x13e8] sm:$0xff]
    %v743 = vld [vmem:[%s1 + $0x13f0] sm:$0xff]
    %v744 = vld [vmem:[%s1 + $0x13f8] sm:$0xff]
    %v745 = vld [vmem:[%s1 + $0x1400] sm:$0xff]
    %v746 = vld [vmem:[%s1 + $0x1408] sm:$0xff]
    %v747 = vld [vmem:[%s1 + $0x1410] sm:$0xff]
    %v748 = vld [vmem:[%s1 + $0x1418] sm:$0xff]
    %v749 = vld [vmem:[%s1 + $0x1420] sm:$0xff]
    %v750 = vld [vmem:[%s1 + $0x1428] sm:$0xff]
    %v751 = vld [vmem:[%s1 + $0x1430] sm:$0xff]
    %v752 = vld [vmem:[%s1 + $0x1438] sm:$0xff]
    %v753 = vld [vmem:[%s1 + $0x1440] sm:$0xff]
    %v754 = vld [vmem:[%s1 + $0x1448] sm:$0xff]
    %v755 = vld [vmem:[%s1 + $0x1450] sm:$0xff]
    %v756 = vld [vmem:[%s1 + $0x1458] sm:$0xff]
    %v757 = vld [vmem:[%s1 + $0x1460] sm:$0xff]
    %v758 = vld [vmem:[%s1 + $0x1468] sm:$0xff]
    %v759 = vld [vmem:[%s1 + $0x1470] sm:$0xff]
    %v760 = vld [vmem:[%s1 + $0x1478] sm:$0xff]
    %v761 = vld [vmem:[%s1 + $0x1480] sm:$0xff]
    %v762 = vld [vmem:[%s1 + $0x1488] sm:$0xff]
    %v763 = vld [vmem:[%s1 + $0x1490] sm:$0xff]
    %v764 = vld [vmem:[%s1 + $0x1498] sm:$0xff]
    %v765 = vld [vmem:[%s1 + $0x14a0] sm:$0xff]
    %v766 = vld [vmem:[%s1 + $0x14a8] sm:$0xff]
    %v767 = vld [vmem:[%s1 + $0x14b0] sm:$0xff]
    %v768 = vld [vmem:[%s1 + $0x14b8] sm:$0xff]
    %v769 = vld [vmem:[%s1 + $0x14c0] sm:$0xff]
    %v770 = vld [vmem:[%s1 + $0x14c8] sm:$0xff]
    %v771 = vld [vmem:[%s1 + $0x14d0] sm:$0xff]
    %v772 = vld [vmem:[%s1 + $0x14d8] sm:$0xff]
    %v773 = vld [vmem:[%s1 + $0x14e0] sm:$0xff]
    %v774 = vld [vmem:[%s1 + $0x14e8] sm:$0xff]
    %v775 = vld [vmem:[%s1 + $0x14f0] sm:$0xff]
    %v776 = vld [vmem:[%s1 + $0x14f8] sm:$0xff]
    %v777 = vld [vmem:[%s1 + $0x1500] sm:$0xff]
    %v778 = vld [vmem:[%s1 + $0x1508] sm:$0xff]
    %v779 = vld [vmem:[%s1 + $0x1510] sm:$0xff]
    %v780 = vld [vmem:[%s1 + $0x1518] sm:$0xff]
    %v781 = vld [vmem:[%s1 + $0x1520] sm:$0xff]
    %v782 = vld [vmem:[%s1 + $0x1528] sm:$0xff]
    %v783 = vld [vmem:[%s1 + $0x1530] sm:$0xff]
    %v784 = vld [vmem:[%s1 + $0x1538] sm:$0xff]
    %v785 = vld [vmem:[%s1 + $0x1540] sm:$0xff]
    %v786 = vld [vmem:[%s1 + $0x1548] sm:$0xff]
    %v787 = vld [vmem:[%s1 + $0x1550] sm:$0xff]
    %v788 = vld [vmem:[%s1 + $0x1558] sm:$0xff]
    %v789 = vld [vmem:[%s1 + $0x1560] sm:$0xff]
    %v790 = vld [vmem:[%s1 + $0x1568] sm:$0xff]
    %v791 = vld [vmem:[%s1 + $0x1570] sm:$0xff]
    %v792 = vld [vmem:[%s1 + $0x1578] sm:$0xff]
    %v793 = vld [vmem:[%s1 + $0x1580] sm:$0xff]
    %v794 = vld [vmem:[%s1 + $0x1588] sm:$0xff]
    %v795 = vld [vmem:[%s1 + $0x1590] sm:$0xff]
    %v796 = vld [vmem:[%s1 + $0x1598] sm:$0xff]
    %v797 = vld [vmem:[%s1 + $0x15a0] sm:$0xff]
    %v798 = vld [vmem:[%s1 + $0x15a8] sm:$0xff]
    %v799 = vld [vmem:[%s1 + $0x15b0] sm:$0xff]
    %v800 = vld [vmem:[%s1 + $0x15b8] sm:$0xff]
    %v801 = vld [vmem:[%s1 + $0x15c0] sm:$0xff]
    %v802 = vld [vmem:[%s1 + $0x15c8] sm:$0xff]
    %v803 = vld [vmem:[%s1 + $0x15d0] sm:$0xff]
    %v804 = vld [vmem:[%s1 + $0x15d8] sm:$0xff]
    %v805 = vld [vmem:[%s1 + $0x15e0] sm:$0xff]
    %v806 = vld [vmem:[%s1 + $0x15e8] sm:$0xff]
    %v807 = vld [vmem:[%s1 + $0x15f0] sm:$0xff]
    %v808 = vld [vmem:[%s1 + $0x15f8] sm:$0xff]
    %v809 = vld [vmem:[%s1 + $0x1600] sm:$0xff]
    %v810 = vld [vmem:[%s1 + $0x1608] sm:$0xff]
    %v811 = vld [vmem:[%s1 + $0x1610] sm:$0xff]
    %v812 = vld [vmem:[%s1 + $0x1618] sm:$0xff]
    %v813 = vld [vmem:[%s1 + $0x1620] sm:$0xff]
    %v814 = vld [vmem:[%s1 + $0x1628] sm:$0xff]
    %v815 = vld [vmem:[%s1 + $0x1630] sm:$0xff]
    %v816 = vld [vmem:[%s1 + $0x1638] sm:$0xff]
    %v817 = vld [vmem:[%s1 + $0x1640] sm:$0xff]
    %v818 = vld [vmem:[%s1 + $0x1648] sm:$0xff]
    %v819 = vld [vmem:[%s1 + $0x1650] sm:$0xff]
    %v820 = vld [vmem:[%s1 + $0x1658] sm:$0xff]
    %v821 = vld [vmem:[%s1 + $0x1660] sm:$0xff]
    %v822 = vld [vmem:[%s1 + $0x1668] sm:$0xff]
    %v823 = vld [vmem:[%s1 + $0x1670] sm:$0xff]
    %v824 = vld [vmem:[%s1 + $0x1678] sm:$0xff]
    %v825 = vld [vmem:[%s1 + $0x1680] sm:$0xff]
    %v826 = vld [vmem:[%s1 + $0x1688] sm:$0xff]
    %v827 = vld [vmem:[%s1 + $0x1690] sm:$0xff]
    %v828 = vld [vmem:[%s1 + $0x1698] sm:$0xff]
    %v829 = vld [vmem:[%s1 + $0x16a0] sm:$0xff]
    %v830 = vld [vmem:[%s1 + $0x16a8] sm:$0xff]
    %v831 = vld [vmem:[%s1 + $0x16b0] sm:$0xff]
    %v832 = vld [vmem:[%s1 + $0x16b8] sm:$0xff]
    %v833 = vld [vmem:[%s1 + $0x16c0] sm:$0xff]
    %v834 = vld [vmem:[%s1 + $0x16c8] sm:$0xff]
    %v835 = vld [vmem:[%s1 + $0x16d0] sm:$0xff]
    %v836 = vld [vmem:[%s1 + $0x16d8] sm:$0xff]
    %v837 = vld [vmem:[%s1 + $0x16e0] sm:$0xff]
    %v838 = vld [vmem:[%s1 + $0x16e8] sm:$0xff]
    %v839 = vld [vmem:[%s1 + $0x16f0] sm:$0xff]
    %v840 = vld [vmem:[%s1 + $0x16f8] sm:$0xff]
    %v841 = vld [vmem:[%s1 + $0x1700] sm:$0xff]
    %v842 = vld [vmem:[%s1 + $0x1708] sm:$0xff]
    %v843 = vld [vmem:[%s1 + $0x1710] sm:$0xff]
    %v844 = vld [vmem:[%s1 + $0x1718] sm:$0xff]
    %v845 = vld [vmem:[%s1 + $0x1720] sm:$0xff]
    %v846 = vld [vmem:[%s1 + $0x1728] sm:$0xff]
    %v847 = vld [vmem:[%s1 + $0x1730] sm:$0xff]
    %v848 = vld [vmem:[%s1 + $0x1738] sm:$0xff]
    %v849 = vld [vmem:[%s1 + $0x1740] sm:$0xff]
    %v850 = vld [vmem:[%s1 + $0x1748] sm:$0xff]
    %v851 = vld [vmem:[%s1 + $0x1750] sm:$0xff]
    %v852 = vld [vmem:[%s1 + $0x1758] sm:$0xff]
    %v853 = vld [vmem:[%s1 + $0x1760] sm:$0xff]
    %v854 = vld [vmem:[%s1 + $0x1768] sm:$0xff]
    %v855 = vld [vmem:[%s1 + $0x1770] sm:$0xff]
    %v856 = vld [vmem:[%s1 + $0x1778] sm:$0xff]
    %v857 = vld [vmem:[%s1 + $0x1780] sm:$0xff]
    %v858 = vld [vmem:[%s1 + $0x1788] sm:$0xff]
    %v859 = vld [vmem:[%s1 + $0x1790] sm:$0xff]
    %v860 = vld [vmem:[%s1 + $0x1798] sm:$0xff]
    %v861 = vld [vmem:[%s1 + $0x17a0] sm:$0xff]
    %v862 = vld [vmem:[%s1 + $0x17a8] sm:$0xff]
    %v863 = vld [vmem:[%s1 + $0x17b0] sm:$0xff]
    %v864 = vld [vmem:[%s1 + $0x17b8] sm:$0xff]
    %v865 = vld [vmem:[%s1 + $0x17c0] sm:$0xff]
    %v866 = vld [vmem:[%s1 + $0x17c8] sm:$0xff]
    %v867 = vld [vmem:[%s1 + $0x17d0] sm:$0xff]
    %v868 = vld [vmem:[%s1 + $0x17d8] sm:$0xff]
    %v869 = vld [vmem:[%s1 + $0x17e0] sm:$0xff]
    %v870 = vld [vmem:[%s1 + $0x17e8] sm:$0xff]
    %v871 = vld [vmem:[%s1 + $0x17f0] sm:$0xff]
    %v872 = vld [vmem:[%s1 + $0x17f8] sm:$0xff]
    %v873 = vld [vmem:[%s1 + $0x1800] sm:$0xff]
    %v874 = vld [vmem:[%s1 + $0x1808] sm:$0xff]
    %v875 = vld [vmem:[%s1 + $0x1810] sm:$0xff]
    %v876 = vld [vmem:[%s1 + $0x1818] sm:$0xff]
    %v877 = vld [vmem:[%s1 + $0x1820] sm:$0xff]
    %v878 = vld [vmem:[%s1 + $0x1828] sm:$0xff]
    %v879 = vld [vmem:[%s1 + $0x1830] sm:$0xff]
    %v880 = vld [vmem:[%s1 + $0x1838] sm:$0xff]
    %v881 = vld [vmem:[%s1 + $0x1840] sm:$0xff]
    %v882 = vld [vmem:[%s1 + $0x1848] sm:$0xff]
    %v883 = vld [vmem:[%s1 + $0x1850] sm:$0xff]
    %v884 = vld [vmem:[%s1 + $0x1858] sm:$0xff]
    %v885 = vld [vmem:[%s1 + $0x1860] sm:$0xff]
    %v886 = vld [vmem:[%s1 + $0x1868] sm:$0xff]
    %v887 = vld [vmem:[%s1 + $0x1870] sm:$0xff]
    %v888 = vld [vmem:[%s1 + $0x1878] sm:$0xff]
    %v889 = vld [vmem:[%s1 + $0x1880] sm:$0xff]
    %v890 = vld [vmem:[%s1 + $0x1888] sm:$0xff]
    %v891 = vld [vmem:[%s1 + $0x1890] sm:$0xff]
    %v892 = vld [vmem:[%s1 + $0x1898] sm:$0xff]
    %v893 = vld [vmem:[%s1 + $0x18a0] sm:$0xff]
    %v894 = vld [vmem:[%s1 + $0x18a8] sm:$0xff]
    %v895 = vld [vmem:[%s1 + $0x18b0] sm:$0xff]
    %v896 = vld [vmem:[%s1 + $0x18b8] sm:$0xff]
    %v897 = vld [vmem:[%s1 + $0x18c0] sm:$0xff]
    %v898 = vld [vmem:[%s1 + $0x18c8] sm:$0xff]
    %v899 = vld [vmem:[%s1 + $0x18d0] sm:$0xff]
    %v900 = vld [vmem:[%s1 + $0x18d8] sm:$0xff]
    %v901 = vld [vmem:[%s1 + $0x18e0] sm:$0xff]
    %v902 = vld [vmem:[%s1 + $0x18e8] sm:$0xff]
    %v903 = vld [vmem:[%s1 + $0x18f0] sm:$0xff]
    %v904 = vld [vmem:[%s1 + $0x18f8] sm:$0xff]
    %v905 = vld [vmem:[%s2] sm:$0x3]
    %v907 = vlaneseq
    %v908 = vshrl.u32 %v907, 7
    %v909 = vsub.s32 0, %v908
    %v910 = vrot.slane %v905, %v909
    %v911 = vlaneseq
    %v912 = vshrl.u32 %v911, 7
    %v913 = vsub.s32 1, %v912
    %v914 = vrot.slane %v905, %v913
    %917 = vmatprep.subr.mxu0 %v136
    %918 = vmatpush1.msra.mxu0 %v135
    %919 = vmatprep.subr.mxu0 %v134
    %920 = vmatpush1.msra.mxu0 %v133
    %921 = vmatprep.subr.mxu0 %v132
    %922 = vmatpush1.msra.mxu0 %v131
    %923 = vmatprep.subr.mxu0 %v130
    %924 = vmatpush1.msra.mxu0 %v129
    %925 = vmatprep.subr.mxu0 %v128
    %926 = vmatpush1.msra.mxu0 %v127
    %927 = vmatprep.subr.mxu0 %v126
    %928 = vmatpush1.msra.mxu0 %v125
    %929 = vmatprep.subr.mxu0 %v124
    %930 = vmatpush1.msra.mxu0 %v123
    %931 = vmatprep.subr.mxu0 %v122
    %932 = vmatpush1.msra.mxu0 %v121
    %933 = vmatprep.subr.mxu0 %v120
    %934 = vmatpush1.msra.mxu0 %v119
    %935 = vmatprep.subr.mxu0 %v118
    %936 = vmatpush1.msra.mxu0 %v117
    %937 = vmatprep.subr.mxu0 %v116
    %938 = vmatpush1.msra.mxu0 %v115
    %939 = vmatprep.subr.mxu0 %v114
    %940 = vmatpush1.msra.mxu0 %v113
    %941 = vmatprep.subr.mxu0 %v112
    %942 = vmatpush1.msra.mxu0 %v111
    %943 = vmatprep.subr.mxu0 %v110
    %944 = vmatpush1.msra.mxu0 %v109
    %945 = vmatprep.subr.mxu0 %v108
    %946 = vmatpush1.msra.mxu0 %v107
    %947 = vmatprep.subr.mxu0 %v106
    %948 = vmatpush1.msra.mxu0 %v105
    %949 = vmatprep.subr.mxu0 %v168
    %950 = vmatpush2.msra.mxu0 %v167
    %951 = vmatprep.subr.mxu0 %v166
    %952 = vmatpush2.msra.mxu0 %v165
    %953 = vmatprep.subr.mxu0 %v164
    %954 = vmatpush2.msra.mxu0 %v163
    %955 = vmatprep.subr.mxu0 %v162
    %956 = vmatpush2.msra.mxu0 %v161
    %957 = vmatprep.subr.mxu0 %v160
    %958 = vmatpush2.msra.mxu0 %v159
    %959 = vmatprep.subr.mxu0 %v158
    %960 = vmatpush2.msra.mxu0 %v157
    %961 = vmatprep.subr.mxu0 %v156
    %962 = vmatpush2.msra.mxu0 %v155
    %963 = vmatprep.subr.mxu0 %v154
    %964 = vmatpush2.msra.mxu0 %v153
    %965 = vmatprep.subr.mxu0 %v152
    %966 = vmatpush2.msra.mxu0 %v151
    %967 = vmatprep.subr.mxu0 %v150
    %968 = vmatpush2.msra.mxu0 %v149
    %969 = vmatprep.subr.mxu0 %v148
    %970 = vmatpush2.msra.mxu0 %v147
    %971 = vmatprep.subr.mxu0 %v146
    %972 = vmatpush2.msra.mxu0 %v145
    %973 = vmatprep.subr.mxu0 %v144
    %974 = vmatpush2.msra.mxu0 %v143
    %975 = vmatprep.subr.mxu0 %v142
    %976 = vmatpush2.msra.mxu0 %v141
    %977 = vmatprep.subr.mxu0 %v140
    %978 = vmatpush2.msra.mxu0 %v139
    %979 = vmatprep.subr.mxu0 %v138
    %980 = vmatpush2.msra.mxu0 %v137
    %981 = vmatprep.mubr.f32.mxu0 %v81
    %982 = vmatmul.mubr.f32.gmra.mxu0 %v80
    %v983 = vpop.f32.mrf.mxu0
    %v984 = vadd.f32 %v910, %v983
    %v985 = vpop.f32.mrf.mxu0
    %v986 = vadd.f32 %v914, %v985
    %987 = vdwg.mxu0
    %988 = vmatprep.subr.mxu0 %v200
    %989 = vmatpush1.msra.mxu0 %v199
    %990 = vmatprep.subr.mxu0 %v198
    %991 = vmatpush1.msra.mxu0 %v197
    %992 = vmatprep.subr.mxu0 %v196
    %993 = vmatpush1.msra.mxu0 %v195
    %994 = vmatprep.subr.mxu0 %v194
    %995 = vmatpush1.msra.mxu0 %v193
    %996 = vmatprep.subr.mxu0 %v192
    %997 = vmatpush1.msra.mxu0 %v191
    %998 = vmatprep.subr.mxu0 %v190
    %999 = vmatpush1.msra.mxu0 %v189
    %1000 = vmatprep.subr.mxu0 %v188
    %1001 = vmatpush1.msra.mxu0 %v187
    %1002 = vmatprep.subr.mxu0 %v186
    %1003 = vmatpush1.msra.mxu0 %v185
    %1004 = vmatprep.subr.mxu0 %v184
    %1005 = vmatpush1.msra.mxu0 %v183
    %1006 = vmatprep.subr.mxu0 %v182
    %1007 = vmatpush1.msra.mxu0 %v181
    %1008 = vmatprep.subr.mxu0 %v180
    %1009 = vmatpush1.msra.mxu0 %v179
    %1010 = vmatprep.subr.mxu0 %v178
    %1011 = vmatpush1.msra.mxu0 %v177
    %1012 = vmatprep.subr.mxu0 %v176
    %1013 = vmatpush1.msra.mxu0 %v175
    %1014 = vmatprep.subr.mxu0 %v174
    %1015 = vmatpush1.msra.mxu0 %v173
    %1016 = vmatprep.subr.mxu0 %v172
    %1017 = vmatpush1.msra.mxu0 %v171
    %1018 = vmatprep.subr.mxu0 %v170
    %1019 = vmatpush1.msra.mxu0 %v169
    %1020 = vmatprep.subr.mxu0 %v232
    %1021 = vmatpush2.msra.mxu0 %v231
    %1022 = vmatprep.subr.mxu0 %v230
    %1023 = vmatpush2.msra.mxu0 %v229
    %1024 = vmatprep.subr.mxu0 %v228
    %1025 = vmatpush2.msra.mxu0 %v227
    %1026 = vmatprep.subr.mxu0 %v226
    %1027 = vmatpush2.msra.mxu0 %v225
    %1028 = vmatprep.subr.mxu0 %v224
    %1029 = vmatpush2.msra.mxu0 %v223
    %1030 = vmatprep.subr.mxu0 %v222
    %1031 = vmatpush2.msra.mxu0 %v221
    %1032 = vmatprep.subr.mxu0 %v220
    %1033 = vmatpush2.msra.mxu0 %v219
    %1034 = vmatprep.subr.mxu0 %v218
    %1035 = vmatpush2.msra.mxu0 %v217
    %1036 = vmatprep.subr.mxu0 %v216
    %1037 = vmatpush2.msra.mxu0 %v215
    %1038 = vmatprep.subr.mxu0 %v214
    %1039 = vmatpush2.msra.mxu0 %v213
    %1040 = vmatprep.subr.mxu0 %v212
    %1041 = vmatpush2.msra.mxu0 %v211
    %1042 = vmatprep.subr.mxu0 %v210
    %1043 = vmatpush2.msra.mxu0 %v209
    %1044 = vmatprep.subr.mxu0 %v208
    %1045 = vmatpush2.msra.mxu0 %v207
    %1046 = vmatprep.subr.mxu0 %v206
    %1047 = vmatpush2.msra.mxu0 %v205
    %1048 = vmatprep.subr.mxu0 %v204
    %1049 = vmatpush2.msra.mxu0 %v203
    %1050 = vmatprep.subr.mxu0 %v202
    %1051 = vmatpush2.msra.mxu0 %v201
    %1052 = vmatprep.mubr.f32.mxu0 %v83
    %1053 = vmatmul.mubr.f32.gmra.mxu0 %v82
    %v1054 = vpop.f32.mrf.mxu0
    %v1055 = vadd.f32 %v984, %v1054
    %v1056 = vpop.f32.mrf.mxu0
    %v1057 = vadd.f32 %v986, %v1056
    %1058 = vdwg.mxu0
    %1059 = vmatprep.subr.mxu0 %v264
    %1060 = vmatpush1.msra.mxu0 %v263
    %1061 = vmatprep.subr.mxu0 %v262
    %1062 = vmatpush1.msra.mxu0 %v261
    %1063 = vmatprep.subr.mxu0 %v260
    %1064 = vmatpush1.msra.mxu0 %v259
    %1065 = vmatprep.subr.mxu0 %v258
    %1066 = vmatpush1.msra.mxu0 %v257
    %1067 = vmatprep.subr.mxu0 %v256
    %1068 = vmatpush1.msra.mxu0 %v255
    %1069 = vmatprep.subr.mxu0 %v254
    %1070 = vmatpush1.msra.mxu0 %v253
    %1071 = vmatprep.subr.mxu0 %v252
    %1072 = vmatpush1.msra.mxu0 %v251
    %1073 = vmatprep.subr.mxu0 %v250
    %1074 = vmatpush1.msra.mxu0 %v249
    %1075 = vmatprep.subr.mxu0 %v248
    %1076 = vmatpush1.msra.mxu0 %v247
    %1077 = vmatprep.subr.mxu0 %v246
    %1078 = vmatpush1.msra.mxu0 %v245
    %1079 = vmatprep.subr.mxu0 %v244
    %1080 = vmatpush1.msra.mxu0 %v243
    %1081 = vmatprep.subr.mxu0 %v242
    %1082 = vmatpush1.msra.mxu0 %v241
    %1083 = vmatprep.subr.mxu0 %v240
    %1084 = vmatpush1.msra.mxu0 %v239
    %1085 = vmatprep.subr.mxu0 %v238
    %1086 = vmatpush1.msra.mxu0 %v237
    %1087 = vmatprep.subr.mxu0 %v236
    %1088 = vmatpush1.msra.mxu0 %v235
    %1089 = vmatprep.subr.mxu0 %v234
    %1090 = vmatpush1.msra.mxu0 %v233
    %1091 = vmatprep.subr.mxu0 %v296
    %1092 = vmatpush2.msra.mxu0 %v295
    %1093 = vmatprep.subr.mxu0 %v294
    %1094 = vmatpush2.msra.mxu0 %v293
    %1095 = vmatprep.subr.mxu0 %v292
    %1096 = vmatpush2.msra.mxu0 %v291
    %1097 = vmatprep.subr.mxu0 %v290
    %1098 = vmatpush2.msra.mxu0 %v289
    %1099 = vmatprep.subr.mxu0 %v288
    %1100 = vmatpush2.msra.mxu0 %v287
    %1101 = vmatprep.subr.mxu0 %v286
    %1102 = vmatpush2.msra.mxu0 %v285
    %1103 = vmatprep.subr.mxu0 %v284
    %1104 = vmatpush2.msra.mxu0 %v283
    %1105 = vmatprep.subr.mxu0 %v282
    %1106 = vmatpush2.msra.mxu0 %v281
    %1107 = vmatprep.subr.mxu0 %v280
    %1108 = vmatpush2.msra.mxu0 %v279
    %1109 = vmatprep.subr.mxu0 %v278
    %1110 = vmatpush2.msra.mxu0 %v277
    %1111 = vmatprep.subr.mxu0 %v276
    %1112 = vmatpush2.msra.mxu0 %v275
    %1113 = vmatprep.subr.mxu0 %v274
    %1114 = vmatpush2.msra.mxu0 %v273
    %1115 = vmatprep.subr.mxu0 %v272
    %1116 = vmatpush2.msra.mxu0 %v271
    %1117 = vmatprep.subr.mxu0 %v270
    %1118 = vmatpush2.msra.mxu0 %v269
    %1119 = vmatprep.subr.mxu0 %v268
    %1120 = vmatpush2.msra.mxu0 %v267
    %1121 = vmatprep.subr.mxu0 %v266
    %1122 = vmatpush2.msra.mxu0 %v265
    %1123 = vmatprep.mubr.f32.mxu0 %v85
    %1124 = vmatmul.mubr.f32.gmra.mxu0 %v84
    %v1125 = vpop.f32.mrf.mxu0
    %v1126 = vadd.f32 %v1055, %v1125
    %v1127 = vpop.f32.mrf.mxu0
    %v1128 = vadd.f32 %v1057, %v1127
    %1129 = vdwg.mxu0
    %1130 = vmatprep.subr.mxu0 %v328
    %1131 = vmatpush1.msra.mxu0 %v327
    %1132 = vmatprep.subr.mxu0 %v326
    %1133 = vmatpush1.msra.mxu0 %v325
    %1134 = vmatprep.subr.mxu0 %v324
    %1135 = vmatpush1.msra.mxu0 %v323
    %1136 = vmatprep.subr.mxu0 %v322
    %1137 = vmatpush1.msra.mxu0 %v321
    %1138 = vmatprep.subr.mxu0 %v320
    %1139 = vmatpush1.msra.mxu0 %v319
    %1140 = vmatprep.subr.mxu0 %v318
    %1141 = vmatpush1.msra.mxu0 %v317
    %1142 = vmatprep.subr.mxu0 %v316
    %1143 = vmatpush1.msra.mxu0 %v315
    %1144 = vmatprep.subr.mxu0 %v314
    %1145 = vmatpush1.msra.mxu0 %v313
    %1146 = vmatprep.subr.mxu0 %v312
    %1147 = vmatpush1.msra.mxu0 %v311
    %1148 = vmatprep.subr.mxu0 %v310
    %1149 = vmatpush1.msra.mxu0 %v309
    %1150 = vmatprep.subr.mxu0 %v308
    %1151 = vmatpush1.msra.mxu0 %v307
    %1152 = vmatprep.subr.mxu0 %v306
    %1153 = vmatpush1.msra.mxu0 %v305
    %1154 = vmatprep.subr.mxu0 %v304
    %1155 = vmatpush1.msra.mxu0 %v303
    %1156 = vmatprep.subr.mxu0 %v302
    %1157 = vmatpush1.msra.mxu0 %v301
    %1158 = vmatprep.subr.mxu0 %v300
    %1159 = vmatpush1.msra.mxu0 %v299
    %1160 = vmatprep.subr.mxu0 %v298
    %1161 = vmatpush1.msra.mxu0 %v297
    %1162 = vmatprep.subr.mxu0 %v360
    %1163 = vmatpush2.msra.mxu0 %v359
    %1164 = vmatprep.subr.mxu0 %v358
    %1165 = vmatpush2.msra.mxu0 %v357
    %1166 = vmatprep.subr.mxu0 %v356
    %1167 = vmatpush2.msra.mxu0 %v355
    %1168 = vmatprep.subr.mxu0 %v354
    %1169 = vmatpush2.msra.mxu0 %v353
    %1170 = vmatprep.subr.mxu0 %v352
    %1171 = vmatpush2.msra.mxu0 %v351
    %1172 = vmatprep.subr.mxu0 %v350
    %1173 = vmatpush2.msra.mxu0 %v349
    %1174 = vmatprep.subr.mxu0 %v348
    %1175 = vmatpush2.msra.mxu0 %v347
    %1176 = vmatprep.subr.mxu0 %v346
    %1177 = vmatpush2.msra.mxu0 %v345
    %1178 = vmatprep.subr.mxu0 %v344
    %1179 = vmatpush2.msra.mxu0 %v343
    %1180 = vmatprep.subr.mxu0 %v342
    %1181 = vmatpush2.msra.mxu0 %v341
    %1182 = vmatprep.subr.mxu0 %v340
    %1183 = vmatpush2.msra.mxu0 %v339
    %1184 = vmatprep.subr.mxu0 %v338
    %1185 = vmatpush2.msra.mxu0 %v337
    %1186 = vmatprep.subr.mxu0 %v336
    %1187 = vmatpush2.msra.mxu0 %v335
    %1188 = vmatprep.subr.mxu0 %v334
    %1189 = vmatpush2.msra.mxu0 %v333
    %1190 = vmatprep.subr.mxu0 %v332
    %1191 = vmatpush2.msra.mxu0 %v331
    %1192 = vmatprep.subr.mxu0 %v330
    %1193 = vmatpush2.msra.mxu0 %v329
    %1194 = vmatprep.mubr.f32.mxu0 %v87
    %1195 = vmatmul.mubr.f32.gmra.mxu0 %v86
    %v1196 = vpop.f32.mrf.mxu0
    %v1197 = vadd.f32 %v1126, %v1196
    %v1198 = vpop.f32.mrf.mxu0
    %v1199 = vadd.f32 %v1128, %v1198
    %1200 = vdwg.mxu0
    %1201 = vmatprep.subr.mxu0 %v392
    %1202 = vmatpush1.msra.mxu0 %v391
    %1203 = vmatprep.subr.mxu0 %v390
    %1204 = vmatpush1.msra.mxu0 %v389
    %1205 = vmatprep.subr.mxu0 %v388
    %1206 = vmatpush1.msra.mxu0 %v387
    %1207 = vmatprep.subr.mxu0 %v386
    %1208 = vmatpush1.msra.mxu0 %v385
    %1209 = vmatprep.subr.mxu0 %v384
    %1210 = vmatpush1.msra.mxu0 %v383
    %1211 = vmatprep.subr.mxu0 %v382
    %1212 = vmatpush1.msra.mxu0 %v381
    %1213 = vmatprep.subr.mxu0 %v380
    %1214 = vmatpush1.msra.mxu0 %v379
    %1215 = vmatprep.subr.mxu0 %v378
    %1216 = vmatpush1.msra.mxu0 %v377
    %1217 = vmatprep.subr.mxu0 %v376
    %1218 = vmatpush1.msra.mxu0 %v375
    %1219 = vmatprep.subr.mxu0 %v374
    %1220 = vmatpush1.msra.mxu0 %v373
    %1221 = vmatprep.subr.mxu0 %v372
    %1222 = vmatpush1.msra.mxu0 %v371
    %1223 = vmatprep.subr.mxu0 %v370
    %1224 = vmatpush1.msra.mxu0 %v369
    %1225 = vmatprep.subr.mxu0 %v368
    %1226 = vmatpush1.msra.mxu0 %v367
    %1227 = vmatprep.subr.mxu0 %v366
    %1228 = vmatpush1.msra.mxu0 %v365
    %1229 = vmatprep.subr.mxu0 %v364
    %1230 = vmatpush1.msra.mxu0 %v363
    %1231 = vmatprep.subr.mxu0 %v362
    %1232 = vmatpush1.msra.mxu0 %v361
    %1233 = vmatprep.subr.mxu0 %v424
    %1234 = vmatpush2.msra.mxu0 %v423
    %1235 = vmatprep.subr.mxu0 %v422
    %1236 = vmatpush2.msra.mxu0 %v421
    %1237 = vmatprep.subr.mxu0 %v420
    %1238 = vmatpush2.msra.mxu0 %v419
    %1239 = vmatprep.subr.mxu0 %v418
    %1240 = vmatpush2.msra.mxu0 %v417
    %1241 = vmatprep.subr.mxu0 %v416
    %1242 = vmatpush2.msra.mxu0 %v415
    %1243 = vmatprep.subr.mxu0 %v414
    %1244 = vmatpush2.msra.mxu0 %v413
    %1245 = vmatprep.subr.mxu0 %v412
    %1246 = vmatpush2.msra.mxu0 %v411
    %1247 = vmatprep.subr.mxu0 %v410
    %1248 = vmatpush2.msra.mxu0 %v409
    %1249 = vmatprep.subr.mxu0 %v408
    %1250 = vmatpush2.msra.mxu0 %v407
    %1251 = vmatprep.subr.mxu0 %v406
    %1252 = vmatpush2.msra.mxu0 %v405
    %1253 = vmatprep.subr.mxu0 %v404
    %1254 = vmatpush2.msra.mxu0 %v403
    %1255 = vmatprep.subr.mxu0 %v402
    %1256 = vmatpush2.msra.mxu0 %v401
    %1257 = vmatprep.subr.mxu0 %v400
    %1258 = vmatpush2.msra.mxu0 %v399
    %1259 = vmatprep.subr.mxu0 %v398
    %1260 = vmatpush2.msra.mxu0 %v397
    %1261 = vmatprep.subr.mxu0 %v396
    %1262 = vmatpush2.msra.mxu0 %v395
    %1263 = vmatprep.subr.mxu0 %v394
    %1264 = vmatpush2.msra.mxu0 %v393
    %1265 = vmatprep.mubr.f32.mxu0 %v89
    %1266 = vmatmul.mubr.f32.gmra.mxu0 %v88
    %v1267 = vpop.f32.mrf.mxu0
    %v1268 = vadd.f32 %v1197, %v1267
    %v1269 = vpop.f32.mrf.mxu0
    %v1270 = vadd.f32 %v1199, %v1269
    %1271 = vdwg.mxu0
    %1272 = vmatprep.subr.mxu0 %v456
    %1273 = vmatpush1.msra.mxu0 %v455
    %1274 = vmatprep.subr.mxu0 %v454
    %1275 = vmatpush1.msra.mxu0 %v453
    %1276 = vmatprep.subr.mxu0 %v452
    %1277 = vmatpush1.msra.mxu0 %v451
    %1278 = vmatprep.subr.mxu0 %v450
    %1279 = vmatpush1.msra.mxu0 %v449
    %1280 = vmatprep.subr.mxu0 %v448
    %1281 = vmatpush1.msra.mxu0 %v447
    %1282 = vmatprep.subr.mxu0 %v446
    %1283 = vmatpush1.msra.mxu0 %v445
    %1284 = vmatprep.subr.mxu0 %v444
    %1285 = vmatpush1.msra.mxu0 %v443
    %1286 = vmatprep.subr.mxu0 %v442
    %1287 = vmatpush1.msra.mxu0 %v441
    %1288 = vmatprep.subr.mxu0 %v440
    %1289 = vmatpush1.msra.mxu0 %v439
    %1290 = vmatprep.subr.mxu0 %v438
    %1291 = vmatpush1.msra.mxu0 %v437
    %1292 = vmatprep.subr.mxu0 %v436
    %1293 = vmatpush1.msra.mxu0 %v435
    %1294 = vmatprep.subr.mxu0 %v434
    %1295 = vmatpush1.msra.mxu0 %v433
    %1296 = vmatprep.subr.mxu0 %v432
    %1297 = vmatpush1.msra.mxu0 %v431
    %1298 = vmatprep.subr.mxu0 %v430
    %1299 = vmatpush1.msra.mxu0 %v429
    %1300 = vmatprep.subr.mxu0 %v428
    %1301 = vmatpush1.msra.mxu0 %v427
    %1302 = vmatprep.subr.mxu0 %v426
    %1303 = vmatpush1.msra.mxu0 %v425
    %1304 = vmatprep.subr.mxu0 %v488
    %1305 = vmatpush2.msra.mxu0 %v487
    %1306 = vmatprep.subr.mxu0 %v486
    %1307 = vmatpush2.msra.mxu0 %v485
    %1308 = vmatprep.subr.mxu0 %v484
    %1309 = vmatpush2.msra.mxu0 %v483
    %1310 = vmatprep.subr.mxu0 %v482
    %1311 = vmatpush2.msra.mxu0 %v481
    %1312 = vmatprep.subr.mxu0 %v480
    %1313 = vmatpush2.msra.mxu0 %v479
    %1314 = vmatprep.subr.mxu0 %v478
    %1315 = vmatpush2.msra.mxu0 %v477
    %1316 = vmatprep.subr.mxu0 %v476
    %1317 = vmatpush2.msra.mxu0 %v475
    %1318 = vmatprep.subr.mxu0 %v474
    %1319 = vmatpush2.msra.mxu0 %v473
    %1320 = vmatprep.subr.mxu0 %v472
    %1321 = vmatpush2.msra.mxu0 %v471
    %1322 = vmatprep.subr.mxu0 %v470
    %1323 = vmatpush2.msra.mxu0 %v469
    %1324 = vmatprep.subr.mxu0 %v468
    %1325 = vmatpush2.msra.mxu0 %v467
    %1326 = vmatprep.subr.mxu0 %v466
    %1327 = vmatpush2.msra.mxu0 %v465
    %1328 = vmatprep.subr.mxu0 %v464
    %1329 = vmatpush2.msra.mxu0 %v463
    %1330 = vmatprep.subr.mxu0 %v462
    %1331 = vmatpush2.msra.mxu0 %v461
    %1332 = vmatprep.subr.mxu0 %v460
    %1333 = vmatpush2.msra.mxu0 %v459
    %1334 = vmatprep.subr.mxu0 %v458
    %1335 = vmatpush2.msra.mxu0 %v457
    %1336 = vmatprep.mubr.f32.mxu0 %v91
    %1337 = vmatmul.mubr.f32.gmra.mxu0 %v90
    %v1338 = vpop.f32.mrf.mxu0
    %v1339 = vadd.f32 %v1268, %v1338
    %v1340 = vpop.f32.mrf.mxu0
    %v1341 = vadd.f32 %v1270, %v1340
    %1342 = vdwg.mxu0
    %1343 = vmatprep.subr.mxu0 %v520
    %1344 = vmatpush1.msra.mxu0 %v519
    %1345 = vmatprep.subr.mxu0 %v518
    %1346 = vmatpush1.msra.mxu0 %v517
    %1347 = vmatprep.subr.mxu0 %v516
    %1348 = vmatpush1.msra.mxu0 %v515
    %1349 = vmatprep.subr.mxu0 %v514
    %1350 = vmatpush1.msra.mxu0 %v513
    %1351 = vmatprep.subr.mxu0 %v512
    %1352 = vmatpush1.msra.mxu0 %v511
    %1353 = vmatprep.subr.mxu0 %v510
    %1354 = vmatpush1.msra.mxu0 %v509
    %1355 = vmatprep.subr.mxu0 %v508
    %1356 = vmatpush1.msra.mxu0 %v507
    %1357 = vmatprep.subr.mxu0 %v506
    %1358 = vmatpush1.msra.mxu0 %v505
    %1359 = vmatprep.subr.mxu0 %v504
    %1360 = vmatpush1.msra.mxu0 %v503
    %1361 = vmatprep.subr.mxu0 %v502
    %1362 = vmatpush1.msra.mxu0 %v501
    %1363 = vmatprep.subr.mxu0 %v500
    %1364 = vmatpush1.msra.mxu0 %v499
    %1365 = vmatprep.subr.mxu0 %v498
    %1366 = vmatpush1.msra.mxu0 %v497
    %1367 = vmatprep.subr.mxu0 %v496
    %1368 = vmatpush1.msra.mxu0 %v495
    %1369 = vmatprep.subr.mxu0 %v494
    %1370 = vmatpush1.msra.mxu0 %v493
    %1371 = vmatprep.subr.mxu0 %v492
    %1372 = vmatpush1.msra.mxu0 %v491
    %1373 = vmatprep.subr.mxu0 %v490
    %1374 = vmatpush1.msra.mxu0 %v489
    %1375 = vmatprep.subr.mxu0 %v552
    %1376 = vmatpush2.msra.mxu0 %v551
    %1377 = vmatprep.subr.mxu0 %v550
    %1378 = vmatpush2.msra.mxu0 %v549
    %1379 = vmatprep.subr.mxu0 %v548
    %1380 = vmatpush2.msra.mxu0 %v547
    %1381 = vmatprep.subr.mxu0 %v546
    %1382 = vmatpush2.msra.mxu0 %v545
    %1383 = vmatprep.subr.mxu0 %v544
    %1384 = vmatpush2.msra.mxu0 %v543
    %1385 = vmatprep.subr.mxu0 %v542
    %1386 = vmatpush2.msra.mxu0 %v541
    %1387 = vmatprep.subr.mxu0 %v540
    %1388 = vmatpush2.msra.mxu0 %v539
    %1389 = vmatprep.subr.mxu0 %v538
    %1390 = vmatpush2.msra.mxu0 %v537
    %1391 = vmatprep.subr.mxu0 %v536
    %1392 = vmatpush2.msra.mxu0 %v535
    %1393 = vmatprep.subr.mxu0 %v534
    %1394 = vmatpush2.msra.mxu0 %v533
    %1395 = vmatprep.subr.mxu0 %v532
    %1396 = vmatpush2.msra.mxu0 %v531
    %1397 = vmatprep.subr.mxu0 %v530
    %1398 = vmatpush2.msra.mxu0 %v529
    %1399 = vmatprep.subr.mxu0 %v528
    %1400 = vmatpush2.msra.mxu0 %v527
    %1401 = vmatprep.subr.mxu0 %v526
    %1402 = vmatpush2.msra.mxu0 %v525
    %1403 = vmatprep.subr.mxu0 %v524
    %1404 = vmatpush2.msra.mxu0 %v523
    %1405 = vmatprep.subr.mxu0 %v522
    %1406 = vmatpush2.msra.mxu0 %v521
    %1407 = vmatprep.mubr.f32.mxu0 %v93
    %1408 = vmatmul.mubr.f32.gmra.mxu0 %v92
    %v1409 = vpop.f32.mrf.mxu0
    %v1410 = vadd.f32 %v1339, %v1409
    %v1411 = vpop.f32.mrf.mxu0
    %v1412 = vadd.f32 %v1341, %v1411
    %1413 = vdwg.mxu0
    %1414 = vmatprep.subr.mxu0 %v584
    %1415 = vmatpush1.msra.mxu0 %v583
    %1416 = vmatprep.subr.mxu0 %v582
    %1417 = vmatpush1.msra.mxu0 %v581
    %1418 = vmatprep.subr.mxu0 %v580
    %1419 = vmatpush1.msra.mxu0 %v579
    %1420 = vmatprep.subr.mxu0 %v578
    %1421 = vmatpush1.msra.mxu0 %v577
    %1422 = vmatprep.subr.mxu0 %v576
    %1423 = vmatpush1.msra.mxu0 %v575
    %1424 = vmatprep.subr.mxu0 %v574
    %1425 = vmatpush1.msra.mxu0 %v573
    %1426 = vmatprep.subr.mxu0 %v572
    %1427 = vmatpush1.msra.mxu0 %v571
    %1428 = vmatprep.subr.mxu0 %v570
    %1429 = vmatpush1.msra.mxu0 %v569
    %1430 = vmatprep.subr.mxu0 %v568
    %1431 = vmatpush1.msra.mxu0 %v567
    %1432 = vmatprep.subr.mxu0 %v566
    %1433 = vmatpush1.msra.mxu0 %v565
    %1434 = vmatprep.subr.mxu0 %v564
    %1435 = vmatpush1.msra.mxu0 %v563
    %1436 = vmatprep.subr.mxu0 %v562
    %1437 = vmatpush1.msra.mxu0 %v561
    %1438 = vmatprep.subr.mxu0 %v560
    %1439 = vmatpush1.msra.mxu0 %v559
    %1440 = vmatprep.subr.mxu0 %v558
    %1441 = vmatpush1.msra.mxu0 %v557
    %1442 = vmatprep.subr.mxu0 %v556
    %1443 = vmatpush1.msra.mxu0 %v555
    %1444 = vmatprep.subr.mxu0 %v554
    %1445 = vmatpush1.msra.mxu0 %v553
    %1446 = vmatprep.subr.mxu0 %v616
    %1447 = vmatpush2.msra.mxu0 %v615
    %1448 = vmatprep.subr.mxu0 %v614
    %1449 = vmatpush2.msra.mxu0 %v613
    %1450 = vmatprep.subr.mxu0 %v612
    %1451 = vmatpush2.msra.mxu0 %v611
    %1452 = vmatprep.subr.mxu0 %v610
    %1453 = vmatpush2.msra.mxu0 %v609
    %1454 = vmatprep.subr.mxu0 %v608
    %1455 = vmatpush2.msra.mxu0 %v607
    %1456 = vmatprep.subr.mxu0 %v606
    %1457 = vmatpush2.msra.mxu0 %v605
    %1458 = vmatprep.subr.mxu0 %v604
    %1459 = vmatpush2.msra.mxu0 %v603
    %1460 = vmatprep.subr.mxu0 %v602
    %1461 = vmatpush2.msra.mxu0 %v601
    %1462 = vmatprep.subr.mxu0 %v600
    %1463 = vmatpush2.msra.mxu0 %v599
    %1464 = vmatprep.subr.mxu0 %v598
    %1465 = vmatpush2.msra.mxu0 %v597
    %1466 = vmatprep.subr.mxu0 %v596
    %1467 = vmatpush2.msra.mxu0 %v595
    %1468 = vmatprep.subr.mxu0 %v594
    %1469 = vmatpush2.msra.mxu0 %v593
    %1470 = vmatprep.subr.mxu0 %v592
    %1471 = vmatpush2.msra.mxu0 %v591
    %1472 = vmatprep.subr.mxu0 %v590
    %1473 = vmatpush2.msra.mxu0 %v589
    %1474 = vmatprep.subr.mxu0 %v588
    %1475 = vmatpush2.msra.mxu0 %v587
    %1476 = vmatprep.subr.mxu0 %v586
    %1477 = vmatpush2.msra.mxu0 %v585
    %1478 = vmatprep.mubr.f32.mxu0 %v95
    %1479 = vmatmul.mubr.f32.gmra.mxu0 %v94
    %v1480 = vpop.f32.mrf.mxu0
    %v1481 = vadd.f32 %v1410, %v1480
    %v1482 = vpop.f32.mrf.mxu0
    %v1483 = vadd.f32 %v1412, %v1482
    %1484 = vdwg.mxu0
    %1485 = vmatprep.subr.mxu0 %v648
    %1486 = vmatpush1.msra.mxu0 %v647
    %1487 = vmatprep.subr.mxu0 %v646
    %1488 = vmatpush1.msra.mxu0 %v645
    %1489 = vmatprep.subr.mxu0 %v644
    %1490 = vmatpush1.msra.mxu0 %v643
    %1491 = vmatprep.subr.mxu0 %v642
    %1492 = vmatpush1.msra.mxu0 %v641
    %1493 = vmatprep.subr.mxu0 %v640
    %1494 = vmatpush1.msra.mxu0 %v639
    %1495 = vmatprep.subr.mxu0 %v638
    %1496 = vmatpush1.msra.mxu0 %v637
    %1497 = vmatprep.subr.mxu0 %v636
    %1498 = vmatpush1.msra.mxu0 %v635
    %1499 = vmatprep.subr.mxu0 %v634
    %1500 = vmatpush1.msra.mxu0 %v633
    %1501 = vmatprep.subr.mxu0 %v632
    %1502 = vmatpush1.msra.mxu0 %v631
    %1503 = vmatprep.subr.mxu0 %v630
    %1504 = vmatpush1.msra.mxu0 %v629
    %1505 = vmatprep.subr.mxu0 %v628
    %1506 = vmatpush1.msra.mxu0 %v627
    %1507 = vmatprep.subr.mxu0 %v626
    %1508 = vmatpush1.msra.mxu0 %v625
    %1509 = vmatprep.subr.mxu0 %v624
    %1510 = vmatpush1.msra.mxu0 %v623
    %1511 = vmatprep.subr.mxu0 %v622
    %1512 = vmatpush1.msra.mxu0 %v621
    %1513 = vmatprep.subr.mxu0 %v620
    %1514 = vmatpush1.msra.mxu0 %v619
    %1515 = vmatprep.subr.mxu0 %v618
    %1516 = vmatpush1.msra.mxu0 %v617
    %1517 = vmatprep.subr.mxu0 %v680
    %1518 = vmatpush2.msra.mxu0 %v679
    %1519 = vmatprep.subr.mxu0 %v678
    %1520 = vmatpush2.msra.mxu0 %v677
    %1521 = vmatprep.subr.mxu0 %v676
    %1522 = vmatpush2.msra.mxu0 %v675
    %1523 = vmatprep.subr.mxu0 %v674
    %1524 = vmatpush2.msra.mxu0 %v673
    %1525 = vmatprep.subr.mxu0 %v672
    %1526 = vmatpush2.msra.mxu0 %v671
    %1527 = vmatprep.subr.mxu0 %v670
    %1528 = vmatpush2.msra.mxu0 %v669
    %1529 = vmatprep.subr.mxu0 %v668
    %1530 = vmatpush2.msra.mxu0 %v667
    %1531 = vmatprep.subr.mxu0 %v666
    %1532 = vmatpush2.msra.mxu0 %v665
    %1533 = vmatprep.subr.mxu0 %v664
    %1534 = vmatpush2.msra.mxu0 %v663
    %1535 = vmatprep.subr.mxu0 %v662
    %1536 = vmatpush2.msra.mxu0 %v661
    %1537 = vmatprep.subr.mxu0 %v660
    %1538 = vmatpush2.msra.mxu0 %v659
    %1539 = vmatprep.subr.mxu0 %v658
    %1540 = vmatpush2.msra.mxu0 %v657
    %1541 = vmatprep.subr.mxu0 %v656
    %1542 = vmatpush2.msra.mxu0 %v655
    %1543 = vmatprep.subr.mxu0 %v654
    %1544 = vmatpush2.msra.mxu0 %v653
    %1545 = vmatprep.subr.mxu0 %v652
    %1546 = vmatpush2.msra.mxu0 %v651
    %1547 = vmatprep.subr.mxu0 %v650
    %1548 = vmatpush2.msra.mxu0 %v649
    %1549 = vmatprep.mubr.f32.mxu0 %v97
    %1550 = vmatmul.mubr.f32.gmra.mxu0 %v96
    %v1551 = vpop.f32.mrf.mxu0
    %v1552 = vadd.f32 %v1481, %v1551
    %v1553 = vpop.f32.mrf.mxu0
    %v1554 = vadd.f32 %v1483, %v1553
    %1555 = vdwg.mxu0
    %1556 = vmatprep.subr.mxu0 %v712
    %1557 = vmatpush1.msra.mxu0 %v711
    %1558 = vmatprep.subr.mxu0 %v710
    %1559 = vmatpush1.msra.mxu0 %v709
    %1560 = vmatprep.subr.mxu0 %v708
    %1561 = vmatpush1.msra.mxu0 %v707
    %1562 = vmatprep.subr.mxu0 %v706
    %1563 = vmatpush1.msra.mxu0 %v705
    %1564 = vmatprep.subr.mxu0 %v704
    %1565 = vmatpush1.msra.mxu0 %v703
    %1566 = vmatprep.subr.mxu0 %v702
    %1567 = vmatpush1.msra.mxu0 %v701
    %1568 = vmatprep.subr.mxu0 %v700
    %1569 = vmatpush1.msra.mxu0 %v699
    %1570 = vmatprep.subr.mxu0 %v698
    %1571 = vmatpush1.msra.mxu0 %v697
    %1572 = vmatprep.subr.mxu0 %v696
    %1573 = vmatpush1.msra.mxu0 %v695
    %1574 = vmatprep.subr.mxu0 %v694
    %1575 = vmatpush1.msra.mxu0 %v693
    %1576 = vmatprep.subr.mxu0 %v692
    %1577 = vmatpush1.msra.mxu0 %v691
    %1578 = vmatprep.subr.mxu0 %v690
    %1579 = vmatpush1.msra.mxu0 %v689
    %1580 = vmatprep.subr.mxu0 %v688
    %1581 = vmatpush1.msra.mxu0 %v687
    %1582 = vmatprep.subr.mxu0 %v686
    %1583 = vmatpush1.msra.mxu0 %v685
    %1584 = vmatprep.subr.mxu0 %v684
    %1585 = vmatpush1.msra.mxu0 %v683
    %1586 = vmatprep.subr.mxu0 %v682
    %1587 = vmatpush1.msra.mxu0 %v681
    %1588 = vmatprep.subr.mxu0 %v744
    %1589 = vmatpush2.msra.mxu0 %v743
    %1590 = vmatprep.subr.mxu0 %v742
    %1591 = vmatpush2.msra.mxu0 %v741
    %1592 = vmatprep.subr.mxu0 %v740
    %1593 = vmatpush2.msra.mxu0 %v739
    %1594 = vmatprep.subr.mxu0 %v738
    %1595 = vmatpush2.msra.mxu0 %v737
    %1596 = vmatprep.subr.mxu0 %v736
    %1597 = vmatpush2.msra.mxu0 %v735
    %1598 = vmatprep.subr.mxu0 %v734
    %1599 = vmatpush2.msra.mxu0 %v733
    %1600 = vmatprep.subr.mxu0 %v732
    %1601 = vmatpush2.msra.mxu0 %v731
    %1602 = vmatprep.subr.mxu0 %v730
    %1603 = vmatpush2.msra.mxu0 %v729
    %1604 = vmatprep.subr.mxu0 %v728
    %1605 = vmatpush2.msra.mxu0 %v727
    %1606 = vmatprep.subr.mxu0 %v726
    %1607 = vmatpush2.msra.mxu0 %v725
    %1608 = vmatprep.subr.mxu0 %v724
    %1609 = vmatpush2.msra.mxu0 %v723
    %1610 = vmatprep.subr.mxu0 %v722
    %1611 = vmatpush2.msra.mxu0 %v721
    %1612 = vmatprep.subr.mxu0 %v720
    %1613 = vmatpush2.msra.mxu0 %v719
    %1614 = vmatprep.subr.mxu0 %v718
    %1615 = vmatpush2.msra.mxu0 %v717
    %1616 = vmatprep.subr.mxu0 %v716
    %1617 = vmatpush2.msra.mxu0 %v715
    %1618 = vmatprep.subr.mxu0 %v714
    %1619 = vmatpush2.msra.mxu0 %v713
    %1620 = vmatprep.mubr.f32.mxu0 %v99
    %1621 = vmatmul.mubr.f32.gmra.mxu0 %v98
    %v1622 = vpop.f32.mrf.mxu0
    %v1623 = vadd.f32 %v1552, %v1622
    %v1624 = vpop.f32.mrf.mxu0
    %v1625 = vadd.f32 %v1554, %v1624
    %1626 = vdwg.mxu0
    %1627 = vmatprep.subr.mxu0 %v776
    %1628 = vmatpush1.msra.mxu0 %v775
    %1629 = vmatprep.subr.mxu0 %v774
    %1630 = vmatpush1.msra.mxu0 %v773
    %1631 = vmatprep.subr.mxu0 %v772
    %1632 = vmatpush1.msra.mxu0 %v771
    %1633 = vmatprep.subr.mxu0 %v770
    %1634 = vmatpush1.msra.mxu0 %v769
    %1635 = vmatprep.subr.mxu0 %v768
    %1636 = vmatpush1.msra.mxu0 %v767
    %1637 = vmatprep.subr.mxu0 %v766
    %1638 = vmatpush1.msra.mxu0 %v765
    %1639 = vmatprep.subr.mxu0 %v764
    %1640 = vmatpush1.msra.mxu0 %v763
    %1641 = vmatprep.subr.mxu0 %v762
    %1642 = vmatpush1.msra.mxu0 %v761
    %1643 = vmatprep.subr.mxu0 %v760
    %1644 = vmatpush1.msra.mxu0 %v759
    %1645 = vmatprep.subr.mxu0 %v758
    %1646 = vmatpush1.msra.mxu0 %v757
    %1647 = vmatprep.subr.mxu0 %v756
    %1648 = vmatpush1.msra.mxu0 %v755
    %1649 = vmatprep.subr.mxu0 %v754
    %1650 = vmatpush1.msra.mxu0 %v753
    %1651 = vmatprep.subr.mxu0 %v752
    %1652 = vmatpush1.msra.mxu0 %v751
    %1653 = vmatprep.subr.mxu0 %v750
    %1654 = vmatpush1.msra.mxu0 %v749
    %1655 = vmatprep.subr.mxu0 %v748
    %1656 = vmatpush1.msra.mxu0 %v747
    %1657 = vmatprep.subr.mxu0 %v746
    %1658 = vmatpush1.msra.mxu0 %v745
    %1659 = vmatprep.subr.mxu0 %v808
    %1660 = vmatpush2.msra.mxu0 %v807
    %1661 = vmatprep.subr.mxu0 %v806
    %1662 = vmatpush2.msra.mxu0 %v805
    %1663 = vmatprep.subr.mxu0 %v804
    %1664 = vmatpush2.msra.mxu0 %v803
    %1665 = vmatprep.subr.mxu0 %v802
    %1666 = vmatpush2.msra.mxu0 %v801
    %1667 = vmatprep.subr.mxu0 %v800
    %1668 = vmatpush2.msra.mxu0 %v799
    %1669 = vmatprep.subr.mxu0 %v798
    %1670 = vmatpush2.msra.mxu0 %v797
    %1671 = vmatprep.subr.mxu0 %v796
    %1672 = vmatpush2.msra.mxu0 %v795
    %1673 = vmatprep.subr.mxu0 %v794
    %1674 = vmatpush2.msra.mxu0 %v793
    %1675 = vmatprep.subr.mxu0 %v792
    %1676 = vmatpush2.msra.mxu0 %v791
    %1677 = vmatprep.subr.mxu0 %v790
    %1678 = vmatpush2.msra.mxu0 %v789
    %1679 = vmatprep.subr.mxu0 %v788
    %1680 = vmatpush2.msra.mxu0 %v787
    %1681 = vmatprep.subr.mxu0 %v786
    %1682 = vmatpush2.msra.mxu0 %v785
    %1683 = vmatprep.subr.mxu0 %v784
    %1684 = vmatpush2.msra.mxu0 %v783
    %1685 = vmatprep.subr.mxu0 %v782
    %1686 = vmatpush2.msra.mxu0 %v781
    %1687 = vmatprep.subr.mxu0 %v780
    %1688 = vmatpush2.msra.mxu0 %v779
    %1689 = vmatprep.subr.mxu0 %v778
    %1690 = vmatpush2.msra.mxu0 %v777
    %1691 = vmatprep.mubr.f32.mxu0 %v101
    %1692 = vmatmul.mubr.f32.gmra.mxu0 %v100
    %v1693 = vpop.f32.mrf.mxu0
    %v1694 = vadd.f32 %v1623, %v1693
    %v1695 = vpop.f32.mrf.mxu0
    %v1696 = vadd.f32 %v1625, %v1695
    %1697 = vdwg.mxu0
    %1698 = vmatprep.subr.mxu0 %v840
    %1699 = vmatpush1.msra.mxu0 %v839
    %1700 = vmatprep.subr.mxu0 %v838
    %1701 = vmatpush1.msra.mxu0 %v837
    %1702 = vmatprep.subr.mxu0 %v836
    %1703 = vmatpush1.msra.mxu0 %v835
    %1704 = vmatprep.subr.mxu0 %v834
    %1705 = vmatpush1.msra.mxu0 %v833
    %1706 = vmatprep.subr.mxu0 %v832
    %1707 = vmatpush1.msra.mxu0 %v831
    %1708 = vmatprep.subr.mxu0 %v830
    %1709 = vmatpush1.msra.mxu0 %v829
    %1710 = vmatprep.subr.mxu0 %v828
    %1711 = vmatpush1.msra.mxu0 %v827
    %1712 = vmatprep.subr.mxu0 %v826
    %1713 = vmatpush1.msra.mxu0 %v825
    %1714 = vmatprep.subr.mxu0 %v824
    %1715 = vmatpush1.msra.mxu0 %v823
    %1716 = vmatprep.subr.mxu0 %v822
    %1717 = vmatpush1.msra.mxu0 %v821
    %1718 = vmatprep.subr.mxu0 %v820
    %1719 = vmatpush1.msra.mxu0 %v819
    %1720 = vmatprep.subr.mxu0 %v818
    %1721 = vmatpush1.msra.mxu0 %v817
    %1722 = vmatprep.subr.mxu0 %v816
    %1723 = vmatpush1.msra.mxu0 %v815
    %1724 = vmatprep.subr.mxu0 %v814
    %1725 = vmatpush1.msra.mxu0 %v813
    %1726 = vmatprep.subr.mxu0 %v812
    %1727 = vmatpush1.msra.mxu0 %v811
    %1728 = vmatprep.subr.mxu0 %v810
    %1729 = vmatpush1.msra.mxu0 %v809
    %1730 = vmatprep.subr.mxu0 %v872
    %1731 = vmatpush2.msra.mxu0 %v871
    %1732 = vmatprep.subr.mxu0 %v870
    %1733 = vmatpush2.msra.mxu0 %v869
    %1734 = vmatprep.subr.mxu0 %v868
    %1735 = vmatpush2.msra.mxu0 %v867
    %1736 = vmatprep.subr.mxu0 %v866
    %1737 = vmatpush2.msra.mxu0 %v865
    %1738 = vmatprep.subr.mxu0 %v864
    %1739 = vmatpush2.msra.mxu0 %v863
    %1740 = vmatprep.subr.mxu0 %v862
    %1741 = vmatpush2.msra.mxu0 %v861
    %1742 = vmatprep.subr.mxu0 %v860
    %1743 = vmatpush2.msra.mxu0 %v859
    %1744 = vmatprep.subr.mxu0 %v858
    %1745 = vmatpush2.msra.mxu0 %v857
    %1746 = vmatprep.subr.mxu0 %v856
    %1747 = vmatpush2.msra.mxu0 %v855
    %1748 = vmatprep.subr.mxu0 %v854
    %1749 = vmatpush2.msra.mxu0 %v853
    %1750 = vmatprep.subr.mxu0 %v852
    %1751 = vmatpush2.msra.mxu0 %v851
    %1752 = vmatprep.subr.mxu0 %v850
    %1753 = vmatpush2.msra.mxu0 %v849
    %1754 = vmatprep.subr.mxu0 %v848
    %1755 = vmatpush2.msra.mxu0 %v847
    %1756 = vmatprep.subr.mxu0 %v846
    %1757 = vmatpush2.msra.mxu0 %v845
    %1758 = vmatprep.subr.mxu0 %v844
    %1759 = vmatpush2.msra.mxu0 %v843
    %1760 = vmatprep.subr.mxu0 %v842
    %1761 = vmatpush2.msra.mxu0 %v841
    %1762 = vmatprep.mubr.f32.mxu0 %v103
    %1763 = vmatmul.mubr.f32.gmra.mxu0 %v102
    %v1764 = vpop.f32.mrf.mxu0
    %v1765 = vadd.f32 %v1694, %v1764
    %v1766 = vpop.f32.mrf.mxu0
    %v1767 = vadd.f32 %v1696, %v1766
    %1768 = vdwg.mxu0
    %1769 = vmatprep.subr.mxu0 %v904
    %1770 = vmatpush1.msra.mxu0 %v903
    %1771 = vmatprep.subr.mxu0 %v902
    %1772 = vmatpush1.msra.mxu0 %v901
    %1773 = vmatprep.subr.mxu0 %v900
    %1774 = vmatpush1.msra.mxu0 %v899
    %1775 = vmatprep.subr.mxu0 %v898
    %1776 = vmatpush1.msra.mxu0 %v897
    %1777 = vmatprep.subr.mxu0 %v896
    %1778 = vmatpush1.msra.mxu0 %v895
    %1779 = vmatprep.subr.mxu0 %v894
    %1780 = vmatpush1.msra.mxu0 %v893
    %1781 = vmatprep.subr.mxu0 %v892
    %1782 = vmatpush1.msra.mxu0 %v891
    %1783 = vmatprep.subr.mxu0 %v890
    %1784 = vmatpush1.msra.mxu0 %v889
    %1785 = vmatprep.subr.mxu0 %v888
    %1786 = vmatpush1.msra.mxu0 %v887
    %1787 = vmatprep.subr.mxu0 %v886
    %1788 = vmatpush1.msra.mxu0 %v885
    %1789 = vmatprep.subr.mxu0 %v884
    %1790 = vmatpush1.msra.mxu0 %v883
    %1791 = vmatprep.subr.mxu0 %v882
    %1792 = vmatpush1.msra.mxu0 %v881
    %1793 = vmatprep.subr.mxu0 %v880
    %1794 = vmatpush1.msra.mxu0 %v879
    %1795 = vmatprep.subr.mxu0 %v878
    %1796 = vmatpush1.msra.mxu0 %v877
    %1797 = vmatprep.subr.mxu0 %v876
    %1798 = vmatpush1.msra.mxu0 %v875
    %1799 = vmatprep.subr.mxu0 %v874
    %1800 = vmatpush1.msra.mxu0 %v873
    %1801 = vmatprep.subr.mxu0 0.0
    %1802 = vmatpush2.msra.mxu0 0.0
    %1803 = vmatprep.subr.mxu0 0.0
    %1804 = vmatpush2.msra.mxu0 0.0
    %1805 = vmatprep.subr.mxu0 0.0
    %1806 = vmatpush2.msra.mxu0 0.0
    %1807 = vmatprep.subr.mxu0 0.0
    %1808 = vmatpush2.msra.mxu0 0.0
    %1809 = vmatprep.subr.mxu0 0.0
    %1810 = vmatpush2.msra.mxu0 0.0
    %1811 = vmatprep.subr.mxu0 0.0
    %1812 = vmatpush2.msra.mxu0 0.0
    %1813 = vmatprep.subr.mxu0 0.0
    %1814 = vmatpush2.msra.mxu0 0.0
    %1815 = vmatprep.subr.mxu0 0.0
    %1816 = vmatpush2.msra.mxu0 0.0
    %1817 = vmatprep.subr.mxu0 0.0
    %1818 = vmatpush2.msra.mxu0 0.0
    %1819 = vmatprep.subr.mxu0 0.0
    %1820 = vmatpush2.msra.mxu0 0.0
    %1821 = vmatprep.subr.mxu0 0.0
    %1822 = vmatpush2.msra.mxu0 0.0
    %1823 = vmatprep.subr.mxu0 0.0
    %1824 = vmatpush2.msra.mxu0 0.0
    %1825 = vmatprep.subr.mxu0 0.0
    %1826 = vmatpush2.msra.mxu0 0.0
    %1827 = vmatprep.subr.mxu0 0.0
    %1828 = vmatpush2.msra.mxu0 0.0
    %1829 = vmatprep.subr.mxu0 0.0
    %1830 = vmatpush2.msra.mxu0 0.0
    %1831 = vmatprep.subr.mxu0 0.0
    %1832 = vmatpush2.msra.mxu0 0.0
    %1833 = vmatprep.mubr.f32.mxu0 0.0
    %1834 = vmatmul.mubr.f32.gmra.mxu0 %v104
    %v1835 = vpop.f32.mrf.mxu0
    %v1836 = vadd.f32 %v1765, %v1835
    %v1837 = vpop.f32.mrf.mxu0
    %v1838 = vadd.f32 %v1767, %v1837
    %1839 = vdwg.mxu0
    %v1840 = vmax.f32 %v1836, 0.0
    %v1841 = vmax.f32 %v1838, 0.0
    %v1844 = vrot.slane %v1840, 2
    %v1845 = vrot.slane %v1841, 2
    %v1848 = vmax.f32 %v1840, %v1844
    %v1849 = vmax.f32 %v1841, %v1845
    %v1852 = vrot.slane %v1848, 4
    %v1853 = vrot.slane %v1849, 4
    %v1856 = vmax.f32 %v1848, %v1852
    %v1857 = vmax.f32 %v1849, %v1853
    %v1858 = vld [vmem:[%s3] sm:$0xff]
    %v1859 = vld [vmem:[%s3 + $0x8] sm:$0xff]
    %v1860 = vld [vmem:[%s3 + $0x10] sm:$0xff]
    %v1861 = vld [vmem:[%s3 + $0x18] sm:$0xff]
    %v1862 = vld [vmem:[%s3 + $0x20] sm:$0xff]
    %v1863 = vld [vmem:[%s3 + $0x28] sm:$0xff]
    %v1864 = vld [vmem:[%s3 + $0x30] sm:$0xff]
    %v1865 = vld [vmem:[%s3 + $0x38] sm:$0xff]
    %v1866 = vld [vmem:[%s3 + $0x40] sm:$0xff]
    %v1867 = vld [vmem:[%s3 + $0x48] sm:$0xff]
    %v1868 = vld [vmem:[%s3 + $0x50] sm:$0xff]
    %v1869 = vld [vmem:[%s3 + $0x58] sm:$0xff]
    %v1870 = vld [vmem:[%s3 + $0x60] sm:$0xff]
    %v1871 = vld [vmem:[%s3 + $0x68] sm:$0xff]
    %v1872 = vld [vmem:[%s3 + $0x70] sm:$0xff]
    %v1873 = vld [vmem:[%s3 + $0x78] sm:$0xff]
    %v1874 = vld [vmem:[%s3 + $0x80] sm:$0xff]
    %v1875 = vld [vmem:[%s3 + $0x88] sm:$0xff]
    %v1876 = vld [vmem:[%s3 + $0x90] sm:$0xff]
    %v1877 = vld [vmem:[%s3 + $0x98] sm:$0xff]
    %v1878 = vld [vmem:[%s3 + $0xa0] sm:$0xff]
    %v1879 = vld [vmem:[%s3 + $0xa8] sm:$0xff]
    %v1880 = vld [vmem:[%s3 + $0xb0] sm:$0xff]
    %v1881 = vld [vmem:[%s3 + $0xb8] sm:$0xff]
    %v1882 = vld [vmem:[%s3 + $0xc0] sm:$0xff]
    %v1883 = vld [vmem:[%s3 + $0xc8] sm:$0xff]
    %v1884 = vld [vmem:[%s3 + $0xd0] sm:$0xff]
    %v1885 = vld [vmem:[%s3 + $0xd8] sm:$0xff]
    %v1886 = vld [vmem:[%s3 + $0xe0] sm:$0xff]
    %v1887 = vld [vmem:[%s3 + $0xe8] sm:$0xff]
    %v1888 = vld [vmem:[%s3 + $0xf0] sm:$0xff]
    %v1889 = vld [vmem:[%s3 + $0xf8] sm:$0xff]
    %v1890 = vld [vmem:[%s3 + $0x100] sm:$0xff]
    %v1891 = vld [vmem:[%s3 + $0x108] sm:$0xff]
    %v1892 = vld [vmem:[%s3 + $0x110] sm:$0xff]
    %v1893 = vld [vmem:[%s3 + $0x118] sm:$0xff]
    %v1894 = vld [vmem:[%s3 + $0x120] sm:$0xff]
    %v1895 = vld [vmem:[%s3 + $0x128] sm:$0xff]
    %v1896 = vld [vmem:[%s3 + $0x130] sm:$0xff]
    %v1897 = vld [vmem:[%s3 + $0x138] sm:$0xff]
    %v1898 = vld [vmem:[%s3 + $0x140] sm:$0xff]
    %v1899 = vld [vmem:[%s3 + $0x148] sm:$0xff]
    %v1900 = vld [vmem:[%s3 + $0x150] sm:$0xff]
    %v1901 = vld [vmem:[%s3 + $0x158] sm:$0xff]
    %v1902 = vld [vmem:[%s3 + $0x160] sm:$0xff]
    %v1903 = vld [vmem:[%s3 + $0x168] sm:$0xff]
    %v1904 = vld [vmem:[%s3 + $0x170] sm:$0xff]
    %v1905 = vld [vmem:[%s3 + $0x178] sm:$0xff]
    %v1906 = vld [vmem:[%s3 + $0x180] sm:$0xff]
    %v1907 = vld [vmem:[%s3 + $0x188] sm:$0xff]
    %v1908 = vld [vmem:[%s3 + $0x190] sm:$0xff]
    %v1909 = vld [vmem:[%s3 + $0x198] sm:$0xff]
    %v1910 = vld [vmem:[%s3 + $0x1a0] sm:$0xff]
    %v1911 = vld [vmem:[%s3 + $0x1a8] sm:$0xff]
    %v1912 = vld [vmem:[%s3 + $0x1b0] sm:$0xff]
    %v1913 = vld [vmem:[%s3 + $0x1b8] sm:$0xff]
    %v1914 = vld [vmem:[%s3 + $0x1c0] sm:$0xff]
    %v1915 = vld [vmem:[%s3 + $0x1c8] sm:$0xff]
    %v1916 = vld [vmem:[%s3 + $0x1d0] sm:$0xff]
    %v1917 = vld [vmem:[%s3 + $0x1d8] sm:$0xff]
    %v1918 = vld [vmem:[%s3 + $0x1e0] sm:$0xff]
    %v1919 = vld [vmem:[%s3 + $0x1e8] sm:$0xff]
    %v1920 = vld [vmem:[%s3 + $0x1f0] sm:$0xff]
    %v1921 = vld [vmem:[%s3 + $0x1f8] sm:$0xff]
    %v1922 = vld [vmem:[%s3 + $0x200] sm:$0xff]
    %v1923 = vld [vmem:[%s3 + $0x208] sm:$0xff]
    %v1924 = vld [vmem:[%s3 + $0x210] sm:$0xff]
    %v1925 = vld [vmem:[%s3 + $0x218] sm:$0xff]
    %v1926 = vld [vmem:[%s3 + $0x220] sm:$0xff]
    %v1927 = vld [vmem:[%s3 + $0x228] sm:$0xff]
    %v1928 = vld [vmem:[%s3 + $0x230] sm:$0xff]
    %v1929 = vld [vmem:[%s3 + $0x238] sm:$0xff]
    %v1930 = vld [vmem:[%s3 + $0x240] sm:$0xff]
    %v1931 = vld [vmem:[%s3 + $0x248] sm:$0xff]
    %v1932 = vld [vmem:[%s3 + $0x250] sm:$0xff]
    %v1933 = vld [vmem:[%s3 + $0x258] sm:$0xff]
    %v1934 = vld [vmem:[%s3 + $0x260] sm:$0xff]
    %v1935 = vld [vmem:[%s3 + $0x268] sm:$0xff]
    %v1936 = vld [vmem:[%s3 + $0x270] sm:$0xff]
    %v1937 = vld [vmem:[%s3 + $0x278] sm:$0xff]
    %v1938 = vld [vmem:[%s3 + $0x280] sm:$0xff]
    %v1939 = vld [vmem:[%s3 + $0x288] sm:$0xff]
    %v1940 = vld [vmem:[%s3 + $0x290] sm:$0xff]
    %v1941 = vld [vmem:[%s3 + $0x298] sm:$0xff]
    %v1942 = vld [vmem:[%s3 + $0x2a0] sm:$0xff]
    %v1943 = vld [vmem:[%s3 + $0x2a8] sm:$0xff]
    %v1944 = vld [vmem:[%s3 + $0x2b0] sm:$0xff]
    %v1945 = vld [vmem:[%s3 + $0x2b8] sm:$0xff]
    %v1946 = vld [vmem:[%s3 + $0x2c0] sm:$0xff]
    %v1947 = vld [vmem:[%s3 + $0x2c8] sm:$0xff]
    %v1948 = vld [vmem:[%s3 + $0x2d0] sm:$0xff]
    %v1949 = vld [vmem:[%s3 + $0x2d8] sm:$0xff]
    %v1950 = vld [vmem:[%s3 + $0x2e0] sm:$0xff]
    %v1951 = vld [vmem:[%s3 + $0x2e8] sm:$0xff]
    %v1952 = vld [vmem:[%s3 + $0x2f0] sm:$0xff]
    %v1953 = vld [vmem:[%s3 + $0x2f8] sm:$0xff]
    %v1954 = vld [vmem:[%s4] sm:$0x7]
    %v1956 = vlaneseq
    %v1957 = vshrl.u32 %v1956, 7
    %v1958 = vsub.s32 0, %v1957
    %v1959 = vrot.slane %v1954, %v1958
    %v1960 = vlaneseq
    %v1961 = vshrl.u32 %v1960, 7
    %v1962 = vsub.s32 1, %v1961
    %v1963 = vrot.slane %v1954, %v1962
    %v1964 = vlaneseq
    %v1965 = vshrl.u32 %v1964, 7
    %v1966 = vsub.s32 2, %v1965
    %v1967 = vrot.slane %v1954, %v1966
    %1971 = vmatprep.subr.mxu0 %v1904
    %1972 = vmatpush1.msra.mxu0 %v1903
    %1973 = vmatprep.subr.mxu0 %v1901
    %1974 = vmatpush1.msra.mxu0 %v1900
    %1975 = vmatprep.subr.mxu0 %v1898
    %1976 = vmatpush1.msra.mxu0 %v1897
    %1977 = vmatprep.subr.mxu0 %v1895
    %1978 = vmatpush1.msra.mxu0 %v1894
    %1979 = vmatprep.subr.mxu0 %v1892
    %1980 = vmatpush1.msra.mxu0 %v1891
    %1981 = vmatprep.subr.mxu0 %v1889
    %1982 = vmatpush1.msra.mxu0 %v1888
    %1983 = vmatprep.subr.mxu0 %v1886
    %1984 = vmatpush1.msra.mxu0 %v1885
    %1985 = vmatprep.subr.mxu0 %v1883
    %1986 = vmatpush1.msra.mxu0 %v1882
    %1987 = vmatprep.subr.mxu0 %v1880
    %1988 = vmatpush1.msra.mxu0 %v1879
    %1989 = vmatprep.subr.mxu0 %v1877
    %1990 = vmatpush1.msra.mxu0 %v1876
    %1991 = vmatprep.subr.mxu0 %v1874
    %1992 = vmatpush1.msra.mxu0 %v1873
    %1993 = vmatprep.subr.mxu0 %v1871
    %1994 = vmatpush1.msra.mxu0 %v1870
    %1995 = vmatprep.subr.mxu0 %v1868
    %1996 = vmatpush1.msra.mxu0 %v1867
    %1997 = vmatprep.subr.mxu0 %v1865
    %1998 = vmatpush1.msra.mxu0 %v1864
    %1999 = vmatprep.subr.mxu0 %v1862
    %2000 = vmatpush1.msra.mxu0 %v1861
    %2001 = vmatprep.subr.mxu0 %v1859
    %2002 = vmatpush1.msra.mxu0 %v1858
    %2003 = vmatprep.subr.mxu0 %v1952
    %2004 = vmatpush2.msra.mxu0 %v1951
    %2005 = vmatprep.subr.mxu0 %v1949
    %2006 = vmatpush2.msra.mxu0 %v1948
    %2007 = vmatprep.subr.mxu0 %v1946
    %2008 = vmatpush2.msra.mxu0 %v1945
    %2009 = vmatprep.subr.mxu0 %v1943
    %2010 = vmatpush2.msra.mxu0 %v1942
    %2011 = vmatprep.subr.mxu0 %v1940
    %2012 = vmatpush2.msra.mxu0 %v1939
    %2013 = vmatprep.subr.mxu0 %v1937
    %2014 = vmatpush2.msra.mxu0 %v1936
    %2015 = vmatprep.subr.mxu0 %v1934
    %2016 = vmatpush2.msra.mxu0 %v1933
    %2017 = vmatprep.subr.mxu0 %v1931
    %2018 = vmatpush2.msra.mxu0 %v1930
    %2019 = vmatprep.subr.mxu0 %v1928
    %2020 = vmatpush2.msra.mxu0 %v1927
    %2021 = vmatprep.subr.mxu0 %v1925
    %2022 = vmatpush2.msra.mxu0 %v1924
    %2023 = vmatprep.subr.mxu0 %v1922
    %2024 = vmatpush2.msra.mxu0 %v1921
    %2025 = vmatprep.subr.mxu0 %v1919
    %2026 = vmatpush2.msra.mxu0 %v1918
    %2027 = vmatprep.subr.mxu0 %v1916
    %2028 = vmatpush2.msra.mxu0 %v1915
    %2029 = vmatprep.subr.mxu0 %v1913
    %2030 = vmatpush2.msra.mxu0 %v1912
    %2031 = vmatprep.subr.mxu0 %v1910
    %2032 = vmatpush2.msra.mxu0 %v1909
    %2033 = vmatprep.subr.mxu0 %v1907
    %2034 = vmatpush2.msra.mxu0 %v1906
    %2035 = vmatprep.mubr.f32.mxu0 %v1857
    %2036 = vmatmul.mubr.f32.gmra.mxu0 %v1856
    %v2037 = vpop.f32.mrf.mxu0
    %v2038 = vadd.f32 %v1959, %v2037
    %v2039 = vpop.f32.mrf.mxu0
    %v2040 = vadd.f32 %v1963, %v2039
    %2041 = vdwg.mxu0
    %2042 = vmatprep.subr.mxu0 0.0
    %2043 = vmatpush1.msra.mxu0 %v1905
    %2044 = vmatprep.subr.mxu0 0.0
    %2045 = vmatpush1.msra.mxu0 %v1902
    %2046 = vmatprep.subr.mxu0 0.0
    %2047 = vmatpush1.msra.mxu0 %v1899
    %2048 = vmatprep.subr.mxu0 0.0
    %2049 = vmatpush1.msra.mxu0 %v1896
    %2050 = vmatprep.subr.mxu0 0.0
    %2051 = vmatpush1.msra.mxu0 %v1893
    %2052 = vmatprep.subr.mxu0 0.0
    %2053 = vmatpush1.msra.mxu0 %v1890
    %2054 = vmatprep.subr.mxu0 0.0
    %2055 = vmatpush1.msra.mxu0 %v1887
    %2056 = vmatprep.subr.mxu0 0.0
    %2057 = vmatpush1.msra.mxu0 %v1884
    %2058 = vmatprep.subr.mxu0 0.0
    %2059 = vmatpush1.msra.mxu0 %v1881
    %2060 = vmatprep.subr.mxu0 0.0
    %2061 = vmatpush1.msra.mxu0 %v1878
    %2062 = vmatprep.subr.mxu0 0.0
    %2063 = vmatpush1.msra.mxu0 %v1875
    %2064 = vmatprep.subr.mxu0 0.0
    %2065 = vmatpush1.msra.mxu0 %v1872
    %2066 = vmatprep.subr.mxu0 0.0
    %2067 = vmatpush1.msra.mxu0 %v1869
    %2068 = vmatprep.subr.mxu0 0.0
    %2069 = vmatpush1.msra.mxu0 %v1866
    %2070 = vmatprep.subr.mxu0 0.0
    %2071 = vmatpush1.msra.mxu0 %v1863
    %2072 = vmatprep.subr.mxu0 0.0
    %2073 = vmatpush1.msra.mxu0 %v1860
    %2074 = vmatprep.subr.mxu0 0.0
    %2075 = vmatpush2.msra.mxu0 %v1953
    %2076 = vmatprep.subr.mxu0 0.0
    %2077 = vmatpush2.msra.mxu0 %v1950
    %2078 = vmatprep.subr.mxu0 0.0
    %2079 = vmatpush2.msra.mxu0 %v1947
    %2080 = vmatprep.subr.mxu0 0.0
    %2081 = vmatpush2.msra.mxu0 %v1944
    %2082 = vmatprep.subr.mxu0 0.0
    %2083 = vmatpush2.msra.mxu0 %v1941
    %2084 = vmatprep.subr.mxu0 0.0
    %2085 = vmatpush2.msra.mxu0 %v1938
    %2086 = vmatprep.subr.mxu0 0.0
    %2087 = vmatpush2.msra.mxu0 %v1935
    %2088 = vmatprep.subr.mxu0 0.0
    %2089 = vmatpush2.msra.mxu0 %v1932
    %2090 = vmatprep.subr.mxu0 0.0
    %2091 = vmatpush2.msra.mxu0 %v1929
    %2092 = vmatprep.subr.mxu0 0.0
    %2093 = vmatpush2.msra.mxu0 %v1926
    %2094 = vmatprep.subr.mxu0 0.0
    %2095 = vmatpush2.msra.mxu0 %v1923
    %2096 = vmatprep.subr.mxu0 0.0
    %2097 = vmatpush2.msra.mxu0 %v1920
    %2098 = vmatprep.subr.mxu0 0.0
    %2099 = vmatpush2.msra.mxu0 %v1917
    %2100 = vmatprep.subr.mxu0 0.0
    %2101 = vmatpush2.msra.mxu0 %v1914
    %2102 = vmatprep.subr.mxu0 0.0
    %2103 = vmatpush2.msra.mxu0 %v1911
    %2104 = vmatprep.subr.mxu0 0.0
    %2105 = vmatpush2.msra.mxu0 %v1908
    %2106 = vmatprep.mubr.f32.mxu0 %v1857
    %2107 = vmatmul.mubr.f32.gmra.mxu0 %v1856
    %v2108 = vpop.f32.mrf.mxu0
    %v2109 = vadd.f32 %v1967, %v2108
    %v2110 = vpop.f32.mrf.mxu0
    %2111 = vdwg.mxu0
    %v2112 = vmax.f32 %v2038, 0.0
    %v2113 = vmax.f32 %v2040, 0.0
    %v2114 = vmax.f32 %v2109, 0.0
    %v2115 = vld [vmem:[#allocation2] sm:$0xff]
    %v2116 = vld [vmem:[#allocation2 + $0x8] sm:$0xff]
    %v2117 = vld [vmem:[#allocation2 + $0x10] sm:$0xff]
    %v2118 = vld [vmem:[#allocation2 + $0x18] sm:$0xff]
    %v2119 = vld [vmem:[#allocation2 + $0x20] sm:$0xff]
    %v2120 = vld [vmem:[#allocation2 + $0x28] sm:$0xff]
    %v2121 = vld [vmem:[#allocation2 + $0x30] sm:$0xff]
    %v2122 = vld [vmem:[#allocation2 + $0x38] sm:$0xff]
    %v2123 = vld [vmem:[#allocation2 + $0x40] sm:$0xff]
    %v2124 = vld [vmem:[#allocation2 + $0x48] sm:$0xff]
    %v2125 = vld [vmem:[#allocation2 + $0x50] sm:$0xff]
    %v2126 = vld [vmem:[#allocation2 + $0x58] sm:$0xff]
    %v2127 = vld [vmem:[#allocation2 + $0x60] sm:$0xff]
    %v2128 = vld [vmem:[#allocation2 + $0x68] sm:$0xff]
    %v2129 = vld [vmem:[#allocation2 + $0x70] sm:$0xff]
    %v2130 = vld [vmem:[#allocation2 + $0x78] sm:$0xff]
    %v2131 = vld [vmem:[#allocation2 + $0x80] sm:$0xff]
    %v2132 = vld [vmem:[#allocation2 + $0x88] sm:$0xff]
    %v2133 = vld [vmem:[#allocation2 + $0x90] sm:$0xff]
    %v2134 = vld [vmem:[#allocation2 + $0x98] sm:$0xff]
    %v2135 = vld [vmem:[#allocation2 + $0xa0] sm:$0xff]
    %v2136 = vld [vmem:[#allocation2 + $0xa8] sm:$0xff]
    %v2137 = vld [vmem:[#allocation2 + $0xb0] sm:$0xff]
    %v2138 = vld [vmem:[#allocation2 + $0xb8] sm:$0xff]
    %v2139 = vld [vmem:[#allocation2 + $0xc0] sm:$0xff]
    %v2140 = vld [vmem:[#allocation2 + $0xc8] sm:$0xff]
    %v2141 = vld [vmem:[#allocation2 + $0xd0] sm:$0xff]
    %v2142 = vld [vmem:[#allocation2 + $0xd8] sm:$0xff]
    %v2143 = vld [vmem:[#allocation2 + $0xe0] sm:$0xff]
    %v2144 = vld [vmem:[#allocation2 + $0xe8] sm:$0xff]
    %v2145 = vld [vmem:[#allocation2 + $0xf0] sm:$0xff]
    %v2146 = vld [vmem:[#allocation2 + $0xf8] sm:$0xff]
    %v2147 = vld [vmem:[#allocation2 + $0x100] sm:$0xff]
    %v2148 = vld [vmem:[#allocation2 + $0x108] sm:$0xff]
    %v2149 = vld [vmem:[#allocation2 + $0x110] sm:$0xff]
    %v2150 = vld [vmem:[#allocation2 + $0x118] sm:$0xff]
    %v2151 = vld [vmem:[#allocation2 + $0x120] sm:$0xff]
    %v2152 = vld [vmem:[#allocation2 + $0x128] sm:$0xff]
    %v2153 = vld [vmem:[#allocation2 + $0x130] sm:$0xff]
    %v2154 = vld [vmem:[#allocation2 + $0x138] sm:$0xff]
    %v2155 = vld [vmem:[#allocation2 + $0x140] sm:$0xff]
    %v2156 = vld [vmem:[#allocation2 + $0x148] sm:$0xff]
    %v2157 = vld [vmem:[#allocation2 + $0x150] sm:$0xff]
    %v2158 = vld [vmem:[#allocation2 + $0x158] sm:$0xff]
    %v2159 = vld [vmem:[#allocation2 + $0x160] sm:$0xff]
    %v2160 = vld [vmem:[#allocation2 + $0x168] sm:$0xff]
    %v2161 = vld [vmem:[#allocation2 + $0x170] sm:$0xff]
    %v2162 = vld [vmem:[#allocation2 + $0x178] sm:$0xff]
    %v2163 = vld [vmem:[#allocation2 + $0x180] sm:$0xff]
    %v2164 = vld [vmem:[#allocation2 + $0x188] sm:$0xff]
    %v2165 = vld [vmem:[#allocation2 + $0x190] sm:$0xff]
    %v2166 = vld [vmem:[#allocation2 + $0x198] sm:$0xff]
    %v2167 = vld [vmem:[#allocation2 + $0x1a0] sm:$0xff]
    %v2168 = vld [vmem:[#allocation2 + $0x1a8] sm:$0xff]
    %v2169 = vld [vmem:[#allocation2 + $0x1b0] sm:$0xff]
    %v2170 = vld [vmem:[#allocation2 + $0x1b8] sm:$0xff]
    %v2171 = vld [vmem:[#allocation2 + $0x1c0] sm:$0xff]
    %v2172 = vld [vmem:[#allocation2 + $0x1c8] sm:$0xff]
    %v2173 = vld [vmem:[#allocation2 + $0x1d0] sm:$0xff]
    %v2174 = vld [vmem:[#allocation2 + $0x1d8] sm:$0xff]
    %v2175 = vld [vmem:[#allocation2 + $0x1e0] sm:$0xff]
    %v2176 = vld [vmem:[#allocation2 + $0x1e8] sm:$0xff]
    %v2177 = vld [vmem:[#allocation2 + $0x1f0] sm:$0xff]
    %v2178 = vld [vmem:[#allocation2 + $0x1f8] sm:$0xff]
    %v2179 = vld [vmem:[#allocation2 + $0x200] sm:$0xff]
    %v2180 = vld [vmem:[#allocation2 + $0x208] sm:$0xff]
    %v2181 = vld [vmem:[#allocation2 + $0x210] sm:$0xff]
    %v2182 = vld [vmem:[#allocation2 + $0x218] sm:$0xff]
    %v2183 = vld [vmem:[#allocation2 + $0x220] sm:$0xff]
    %v2184 = vld [vmem:[#allocation2 + $0x228] sm:$0xff]
    %v2185 = vld [vmem:[#allocation2 + $0x230] sm:$0xff]
    %v2186 = vld [vmem:[#allocation2 + $0x238] sm:$0xff]
    %v2187 = vld [vmem:[#allocation2 + $0x240] sm:$0xff]
    %v2188 = vld [vmem:[#allocation2 + $0x248] sm:$0xff]
    %v2189 = vld [vmem:[#allocation2 + $0x250] sm:$0xff]
    %v2190 = vld [vmem:[#allocation2 + $0x258] sm:$0xff]
    %v2191 = vld [vmem:[#allocation2 + $0x260] sm:$0xff]
    %v2192 = vld [vmem:[#allocation2 + $0x268] sm:$0xff]
    %v2193 = vld [vmem:[#allocation2 + $0x270] sm:$0xff]
    %v2194 = vld [vmem:[#allocation2 + $0x278] sm:$0xff]
    %v2195 = vld [vmem:[#allocation2 + $0x280] sm:$0xff]
    %v2196 = vld [vmem:[#allocation2 + $0x288] sm:$0xff]
    %v2197 = vld [vmem:[#allocation2 + $0x290] sm:$0xff]
    %v2198 = vld [vmem:[#allocation2 + $0x298] sm:$0xff]
    %v2199 = vld [vmem:[#allocation2 + $0x2a0] sm:$0xff]
    %v2200 = vld [vmem:[#allocation2 + $0x2a8] sm:$0xff]
    %v2201 = vld [vmem:[#allocation2 + $0x2b0] sm:$0xff]
    %v2202 = vld [vmem:[#allocation2 + $0x2b8] sm:$0xff]
    %v2203 = vld [vmem:[#allocation2 + $0x2c0] sm:$0xff]
    %v2204 = vld [vmem:[#allocation2 + $0x2c8] sm:$0xff]
    %v2205 = vld [vmem:[#allocation2 + $0x2d0] sm:$0xff]
    %v2206 = vld [vmem:[#allocation2 + $0x2d8] sm:$0xff]
    %v2207 = vld [vmem:[#allocation2 + $0x2e0] sm:$0xff]
    %v2208 = vld [vmem:[#allocation2 + $0x2e8] sm:$0xff]
    %v2209 = vld [vmem:[#allocation2 + $0x2f0] sm:$0xff]
    %v2210 = vld [vmem:[#allocation2 + $0x2f8] sm:$0xff]
    %v2211 = vld [vmem:[#allocation2 + $0x300] sm:$0xff]
    %v2212 = vld [vmem:[#allocation2 + $0x308] sm:$0xff]
    %v2213 = vld [vmem:[#allocation2 + $0x310] sm:$0xff]
    %v2214 = vld [vmem:[#allocation2 + $0x318] sm:$0xff]
    %v2215 = vld [vmem:[#allocation2 + $0x320] sm:$0xff]
    %v2216 = vld [vmem:[#allocation2 + $0x328] sm:$0xff]
    %v2217 = vld [vmem:[#allocation2 + $0x330] sm:$0xff]
    %v2218 = vld [vmem:[#allocation2 + $0x338] sm:$0xff]
    %v2219 = vld [vmem:[#allocation2 + $0x340] sm:$0xff]
    %v2220 = vld [vmem:[#allocation2 + $0x348] sm:$0xff]
    %v2221 = vld [vmem:[#allocation2 + $0x350] sm:$0xff]
    %v2222 = vld [vmem:[#allocation2 + $0x358] sm:$0xff]
    %v2223 = vld [vmem:[#allocation2 + $0x360] sm:$0xff]
    %v2224 = vld [vmem:[#allocation2 + $0x368] sm:$0xff]
    %v2225 = vld [vmem:[#allocation2 + $0x370] sm:$0xff]
    %v2226 = vld [vmem:[#allocation2 + $0x378] sm:$0xff]
    %v2227 = vld [vmem:[#allocation2 + $0x380] sm:$0xff]
    %v2228 = vld [vmem:[#allocation2 + $0x388] sm:$0xff]
    %v2229 = vld [vmem:[#allocation2 + $0x390] sm:$0xff]
    %v2230 = vld [vmem:[#allocation2 + $0x398] sm:$0xff]
    %v2231 = vld [vmem:[#allocation2 + $0x3a0] sm:$0xff]
    %v2232 = vld [vmem:[#allocation2 + $0x3a8] sm:$0xff]
    %v2233 = vld [vmem:[#allocation2 + $0x3b0] sm:$0xff]
    %v2234 = vld [vmem:[#allocation2 + $0x3b8] sm:$0xff]
    %v2235 = vld [vmem:[#allocation2 + $0x3c0] sm:$0xff]
    %v2236 = vld [vmem:[#allocation2 + $0x3c8] sm:$0xff]
    %v2237 = vld [vmem:[#allocation2 + $0x3d0] sm:$0xff]
    %v2238 = vld [vmem:[#allocation2 + $0x3d8] sm:$0xff]
    %v2239 = vld [vmem:[#allocation2 + $0x3e0] sm:$0xff]
    %v2240 = vld [vmem:[#allocation2 + $0x3e8] sm:$0xff]
    %v2241 = vld [vmem:[#allocation2 + $0x3f0] sm:$0xff]
    %v2242 = vld [vmem:[#allocation2 + $0x3f8] sm:$0xff]
    %v2243 = vld [vmem:[#allocation2 + $0x400] sm:$0xff]
    %v2244 = vld [vmem:[#allocation2 + $0x408] sm:$0xff]
    %v2245 = vld [vmem:[#allocation2 + $0x410] sm:$0xff]
    %v2246 = vld [vmem:[#allocation2 + $0x418] sm:$0xff]
    %v2247 = vld [vmem:[#allocation2 + $0x420] sm:$0xff]
    %v2248 = vld [vmem:[#allocation2 + $0x428] sm:$0xff]
    %v2249 = vld [vmem:[#allocation2 + $0x430] sm:$0xff]
    %v2250 = vld [vmem:[#allocation2 + $0x438] sm:$0xff]
    %v2251 = vld [vmem:[#allocation2 + $0x440] sm:$0xff]
    %v2252 = vld [vmem:[#allocation2 + $0x448] sm:$0xff]
    %v2253 = vld [vmem:[#allocation2 + $0x450] sm:$0xff]
    %v2254 = vld [vmem:[#allocation2 + $0x458] sm:$0xff]
    %v2255 = vld [vmem:[#allocation2 + $0x460] sm:$0xff]
    %v2256 = vld [vmem:[#allocation2 + $0x468] sm:$0xff]
    %v2257 = vld [vmem:[#allocation2 + $0x470] sm:$0xff]
    %v2258 = vld [vmem:[#allocation2 + $0x478] sm:$0xff]
    %v2259 = vld [vmem:[%s6] sm:$0x7]
    %v2261 = vlaneseq
    %v2262 = vshrl.u32 %v2261, 7
    %v2263 = vsub.s32 0, %v2262
    %v2264 = vrot.slane %v2259, %v2263
    %v2265 = vlaneseq
    %v2266 = vshrl.u32 %v2265, 7
    %v2267 = vsub.s32 1, %v2266
    %v2268 = vrot.slane %v2259, %v2267
    %v2269 = vlaneseq
    %v2270 = vshrl.u32 %v2269, 7
    %v2271 = vsub.s32 2, %v2270
    %v2272 = vrot.slane %v2259, %v2271
    %2276 = vmatprep.subr.mxu0 %v2161
    %2277 = vmatpush1.msra.mxu0 %v2160
    %2278 = vmatprep.subr.mxu0 %v2158
    %2279 = vmatpush1.msra.mxu0 %v2157
    %2280 = vmatprep.subr.mxu0 %v2155
    %2281 = vmatpush1.msra.mxu0 %v2154
    %2282 = vmatprep.subr.mxu0 %v2152
    %2283 = vmatpush1.msra.mxu0 %v2151
    %2284 = vmatprep.subr.mxu0 %v2149
    %2285 = vmatpush1.msra.mxu0 %v2148
    %2286 = vmatprep.subr.mxu0 %v2146
    %2287 = vmatpush1.msra.mxu0 %v2145
    %2288 = vmatprep.subr.mxu0 %v2143
    %2289 = vmatpush1.msra.mxu0 %v2142
    %2290 = vmatprep.subr.mxu0 %v2140
    %2291 = vmatpush1.msra.mxu0 %v2139
    %2292 = vmatprep.subr.mxu0 %v2137
    %2293 = vmatpush1.msra.mxu0 %v2136
    %2294 = vmatprep.subr.mxu0 %v2134
    %2295 = vmatpush1.msra.mxu0 %v2133
    %2296 = vmatprep.subr.mxu0 %v2131
    %2297 = vmatpush1.msra.mxu0 %v2130
    %2298 = vmatprep.subr.mxu0 %v2128
    %2299 = vmatpush1.msra.mxu0 %v2127
    %2300 = vmatprep.subr.mxu0 %v2125
    %2301 = vmatpush1.msra.mxu0 %v2124
    %2302 = vmatprep.subr.mxu0 %v2122
    %2303 = vmatpush1.msra.mxu0 %v2121
    %2304 = vmatprep.subr.mxu0 %v2119
    %2305 = vmatpush1.msra.mxu0 %v2118
    %2306 = vmatprep.subr.mxu0 %v2116
    %2307 = vmatpush1.msra.mxu0 %v2115
    %2308 = vmatprep.subr.mxu0 %v2209
    %2309 = vmatpush2.msra.mxu0 %v2208
    %2310 = vmatprep.subr.mxu0 %v2206
    %2311 = vmatpush2.msra.mxu0 %v2205
    %2312 = vmatprep.subr.mxu0 %v2203
    %2313 = vmatpush2.msra.mxu0 %v2202
    %2314 = vmatprep.subr.mxu0 %v2200
    %2315 = vmatpush2.msra.mxu0 %v2199
    %2316 = vmatprep.subr.mxu0 %v2197
    %2317 = vmatpush2.msra.mxu0 %v2196
    %2318 = vmatprep.subr.mxu0 %v2194
    %2319 = vmatpush2.msra.mxu0 %v2193
    %2320 = vmatprep.subr.mxu0 %v2191
    %2321 = vmatpush2.msra.mxu0 %v2190
    %2322 = vmatprep.subr.mxu0 %v2188
    %2323 = vmatpush2.msra.mxu0 %v2187
    %2324 = vmatprep.subr.mxu0 %v2185
    %2325 = vmatpush2.msra.mxu0 %v2184
    %2326 = vmatprep.subr.mxu0 %v2182
    %2327 = vmatpush2.msra.mxu0 %v2181
    %2328 = vmatprep.subr.mxu0 %v2179
    %2329 = vmatpush2.msra.mxu0 %v2178
    %2330 = vmatprep.subr.mxu0 %v2176
    %2331 = vmatpush2.msra.mxu0 %v2175
    %2332 = vmatprep.subr.mxu0 %v2173
    %2333 = vmatpush2.msra.mxu0 %v2172
    %2334 = vmatprep.subr.mxu0 %v2170
    %2335 = vmatpush2.msra.mxu0 %v2169
    %2336 = vmatprep.subr.mxu0 %v2167
    %2337 = vmatpush2.msra.mxu0 %v2166
    %2338 = vmatprep.subr.mxu0 %v2164
    %2339 = vmatpush2.msra.mxu0 %v2163
    %2340 = vmatprep.mubr.f32.mxu0 %v2113
    %2341 = vmatmul.mubr.f32.gmra.mxu0 %v2112
    %v2342 = vpop.f32.mrf.mxu0
    %v2343 = vadd.f32 %v2264, %v2342
    %v2344 = vpop.f32.mrf.mxu0
    %v2345 = vadd.f32 %v2268, %v2344
    %2346 = vdwg.mxu0
    %2347 = vmatprep.subr.mxu0 %v2257
    %2348 = vmatpush1.msra.mxu0 %v2256
    %2349 = vmatprep.subr.mxu0 %v2254
    %2350 = vmatpush1.msra.mxu0 %v2253
    %2351 = vmatprep.subr.mxu0 %v2251
    %2352 = vmatpush1.msra.mxu0 %v2250
    %2353 = vmatprep.subr.mxu0 %v2248
    %2354 = vmatpush1.msra.mxu0 %v2247
    %2355 = vmatprep.subr.mxu0 %v2245
    %2356 = vmatpush1.msra.mxu0 %v2244
    %2357 = vmatprep.subr.mxu0 %v2242
    %2358 = vmatpush1.msra.mxu0 %v2241
    %2359 = vmatprep.subr.mxu0 %v2239
    %2360 = vmatpush1.msra.mxu0 %v2238
    %2361 = vmatprep.subr.mxu0 %v2236
    %2362 = vmatpush1.msra.mxu0 %v2235
    %2363 = vmatprep.subr.mxu0 %v2233
    %2364 = vmatpush1.msra.mxu0 %v2232
    %2365 = vmatprep.subr.mxu0 %v2230
    %2366 = vmatpush1.msra.mxu0 %v2229
    %2367 = vmatprep.subr.mxu0 %v2227
    %2368 = vmatpush1.msra.mxu0 %v2226
    %2369 = vmatprep.subr.mxu0 %v2224
    %2370 = vmatpush1.msra.mxu0 %v2223
    %2371 = vmatprep.subr.mxu0 %v2221
    %2372 = vmatpush1.msra.mxu0 %v2220
    %2373 = vmatprep.subr.mxu0 %v2218
    %2374 = vmatpush1.msra.mxu0 %v2217
    %2375 = vmatprep.subr.mxu0 %v2215
    %2376 = vmatpush1.msra.mxu0 %v2214
    %2377 = vmatprep.subr.mxu0 %v2212
    %2378 = vmatpush1.msra.mxu0 %v2211
    %2379 = vmatprep.subr.mxu0 0.0
    %2380 = vmatpush2.msra.mxu0 0.0
    %2381 = vmatprep.subr.mxu0 0.0
    %2382 = vmatpush2.msra.mxu0 0.0
    %2383 = vmatprep.subr.mxu0 0.0
    %2384 = vmatpush2.msra.mxu0 0.0
    %2385 = vmatprep.subr.mxu0 0.0
    %2386 = vmatpush2.msra.mxu0 0.0
    %2387 = vmatprep.subr.mxu0 0.0
    %2388 = vmatpush2.msra.mxu0 0.0
    %2389 = vmatprep.subr.mxu0 0.0
    %2390 = vmatpush2.msra.mxu0 0.0
    %2391 = vmatprep.subr.mxu0 0.0
    %2392 = vmatpush2.msra.mxu0 0.0
    %2393 = vmatprep.subr.mxu0 0.0
    %2394 = vmatpush2.msra.mxu0 0.0
    %2395 = vmatprep.subr.mxu0 0.0
    %2396 = vmatpush2.msra.mxu0 0.0
    %2397 = vmatprep.subr.mxu0 0.0
    %2398 = vmatpush2.msra.mxu0 0.0
    %2399 = vmatprep.subr.mxu0 0.0
    %2400 = vmatpush2.msra.mxu0 0.0
    %2401 = vmatprep.subr.mxu0 0.0
    %2402 = vmatpush2.msra.mxu0 0.0
    %2403 = vmatprep.subr.mxu0 0.0
    %2404 = vmatpush2.msra.mxu0 0.0
    %2405 = vmatprep.subr.mxu0 0.0
    %2406 = vmatpush2.msra.mxu0 0.0
    %2407 = vmatprep.subr.mxu0 0.0
    %2408 = vmatpush2.msra.mxu0 0.0
    %2409 = vmatprep.subr.mxu0 0.0
    %2410 = vmatpush2.msra.mxu0 0.0
    %2411 = vmatprep.mubr.f32.mxu0 0.0
    %2412 = vmatmul.mubr.f32.gmra.mxu0 %v2114
    %v2413 = vpop.f32.mrf.mxu0
    %v2414 = vadd.f32 %v2343, %v2413
    %v2415 = vpop.f32.mrf.mxu0
    %v2416 = vadd.f32 %v2345, %v2415
    %2417 = vdwg.mxu0
    %2418 = vmatprep.subr.mxu0 0.0
    %2419 = vmatpush1.msra.mxu0 %v2162
    %2420 = vmatprep.subr.mxu0 0.0
    %2421 = vmatpush1.msra.mxu0 %v2159
    %2422 = vmatprep.subr.mxu0 0.0
    %2423 = vmatpush1.msra.mxu0 %v2156
    %2424 = vmatprep.subr.mxu0 0.0
    %2425 = vmatpush1.msra.mxu0 %v2153
    %2426 = vmatprep.subr.mxu0 0.0
    %2427 = vmatpush1.msra.mxu0 %v2150
    %2428 = vmatprep.subr.mxu0 0.0
    %2429 = vmatpush1.msra.mxu0 %v2147
    %2430 = vmatprep.subr.mxu0 0.0
    %2431 = vmatpush1.msra.mxu0 %v2144
    %2432 = vmatprep.subr.mxu0 0.0
    %2433 = vmatpush1.msra.mxu0 %v2141
    %2434 = vmatprep.subr.mxu0 0.0
    %2435 = vmatpush1.msra.mxu0 %v2138
    %2436 = vmatprep.subr.mxu0 0.0
    %2437 = vmatpush1.msra.mxu0 %v2135
    %2438 = vmatprep.subr.mxu0 0.0
    %2439 = vmatpush1.msra.mxu0 %v2132
    %2440 = vmatprep.subr.mxu0 0.0
    %2441 = vmatpush1.msra.mxu0 %v2129
    %2442 = vmatprep.subr.mxu0 0.0
    %2443 = vmatpush1.msra.mxu0 %v2126
    %2444 = vmatprep.subr.mxu0 0.0
    %2445 = vmatpush1.msra.mxu0 %v2123
    %2446 = vmatprep.subr.mxu0 0.0
    %2447 = vmatpush1.msra.mxu0 %v2120
    %2448 = vmatprep.subr.mxu0 0.0
    %2449 = vmatpush1.msra.mxu0 %v2117
    %2450 = vmatprep.subr.mxu0 0.0
    %2451 = vmatpush2.msra.mxu0 %v2210
    %2452 = vmatprep.subr.mxu0 0.0
    %2453 = vmatpush2.msra.mxu0 %v2207
    %2454 = vmatprep.subr.mxu0 0.0
    %2455 = vmatpush2.msra.mxu0 %v2204
    %2456 = vmatprep.subr.mxu0 0.0
    %2457 = vmatpush2.msra.mxu0 %v2201
    %2458 = vmatprep.subr.mxu0 0.0
    %2459 = vmatpush2.msra.mxu0 %v2198
    %2460 = vmatprep.subr.mxu0 0.0
    %2461 = vmatpush2.msra.mxu0 %v2195
    %2462 = vmatprep.subr.mxu0 0.0
    %2463 = vmatpush2.msra.mxu0 %v2192
    %2464 = vmatprep.subr.mxu0 0.0
    %2465 = vmatpush2.msra.mxu0 %v2189
    %2466 = vmatprep.subr.mxu0 0.0
    %2467 = vmatpush2.msra.mxu0 %v2186
    %2468 = vmatprep.subr.mxu0 0.0
    %2469 = vmatpush2.msra.mxu0 %v2183
    %2470 = vmatprep.subr.mxu0 0.0
    %2471 = vmatpush2.msra.mxu0 %v2180
    %2472 = vmatprep.subr.mxu0 0.0
    %2473 = vmatpush2.msra.mxu0 %v2177
    %2474 = vmatprep.subr.mxu0 0.0
    %2475 = vmatpush2.msra.mxu0 %v2174
    %2476 = vmatprep.subr.mxu0 0.0
    %2477 = vmatpush2.msra.mxu0 %v2171
    %2478 = vmatprep.subr.mxu0 0.0
    %2479 = vmatpush2.msra.mxu0 %v2168
    %2480 = vmatprep.subr.mxu0 0.0
    %2481 = vmatpush2.msra.mxu0 %v2165
    %2482 = vmatprep.mubr.f32.mxu0 %v2113
    %2483 = vmatmul.mubr.f32.gmra.mxu0 %v2112
    %v2484 = vpop.f32.mrf.mxu0
    %v2485 = vadd.f32 %v2272, %v2484
    %v2486 = vpop.f32.mrf.mxu0
    %2487 = vdwg.mxu0
    %2488 = vmatprep.subr.mxu0 0.0
    %2489 = vmatpush1.msra.mxu0 %v2258
    %2490 = vmatprep.subr.mxu0 0.0
    %2491 = vmatpush1.msra.mxu0 %v2255
    %2492 = vmatprep.subr.mxu0 0.0
    %2493 = vmatpush1.msra.mxu0 %v2252
    %2494 = vmatprep.subr.mxu0 0.0
    %2495 = vmatpush1.msra.mxu0 %v2249
    %2496 = vmatprep.subr.mxu0 0.0
    %2497 = vmatpush1.msra.mxu0 %v2246
    %2498 = vmatprep.subr.mxu0 0.0
    %2499 = vmatpush1.msra.mxu0 %v2243
    %2500 = vmatprep.subr.mxu0 0.0
    %2501 = vmatpush1.msra.mxu0 %v2240
    %2502 = vmatprep.subr.mxu0 0.0
    %2503 = vmatpush1.msra.mxu0 %v2237
    %2504 = vmatprep.subr.mxu0 0.0
    %2505 = vmatpush1.msra.mxu0 %v2234
    %2506 = vmatprep.subr.mxu0 0.0
    %2507 = vmatpush1.msra.mxu0 %v2231
    %2508 = vmatprep.subr.mxu0 0.0
    %2509 = vmatpush1.msra.mxu0 %v2228
    %2510 = vmatprep.subr.mxu0 0.0
    %2511 = vmatpush1.msra.mxu0 %v2225
    %2512 = vmatprep.subr.mxu0 0.0
    %2513 = vmatpush1.msra.mxu0 %v2222
    %2514 = vmatprep.subr.mxu0 0.0
    %2515 = vmatpush1.msra.mxu0 %v2219
    %2516 = vmatprep.subr.mxu0 0.0
    %2517 = vmatpush1.msra.mxu0 %v2216
    %2518 = vmatprep.subr.mxu0 0.0
    %2519 = vmatpush1.msra.mxu0 %v2213
    %2520 = vmatprep.subr.mxu0 0.0
    %2521 = vmatpush2.msra.mxu0 0.0
    %2522 = vmatprep.subr.mxu0 0.0
    %2523 = vmatpush2.msra.mxu0 0.0
    %2524 = vmatprep.subr.mxu0 0.0
    %2525 = vmatpush2.msra.mxu0 0.0
    %2526 = vmatprep.subr.mxu0 0.0
    %2527 = vmatpush2.msra.mxu0 0.0
    %2528 = vmatprep.subr.mxu0 0.0
    %2529 = vmatpush2.msra.mxu0 0.0
    %2530 = vmatprep.subr.mxu0 0.0
    %2531 = vmatpush2.msra.mxu0 0.0
    %2532 = vmatprep.subr.mxu0 0.0
    %2533 = vmatpush2.msra.mxu0 0.0
    %2534 = vmatprep.subr.mxu0 0.0
    %2535 = vmatpush2.msra.mxu0 0.0
    %2536 = vmatprep.subr.mxu0 0.0
    %2537 = vmatpush2.msra.mxu0 0.0
    %2538 = vmatprep.subr.mxu0 0.0
    %2539 = vmatpush2.msra.mxu0 0.0
    %2540 = vmatprep.subr.mxu0 0.0
    %2541 = vmatpush2.msra.mxu0 0.0
    %2542 = vmatprep.subr.mxu0 0.0
    %2543 = vmatpush2.msra.mxu0 0.0
    %2544 = vmatprep.subr.mxu0 0.0
    %2545 = vmatpush2.msra.mxu0 0.0
    %2546 = vmatprep.subr.mxu0 0.0
    %2547 = vmatpush2.msra.mxu0 0.0
    %2548 = vmatprep.subr.mxu0 0.0
    %2549 = vmatpush2.msra.mxu0 0.0
    %2550 = vmatprep.subr.mxu0 0.0
    %2551 = vmatpush2.msra.mxu0 0.0
    %2552 = vmatprep.mubr.f32.mxu0 0.0
    %2553 = vmatmul.mubr.f32.gmra.mxu0 %v2114
    %v2554 = vpop.f32.mrf.mxu0
    %v2555 = vadd.f32 %v2485, %v2554
    %v2556 = vpop.f32.mrf.mxu0
    %2557 = vdwg.mxu0
    %v2558 = vmax.f32 %v2414, 0.0
    %v2559 = vmax.f32 %v2416, 0.0
    %v2560 = vmax.f32 %v2555, 0.0
    %v2561 = vld [vmem:[#allocation5] sm:$0xff]
    %v2562 = vld [vmem:[#allocation5 + $0x8] sm:$0xff]
    %v2563 = vld [vmem:[#allocation5 + $0x10] sm:$0xff]
    %v2564 = vld [vmem:[#allocation5 + $0x18] sm:$0xff]
    %v2565 = vld [vmem:[#allocation5 + $0x20] sm:$0xff]
    %v2566 = vld [vmem:[#allocation5 + $0x28] sm:$0xff]
    %v2567 = vld [vmem:[#allocation5 + $0x30] sm:$0xff]
    %v2568 = vld [vmem:[#allocation5 + $0x38] sm:$0xff]
    %v2569 = vld [vmem:[#allocation5 + $0x40] sm:$0xff]
    %v2570 = vld [vmem:[#allocation5 + $0x48] sm:$0xff]
    %v2571 = vld [vmem:[#allocation5 + $0x50] sm:$0xff]
    %v2572 = vld [vmem:[#allocation5 + $0x58] sm:$0xff]
    %v2573 = vld [vmem:[#allocation5 + $0x60] sm:$0xff]
    %v2574 = vld [vmem:[#allocation5 + $0x68] sm:$0xff]
    %v2575 = vld [vmem:[#allocation5 + $0x70] sm:$0xff]
    %v2576 = vld [vmem:[#allocation5 + $0x78] sm:$0xff]
    %v2577 = vld [vmem:[#allocation5 + $0x80] sm:$0xff]
    %v2578 = vld [vmem:[#allocation5 + $0x88] sm:$0xff]
    %v2579 = vld [vmem:[#allocation5 + $0x90] sm:$0xff]
    %v2580 = vld [vmem:[#allocation5 + $0x98] sm:$0xff]
    %v2581 = vld [vmem:[#allocation5 + $0xa0] sm:$0xff]
    %v2582 = vld [vmem:[#allocation5 + $0xa8] sm:$0xff]
    %v2583 = vld [vmem:[#allocation5 + $0xb0] sm:$0xff]
    %v2584 = vld [vmem:[#allocation5 + $0xb8] sm:$0xff]
    %v2585 = vld [vmem:[#allocation5 + $0xc0] sm:$0xff]
    %v2586 = vld [vmem:[#allocation5 + $0xc8] sm:$0xff]
    %v2587 = vld [vmem:[#allocation5 + $0xd0] sm:$0xff]
    %v2588 = vld [vmem:[#allocation5 + $0xd8] sm:$0xff]
    %v2589 = vld [vmem:[#allocation5 + $0xe0] sm:$0xff]
    %v2590 = vld [vmem:[#allocation5 + $0xe8] sm:$0xff]
    %v2591 = vld [vmem:[#allocation5 + $0xf0] sm:$0xff]
    %v2592 = vld [vmem:[#allocation5 + $0xf8] sm:$0xff]
    %v2593 = vld [vmem:[#allocation5 + $0x100] sm:$0xff]
    %v2594 = vld [vmem:[#allocation5 + $0x108] sm:$0xff]
    %v2595 = vld [vmem:[#allocation5 + $0x110] sm:$0xff]
    %v2596 = vld [vmem:[#allocation5 + $0x118] sm:$0xff]
    %v2597 = vld [vmem:[#allocation5 + $0x120] sm:$0xff]
    %v2598 = vld [vmem:[#allocation5 + $0x128] sm:$0xff]
    %v2599 = vld [vmem:[#allocation5 + $0x130] sm:$0xff]
    %v2600 = vld [vmem:[#allocation5 + $0x138] sm:$0xff]
    %v2601 = vld [vmem:[#allocation5 + $0x140] sm:$0xff]
    %v2602 = vld [vmem:[#allocation5 + $0x148] sm:$0xff]
    %v2603 = vld [vmem:[#allocation5 + $0x150] sm:$0xff]
    %v2604 = vld [vmem:[#allocation5 + $0x158] sm:$0xff]
    %v2605 = vld [vmem:[#allocation5 + $0x160] sm:$0xff]
    %v2606 = vld [vmem:[#allocation5 + $0x168] sm:$0xff]
    %v2607 = vld [vmem:[#allocation5 + $0x170] sm:$0xff]
    %v2608 = vld [vmem:[#allocation5 + $0x178] sm:$0xff]
    %v2609 = vld [vmem:[#allocation5 + $0x180] sm:$0xff]
    %v2610 = vld [vmem:[#allocation5 + $0x188] sm:$0xff]
    %v2611 = vld [vmem:[#allocation5 + $0x190] sm:$0xff]
    %v2612 = vld [vmem:[#allocation5 + $0x198] sm:$0xff]
    %v2613 = vld [vmem:[#allocation5 + $0x1a0] sm:$0xff]
    %v2614 = vld [vmem:[#allocation5 + $0x1a8] sm:$0xff]
    %v2615 = vld [vmem:[#allocation5 + $0x1b0] sm:$0xff]
    %v2616 = vld [vmem:[#allocation5 + $0x1b8] sm:$0xff]
    %v2617 = vld [vmem:[#allocation5 + $0x1c0] sm:$0xff]
    %v2618 = vld [vmem:[#allocation5 + $0x1c8] sm:$0xff]
    %v2619 = vld [vmem:[#allocation5 + $0x1d0] sm:$0xff]
    %v2620 = vld [vmem:[#allocation5 + $0x1d8] sm:$0xff]
    %v2621 = vld [vmem:[#allocation5 + $0x1e0] sm:$0xff]
    %v2622 = vld [vmem:[#allocation5 + $0x1e8] sm:$0xff]
    %v2623 = vld [vmem:[#allocation5 + $0x1f0] sm:$0xff]
    %v2624 = vld [vmem:[#allocation5 + $0x1f8] sm:$0xff]
    %v2625 = vld [vmem:[#allocation5 + $0x200] sm:$0xff]
    %v2626 = vld [vmem:[#allocation5 + $0x208] sm:$0xff]
    %v2627 = vld [vmem:[#allocation5 + $0x210] sm:$0xff]
    %v2628 = vld [vmem:[#allocation5 + $0x218] sm:$0xff]
    %v2629 = vld [vmem:[#allocation5 + $0x220] sm:$0xff]
    %v2630 = vld [vmem:[#allocation5 + $0x228] sm:$0xff]
    %v2631 = vld [vmem:[#allocation5 + $0x230] sm:$0xff]
    %v2632 = vld [vmem:[#allocation5 + $0x238] sm:$0xff]
    %v2633 = vld [vmem:[#allocation5 + $0x240] sm:$0xff]
    %v2634 = vld [vmem:[#allocation5 + $0x248] sm:$0xff]
    %v2635 = vld [vmem:[#allocation5 + $0x250] sm:$0xff]
    %v2636 = vld [vmem:[#allocation5 + $0x258] sm:$0xff]
    %v2637 = vld [vmem:[#allocation5 + $0x260] sm:$0xff]
    %v2638 = vld [vmem:[#allocation5 + $0x268] sm:$0xff]
    %v2639 = vld [vmem:[#allocation5 + $0x270] sm:$0xff]
    %v2640 = vld [vmem:[#allocation5 + $0x278] sm:$0xff]
    %v2641 = vld [vmem:[#allocation5 + $0x280] sm:$0xff]
    %v2642 = vld [vmem:[#allocation5 + $0x288] sm:$0xff]
    %v2643 = vld [vmem:[#allocation5 + $0x290] sm:$0xff]
    %v2644 = vld [vmem:[#allocation5 + $0x298] sm:$0xff]
    %v2645 = vld [vmem:[#allocation5 + $0x2a0] sm:$0xff]
    %v2646 = vld [vmem:[#allocation5 + $0x2a8] sm:$0xff]
    %v2647 = vld [vmem:[#allocation5 + $0x2b0] sm:$0xff]
    %v2648 = vld [vmem:[#allocation5 + $0x2b8] sm:$0xff]
    %v2649 = vld [vmem:[#allocation5 + $0x2c0] sm:$0xff]
    %v2650 = vld [vmem:[#allocation5 + $0x2c8] sm:$0xff]
    %v2651 = vld [vmem:[#allocation5 + $0x2d0] sm:$0xff]
    %v2652 = vld [vmem:[#allocation5 + $0x2d8] sm:$0xff]
    %v2653 = vld [vmem:[#allocation5 + $0x2e0] sm:$0xff]
    %v2654 = vld [vmem:[#allocation5 + $0x2e8] sm:$0xff]
    %v2655 = vld [vmem:[#allocation5 + $0x2f0] sm:$0xff]
    %v2656 = vld [vmem:[#allocation5 + $0x2f8] sm:$0xff]
    %v2657 = vld [vmem:[%s8] sm:$0x3]
    %v2659 = vlaneseq
    %v2660 = vshrl.u32 %v2659, 7
    %v2661 = vsub.s32 0, %v2660
    %v2662 = vrot.slane %v2657, %v2661
    %v2663 = vlaneseq
    %v2664 = vshrl.u32 %v2663, 7
    %v2665 = vsub.s32 1, %v2664
    %v2666 = vrot.slane %v2657, %v2665
    %2669 = vmatprep.subr.mxu0 %v2592
    %2670 = vmatpush1.msra.mxu0 %v2591
    %2671 = vmatprep.subr.mxu0 %v2590
    %2672 = vmatpush1.msra.mxu0 %v2589
    %2673 = vmatprep.subr.mxu0 %v2588
    %2674 = vmatpush1.msra.mxu0 %v2587
    %2675 = vmatprep.subr.mxu0 %v2586
    %2676 = vmatpush1.msra.mxu0 %v2585
    %2677 = vmatprep.subr.mxu0 %v2584
    %2678 = vmatpush1.msra.mxu0 %v2583
    %2679 = vmatprep.subr.mxu0 %v2582
    %2680 = vmatpush1.msra.mxu0 %v2581
    %2681 = vmatprep.subr.mxu0 %v2580
    %2682 = vmatpush1.msra.mxu0 %v2579
    %2683 = vmatprep.subr.mxu0 %v2578
    %2684 = vmatpush1.msra.mxu0 %v2577
    %2685 = vmatprep.subr.mxu0 %v2576
    %2686 = vmatpush1.msra.mxu0 %v2575
    %2687 = vmatprep.subr.mxu0 %v2574
    %2688 = vmatpush1.msra.mxu0 %v2573
    %2689 = vmatprep.subr.mxu0 %v2572
    %2690 = vmatpush1.msra.mxu0 %v2571
    %2691 = vmatprep.subr.mxu0 %v2570
    %2692 = vmatpush1.msra.mxu0 %v2569
    %2693 = vmatprep.subr.mxu0 %v2568
    %2694 = vmatpush1.msra.mxu0 %v2567
    %2695 = vmatprep.subr.mxu0 %v2566
    %2696 = vmatpush1.msra.mxu0 %v2565
    %2697 = vmatprep.subr.mxu0 %v2564
    %2698 = vmatpush1.msra.mxu0 %v2563
    %2699 = vmatprep.subr.mxu0 %v2562
    %2700 = vmatpush1.msra.mxu0 %v2561
    %2701 = vmatprep.subr.mxu0 %v2624
    %2702 = vmatpush2.msra.mxu0 %v2623
    %2703 = vmatprep.subr.mxu0 %v2622
    %2704 = vmatpush2.msra.mxu0 %v2621
    %2705 = vmatprep.subr.mxu0 %v2620
    %2706 = vmatpush2.msra.mxu0 %v2619
    %2707 = vmatprep.subr.mxu0 %v2618
    %2708 = vmatpush2.msra.mxu0 %v2617
    %2709 = vmatprep.subr.mxu0 %v2616
    %2710 = vmatpush2.msra.mxu0 %v2615
    %2711 = vmatprep.subr.mxu0 %v2614
    %2712 = vmatpush2.msra.mxu0 %v2613
    %2713 = vmatprep.subr.mxu0 %v2612
    %2714 = vmatpush2.msra.mxu0 %v2611
    %2715 = vmatprep.subr.mxu0 %v2610
    %2716 = vmatpush2.msra.mxu0 %v2609
    %2717 = vmatprep.subr.mxu0 %v2608
    %2718 = vmatpush2.msra.mxu0 %v2607
    %2719 = vmatprep.subr.mxu0 %v2606
    %2720 = vmatpush2.msra.mxu0 %v2605
    %2721 = vmatprep.subr.mxu0 %v2604
    %2722 = vmatpush2.msra.mxu0 %v2603
    %2723 = vmatprep.subr.mxu0 %v2602
    %2724 = vmatpush2.msra.mxu0 %v2601
    %2725 = vmatprep.subr.mxu0 %v2600
    %2726 = vmatpush2.msra.mxu0 %v2599
    %2727 = vmatprep.subr.mxu0 %v2598
    %2728 = vmatpush2.msra.mxu0 %v2597
    %2729 = vmatprep.subr.mxu0 %v2596
    %2730 = vmatpush2.msra.mxu0 %v2595
    %2731 = vmatprep.subr.mxu0 %v2594
    %2732 = vmatpush2.msra.mxu0 %v2593
    %2733 = vmatprep.mubr.f32.mxu0 %v2559
    %2734 = vmatmul.mubr.f32.gmra.mxu0 %v2558
    %v2735 = vpop.f32.mrf.mxu0
    %v2736 = vadd.f32 %v2662, %v2735
    %v2737 = vpop.f32.mrf.mxu0
    %v2738 = vadd.f32 %v2666, %v2737
    %2739 = vdwg.mxu0
    %2740 = vmatprep.subr.mxu0 %v2656
    %2741 = vmatpush1.msra.mxu0 %v2655
    %2742 = vmatprep.subr.mxu0 %v2654
    %2743 = vmatpush1.msra.mxu0 %v2653
    %2744 = vmatprep.subr.mxu0 %v2652
    %2745 = vmatpush1.msra.mxu0 %v2651
    %2746 = vmatprep.subr.mxu0 %v2650
    %2747 = vmatpush1.msra.mxu0 %v2649
    %2748 = vmatprep.subr.mxu0 %v2648
    %2749 = vmatpush1.msra.mxu0 %v2647
    %2750 = vmatprep.subr.mxu0 %v2646
    %2751 = vmatpush1.msra.mxu0 %v2645
    %2752 = vmatprep.subr.mxu0 %v2644
    %2753 = vmatpush1.msra.mxu0 %v2643
    %2754 = vmatprep.subr.mxu0 %v2642
    %2755 = vmatpush1.msra.mxu0 %v2641
    %2756 = vmatprep.subr.mxu0 %v2640
    %2757 = vmatpush1.msra.mxu0 %v2639
    %2758 = vmatprep.subr.mxu0 %v2638
    %2759 = vmatpush1.msra.mxu0 %v2637
    %2760 = vmatprep.subr.mxu0 %v2636
    %2761 = vmatpush1.msra.mxu0 %v2635
    %2762 = vmatprep.subr.mxu0 %v2634
    %2763 = vmatpush1.msra.mxu0 %v2633
    %2764 = vmatprep.subr.mxu0 %v2632
    %2765 = vmatpush1.msra.mxu0 %v2631
    %2766 = vmatprep.subr.mxu0 %v2630
    %2767 = vmatpush1.msra.mxu0 %v2629
    %2768 = vmatprep.subr.mxu0 %v2628
    %2769 = vmatpush1.msra.mxu0 %v2627
    %2770 = vmatprep.subr.mxu0 %v2626
    %2771 = vmatpush1.msra.mxu0 %v2625
    %2772 = vmatprep.subr.mxu0 0.0
    %2773 = vmatpush2.msra.mxu0 0.0
    %2774 = vmatprep.subr.mxu0 0.0
    %2775 = vmatpush2.msra.mxu0 0.0
    %2776 = vmatprep.subr.mxu0 0.0
    %2777 = vmatpush2.msra.mxu0 0.0
    %2778 = vmatprep.subr.mxu0 0.0
    %2779 = vmatpush2.msra.mxu0 0.0
    %2780 = vmatprep.subr.mxu0 0.0
    %2781 = vmatpush2.msra.mxu0 0.0
    %2782 = vmatprep.subr.mxu0 0.0
    %2783 = vmatpush2.msra.mxu0 0.0
    %2784 = vmatprep.subr.mxu0 0.0
    %2785 = vmatpush2.msra.mxu0 0.0
    %2786 = vmatprep.subr.mxu0 0.0
    %2787 = vmatpush2.msra.mxu0 0.0
    %2788 = vmatprep.subr.mxu0 0.0
    %2789 = vmatpush2.msra.mxu0 0.0
    %2790 = vmatprep.subr.mxu0 0.0
    %2791 = vmatpush2.msra.mxu0 0.0
    %2792 = vmatprep.subr.mxu0 0.0
    %2793 = vmatpush2.msra.mxu0 0.0
    %2794 = vmatprep.subr.mxu0 0.0
    %2795 = vmatpush2.msra.mxu0 0.0
    %2796 = vmatprep.subr.mxu0 0.0
    %2797 = vmatpush2.msra.mxu0 0.0
    %2798 = vmatprep.subr.mxu0 0.0
    %2799 = vmatpush2.msra.mxu0 0.0
    %2800 = vmatprep.subr.mxu0 0.0
    %2801 = vmatpush2.msra.mxu0 0.0
    %2802 = vmatprep.subr.mxu0 0.0
    %2803 = vmatpush2.msra.mxu0 0.0
    %2804 = vmatprep.mubr.f32.mxu0 0.0
    %2805 = vmatmul.mubr.f32.gmra.mxu0 %v2560
    %v2806 = vpop.f32.mrf.mxu0
    %v2807 = vadd.f32 %v2736, %v2806
    %v2808 = vpop.f32.mrf.mxu0
    %v2809 = vadd.f32 %v2738, %v2808
    %2810 = vdwg.mxu0
    %v2811 = vmax.f32 %v2807, 0.0
    %v2812 = vmax.f32 %v2809, 0.0
    %v2813 = vld [vmem:[#allocation7] sm:$0xff]
    %v2814 = vld [vmem:[#allocation7 + $0x8] sm:$0xff]
    %v2815 = vld [vmem:[#allocation7 + $0x10] sm:$0xff]
    %v2816 = vld [vmem:[#allocation7 + $0x18] sm:$0xff]
    %v2817 = vld [vmem:[#allocation7 + $0x20] sm:$0xff]
    %v2818 = vld [vmem:[#allocation7 + $0x28] sm:$0xff]
    %v2819 = vld [vmem:[#allocation7 + $0x30] sm:$0xff]
    %v2820 = vld [vmem:[#allocation7 + $0x38] sm:$0xff]
    %v2821 = vld [vmem:[#allocation7 + $0x40] sm:$0xff]
    %v2822 = vld [vmem:[#allocation7 + $0x48] sm:$0xff]
    %v2823 = vld [vmem:[#allocation7 + $0x50] sm:$0xff]
    %v2824 = vld [vmem:[#allocation7 + $0x58] sm:$0xff]
    %v2825 = vld [vmem:[#allocation7 + $0x60] sm:$0xff]
    %v2826 = vld [vmem:[#allocation7 + $0x68] sm:$0xff]
    %v2827 = vld [vmem:[#allocation7 + $0x70] sm:$0xff]
    %v2828 = vld [vmem:[#allocation7 + $0x78] sm:$0xff]
    %v2829 = vld [vmem:[#allocation7 + $0x80] sm:$0xff]
    %v2830 = vld [vmem:[#allocation7 + $0x88] sm:$0xff]
    %v2831 = vld [vmem:[#allocation7 + $0x90] sm:$0xff]
    %v2832 = vld [vmem:[#allocation7 + $0x98] sm:$0xff]
    %v2833 = vld [vmem:[#allocation7 + $0xa0] sm:$0xff]
    %v2834 = vld [vmem:[#allocation7 + $0xa8] sm:$0xff]
    %v2835 = vld [vmem:[#allocation7 + $0xb0] sm:$0xff]
    %v2836 = vld [vmem:[#allocation7 + $0xb8] sm:$0xff]
    %v2837 = vld [vmem:[#allocation7 + $0xc0] sm:$0xff]
    %v2838 = vld [vmem:[#allocation7 + $0xc8] sm:$0xff]
    %v2839 = vld [vmem:[#allocation7 + $0xd0] sm:$0xff]
    %v2840 = vld [vmem:[#allocation7 + $0xd8] sm:$0xff]
    %v2841 = vld [vmem:[#allocation7 + $0xe0] sm:$0xff]
    %v2842 = vld [vmem:[#allocation7 + $0xe8] sm:$0xff]
    %v2843 = vld [vmem:[#allocation7 + $0xf0] sm:$0xff]
    %v2844 = vld [vmem:[#allocation7 + $0xf8] sm:$0xff]
    %v2845 = vld [vmem:[%s10] sm:$0x1]
    %v2847 = vlaneseq
    %v2848 = vshrl.u32 %v2847, 7
    %v2849 = vsub.s32 0, %v2848
    %v2850 = vrot.slane %v2845, %v2849
    %2852 = vmatprep.subr.mxu0 0.0
    %2853 = vmatpush1.msra.mxu0 %v2828
    %2854 = vmatprep.subr.mxu0 0.0
    %2855 = vmatpush1.msra.mxu0 %v2827
    %2856 = vmatprep.subr.mxu0 0.0
    %2857 = vmatpush1.msra.mxu0 %v2826
    %2858 = vmatprep.subr.mxu0 0.0
    %2859 = vmatpush1.msra.mxu0 %v2825
    %2860 = vmatprep.subr.mxu0 0.0
    %2861 = vmatpush1.msra.mxu0 %v2824
    %2862 = vmatprep.subr.mxu0 0.0
    %2863 = vmatpush1.msra.mxu0 %v2823
    %2864 = vmatprep.subr.mxu0 0.0
    %2865 = vmatpush1.msra.mxu0 %v2822
    %2866 = vmatprep.subr.mxu0 0.0
    %2867 = vmatpush1.msra.mxu0 %v2821
    %2868 = vmatprep.subr.mxu0 0.0
    %2869 = vmatpush1.msra.mxu0 %v2820
    %2870 = vmatprep.subr.mxu0 0.0
    %2871 = vmatpush1.msra.mxu0 %v2819
    %2872 = vmatprep.subr.mxu0 0.0
    %2873 = vmatpush1.msra.mxu0 %v2818
    %2874 = vmatprep.subr.mxu0 0.0
    %2875 = vmatpush1.msra.mxu0 %v2817
    %2876 = vmatprep.subr.mxu0 0.0
    %2877 = vmatpush1.msra.mxu0 %v2816
    %2878 = vmatprep.subr.mxu0 0.0
    %2879 = vmatpush1.msra.mxu0 %v2815
    %2880 = vmatprep.subr.mxu0 0.0
    %2881 = vmatpush1.msra.mxu0 %v2814
    %2882 = vmatprep.subr.mxu0 0.0
    %2883 = vmatpush1.msra.mxu0 %v2813
    %2884 = vmatprep.subr.mxu0 0.0
    %2885 = vmatpush2.msra.mxu0 %v2844
    %2886 = vmatprep.subr.mxu0 0.0
    %2887 = vmatpush2.msra.mxu0 %v2843
    %2888 = vmatprep.subr.mxu0 0.0
    %2889 = vmatpush2.msra.mxu0 %v2842
    %2890 = vmatprep.subr.mxu0 0.0
    %2891 = vmatpush2.msra.mxu0 %v2841
    %2892 = vmatprep.subr.mxu0 0.0
    %2893 = vmatpush2.msra.mxu0 %v2840
    %2894 = vmatprep.subr.mxu0 0.0
    %2895 = vmatpush2.msra.mxu0 %v2839
    %2896 = vmatprep.subr.mxu0 0.0
    %2897 = vmatpush2.msra.mxu0 %v2838
    %2898 = vmatprep.subr.mxu0 0.0
    %2899 = vmatpush2.msra.mxu0 %v2837
    %2900 = vmatprep.subr.mxu0 0.0
    %2901 = vmatpush2.msra.mxu0 %v2836
    %2902 = vmatprep.subr.mxu0 0.0
    %2903 = vmatpush2.msra.mxu0 %v2835
    %2904 = vmatprep.subr.mxu0 0.0
    %2905 = vmatpush2.msra.mxu0 %v2834
    %2906 = vmatprep.subr.mxu0 0.0
    %2907 = vmatpush2.msra.mxu0 %v2833
    %2908 = vmatprep.subr.mxu0 0.0
    %2909 = vmatpush2.msra.mxu0 %v2832
    %2910 = vmatprep.subr.mxu0 0.0
    %2911 = vmatpush2.msra.mxu0 %v2831
    %2912 = vmatprep.subr.mxu0 0.0
    %2913 = vmatpush2.msra.mxu0 %v2830
    %2914 = vmatprep.subr.mxu0 0.0
    %2915 = vmatpush2.msra.mxu0 %v2829
    %2916 = vmatprep.mubr.f32.mxu0 %v2812
    %2917 = vmatmul.mubr.f32.gmra.mxu0 %v2811
    %v2918 = vpop.f32.mrf.mxu0
    %v2919 = vadd.f32 %v2850, %v2918
    %v2920 = vpop.f32.mrf.mxu0
    %2921 = vdwg.mxu0
    %v2922 = vlaneseq
    %v2923 = vand.u32 %v2922, 127
    %vm2924 = vcmp.lt.s32.totalorder %v2923, 10
    %v2925 = vsel %vm2924, %v2919, -1e+30
    %vm2926 = vcmask 1041408
    %v2927 = vsel %vm2926, %v2925, -inf
    %2928 = vmax.xlane.f32.xlu0 %v2927
    %v2929 = vpop.xlane.xlu0 %2928
    %v2930 = vsub.f32 %v2925, %v2929
    %v2931 = vmul.f32 %v2930, 1.442695
    %v2932 = vpow.pop %v2931
    %v2933 = vsel %vm2926, %v2932, 0.0
    %2934 = vadd.xlane.f32.xlu0 %v2933
    %v2935 = vpop.xlane.xlu0 %2934
    %v2936 = vlog2.pop %v2935
    %v2937 = vmul.f32 %v2936, 0.6931472
    %v2938 = vsub.f32 %v2930, %v2937
    %2939 = vst [vmem:[#allocation8] sm:$0x3] %v2938
    // Predicated region
    $region58: #{net_forward.3} parent=1 // pred_check
      _
    $region59: #{net_forward.3} parent=1 // pred_check_branch
      %2941 = sbr.rel (0) target = $region61
    $region60: #{net_forward.3} parent=1 // pred_region
      %s2943 = ssub.s32 32, 32
      %2944 = vsyncadd [#allocation4], %s2943
      %s2946 = sshll.u32 [#allocation8], 4
      %s2947 = int_to_ptr.vmem [resolvable:$true] %s2946
      %2949 = dma.vmem_to_hbm [thread:$0]  %s2947, 32, %s11, [#allocation4]
    $region61: #{net_forward.3} parent=1 // pred_fallthru
      _
    // Predicated region
    $region62: #{net_forward.3} parent=1 // pred_check
      _
    $region63: #{net_forward.3} parent=1 // pred_check_branch
      %2951 = sbr.rel (0) target = $region65
    $region64: #{net_forward.3} parent=1 // pred_region
      %2952 = dma.done [#allocation4], 32
    $region65: #{net_forward.3} parent=1 // pred_fallthru
      _
    %2953 = vsyncpa [#allocation3], 1
    %2954 = vsyncpa [#allocation6], 1
    %2955 = vsyncpa [#allocation4], 1

</llo_original>
